<compile_context>
chip_gen: v7x
topology: tpu7x:2x2x1
jax: 0.10.0
libtpu: 0.0.40
codegen_flags: <defaults>
</compile_context>

<pallas_src>
import jax
import jax.numpy as jnp
from jax import lax
from jax.experimental import pallas as pl
from jax.experimental.pallas import tpu as pltpu

BN_EPS = 1e-5


def _round_up(x, m):
    return ((x + m - 1) // m) * m


def _deepfm_kernel(idx_ref, table_ref, *refs):
    """Transposed dataflow: batch on lanes.

    idx_ref:   (F, TB) int32  -- feature ids with per-table row offsets pre-added.
    table_ref: (D0_pad, V_pad) f32 -- block-diagonal, transposed embedding table.
    refs:      [(W_T bf16 (Hl_pad, in_pad), b f32 (Hl_pad, 1)) * n_hidden,
                w_out f32 (H_last_pad, 1), b_out f32 (1, 1), out_ref (1, 1, TB)].
    Eval mode: BatchNorm folded into (W, b); Dropout == identity.
    """
    out_ref = refs[-1]
    params = refs[:-1]
    n_hidden = (len(params) - 2) // 2

    f_feats, tb = idx_ref.shape
    v_pad = table_ref.shape[1]

    # ---- Fused embedding gather: one-hot (V_pad, TB) @ block-diag table (MXU) ----
    idx = idx_ref[...]                                         # (F, TB) int32
    v_iota = lax.broadcasted_iota(jnp.int32, (v_pad, tb), 0)
    oh = jnp.zeros((v_pad, tb), jnp.float32)
    for f in range(f_feats):                                   # disjoint row blocks -> sum == scatter
        oh = oh + (v_iota == idx[f:f + 1, :]).astype(jnp.float32)
    # x_T[d, b] == concat_f emb_f[x[b, f]][d]; exactly one non-zero term per element,
    # so the f32 matmul reproduces the table values exactly.
    x_T = jnp.dot(table_ref[...], oh, preferred_element_type=jnp.float32)  # (D0_pad, TB)

    # ---- FM: 0.5 * ((sum_d x)^2 - sum_d x^2) over the concatenated dim (f32) ----
    s = jnp.sum(x_T, axis=0, keepdims=True)                    # (1, TB)
    q = jnp.sum(x_T * x_T, axis=0, keepdims=True)              # (1, TB)
    fm = 0.5 * (s * s - q)

    # ---- Deep: [Linear(+folded BN) -> ReLU] * n_hidden, then 1-wide Linear ----
    h = x_T.astype(jnp.bfloat16)
    h32 = x_T
    for l in range(n_hidden):
        w_ref, b_ref = params[2 * l], params[2 * l + 1]
        h32 = jnp.dot(w_ref[...], h, preferred_element_type=jnp.float32) + b_ref[...]
        h32 = jnp.maximum(h32, 0.0)                            # ReLU (eval Dropout = identity)
        h = h32.astype(jnp.bfloat16)
    w_out_ref, b_out_ref = params[-2], params[-1]
    # Final out_dim=1 layer as VPU multiply + sublane reduce (no 1-wide matmul).
    deep = jnp.sum(h32 * w_out_ref[...], axis=0, keepdims=True) + b_out_ref[...]

    out_ref[...] = (fm + deep).reshape(out_ref.shape)          # lane-dense (1, 1, TB)
    # TODO(synk): training-mode BatchNorm (running-stat update) and stochastic
    # Dropout (pltpu.prng_seed/prng_random_bits) are omitted; eval mode only.


def _fold_params(mlp_params, d0, d0_pad):
    """[(W(in,out), b, gamma, beta, mean, var) * n, W_out(in,1), b_out(1,1)] ->
    BN-folded, transposed, zero-padded params for the transposed dataflow:
    [(W_T bf16 (out_pad, in_pad), b f32 (out_pad, 1)) * n,
     w_out f32 (H_last_pad, 1), b_out f32 (1, 1)]."""
    n_hidden = (len(mlp_params) - 2) // 6
    folded = []
    in_dim, in_pad = d0, d0_pad
    for l in range(n_hidden):
        w, b, g, beta, mean, var = mlp_params[6 * l:6 * l + 6]
        out_dim = int(w.shape[1])
        out_pad = _round_up(out_dim, 128)                      # MXU-friendly K/N dims
        scale = g * lax.rsqrt(var + BN_EPS)                    # (1, out)
        w_t = (w * scale).T.astype(jnp.float32)                # (out, in)
        b_t = ((b - mean) * scale + beta).T.astype(jnp.float32)  # (out, 1)
        w_p = jnp.zeros((out_pad, in_pad), jnp.float32).at[:out_dim, :in_dim].set(w_t)
        b_p = jnp.zeros((out_pad, 1), jnp.float32).at[:out_dim, :].set(b_t)
        folded += [w_p.astype(jnp.bfloat16), b_p]
        in_dim, in_pad = out_dim, out_pad
    w_out, b_out = mlp_params[-2], mlp_params[-1]
    w_out_p = jnp.zeros((in_pad, 1), jnp.float32).at[:in_dim, :].set(
        jnp.asarray(w_out, jnp.float32).reshape(in_dim, 1))
    folded += [w_out_p, jnp.asarray(b_out, jnp.float32).reshape(1, 1)]
    return folded, n_hidden


def deepfm_forward(x_indices, emb_tables, mlp_params, *, tb=512):
    """x_indices: (B, F) integer feature ids; emb_tables: list of (size_f, E) f32;
    mlp_params: flat [(W, b, gamma, beta, mean, var) * n_hidden, W_out, b_out]
    with W stored as (in_dim, out_dim) (x @ W convention)."""
    B, F = x_indices.shape
    emb_dim = int(emb_tables[0].shape[1])
    d0 = F * emb_dim
    d0_pad = _round_up(d0, 128)

    # ---- Stack per-feature tables into one block-diagonal transposed table:
    #      feature f occupies rows [f*E, (f+1)*E) and columns [off_f, off_f+V_f).
    sizes = [int(t.shape[0]) for t in emb_tables]
    offs, off = [], 0
    for sz in sizes:
        offs.append(off)
        off += sz
    v_total = off
    v_pad = _round_up(v_total, 256)                            # MXU-friendly contraction dim
    table_bd_t = jnp.zeros((d0_pad, v_pad), jnp.float32)
    for f, tab in enumerate(emb_tables):
        table_bd_t = table_bd_t.at[f * emb_dim:(f + 1) * emb_dim,
                                   offs[f]:offs[f] + sizes[f]].set(
                                       jnp.asarray(tab, jnp.float32).T)
    # TODO(synk): for production-scale vocabularies the stacked table will not fit in
    # VMEM; switch to an HBM-resident table (BlockSpec(memory_space=pl.ANY)) with a
    # manual make_async_copy row gather driven by scalar-prefetched indices.

    folded, n_hidden = _fold_params(mlp_params, d0, d0_pad)

    # ---- Batch tiling: batch lives on the LANE axis -> tiles are multiples of 128 ----
    tb = max(128, (int(tb) // 128) * 128)
    tb = min(tb, _round_up(B, 128))
    n_tiles = pl.cdiv(B, tb)
    b_pad = n_tiles * tb

    # Offset-added, transposed, zero-padded indices: (F, b_pad) int32.
    offs_arr = jnp.asarray(offs, jnp.int32)
    idx_t = (jnp.asarray(x_indices, jnp.int32) + offs_arr[None, :]).T
    if b_pad != B:
        idx_t = jnp.pad(idx_t, ((0, 0), (0, b_pad - B)))       # padded rows gather row off_f (dropped later)

    # ---- VMEM budget: streamed blocks (double-buffered) + resident params + temps ----
    h_pads = [folded[2 * l].shape[0] for l in range(n_hidden)] or [d0_pad]
    param_bytes = table_bd_t.size * 4 + sum(int(p.size) * p.dtype.itemsize for p in folded)
    live_tmp = (v_pad * tb * 4                                  # one-hot
                + d0_pad * tb * (4 + 2)                         # x_T f32 + bf16 copy for the MLP
                + 2 * max(h_pads) * tb * (4 + 2))               # activations f32 + bf16, headroom
    need = 2 * (F * tb * 4 + tb * 4) + 2 * param_bytes + live_tmp
    vmem_limit = int(min(max(2 * need, 8 << 20), 48 << 20))     # stays under v7x 64 MiB physical
    # TODO(synk): the weight/bias/table BlockSpecs are logically single-buffered
    # (constant index_map); pipeline_mode=pl.Buffered(1) would halve their reservation.

    # ---- Cost estimate (lets XLA overlap surrounding ops with the kernel) ----
    layer_pairs = list(zip([d0_pad] + h_pads[:-1], h_pads)) if n_hidden else []
    flops = 2 * b_pad * (d0_pad * v_pad + sum(i * o for i, o in layer_pairs) + h_pads[-1]) \
            + 4 * b_pad * d0_pad
    bytes_accessed = idx_t.size * 4 + param_bytes + b_pad * 4
    cost = pl.CostEstimate(flops=int(flops), transcendentals=0,
                           bytes_accessed=int(bytes_accessed))

    in_specs = [pl.BlockSpec((F, tb), lambda i: (0, i)),            # streamed index tile
                pl.BlockSpec(table_bd_t.shape, lambda i: (0, 0))]   # resident gather table
    for p in folded:
        in_specs.append(pl.BlockSpec(p.shape, lambda i: (0, 0)))    # resident weights/biases

    out = pl.pallas_call(
        _deepfm_kernel,
        out_shape=jax.ShapeDtypeStruct((n_tiles, 1, tb), jnp.float32),
        grid_spec=pltpu.PrefetchScalarGridSpec(
            num_scalar_prefetch=0,
            grid=(n_tiles,),
            in_specs=in_specs,
            out_specs=pl.BlockSpec((1, 1, tb), lambda i: (i, 0, 0)),  # lane-dense output row
        ),
        compiler_params=pltpu.CompilerParams(
            # TODO(synk): on v7x consider pltpu.CORE_PARALLEL (or pl.core_map) to
            # guarantee the batch-tile axis is split across both TensorCores.
            dimension_semantics=("parallel",),
            vmem_limit_bytes=vmem_limit,
        ),
        cost_estimate=cost,
    )(idx_t, table_bd_t, *folded)

    return out.reshape(b_pad, 1)[:B]


def _reference(x_indices, emb_tables, mlp_params):
    """Pure-JAX reference mirroring the kernel math (f32 FM, folded-BN bf16 MLP)."""
    x = jnp.concatenate(
        [jnp.asarray(tab, jnp.float32)[x_indices[:, i]] for i, tab in enumerate(emb_tables)],
        axis=1)                                                 # (B, D0) exact f32 embeddings
    s = jnp.sum(x, axis=1, keepdims=True)
    fm = 0.5 * (s * s - jnp.sum(x * x, axis=1, keepdims=True))
    n_hidden = (len(mlp_params) - 2) // 6
    h = x.astype(jnp.bfloat16)
    h32 = x
    for l in range(n_hidden):
        w, b, g, beta, mean, var = mlp_params[6 * l:6 * l + 6]
        scale = g * lax.rsqrt(var + BN_EPS)
        w_f = (w * scale).astype(jnp.bfloat16)
        b_f = ((b - mean) * scale + beta).astype(jnp.float32)
        h32 = jnp.maximum(jnp.dot(h, w_f, preferred_element_type=jnp.float32) + b_f, 0.0)
        h = h32.astype(jnp.bfloat16)
    w_out, b_out = mlp_params[-2], mlp_params[-1]
    deep = jnp.sum(h32 * jnp.asarray(w_out, jnp.float32).reshape(1, -1),
                   axis=1, keepdims=True) + jnp.asarray(b_out, jnp.float32)
    return fm + deep


if __name__ == "__main__":
    # Small deterministic config consistent with DeepFM(emb_dim, hidden_dim, feature_sizes).
    emb_dim = 16
    feature_sizes = [32, 48, 64, 80, 96, 112, 128, 144]         # 8 fields -> D0 = 128
    hidden_dim = [128, 64]
    B = 256
    TB = 128                                                    # 2 batch tiles exercise the grid
    F = len(feature_sizes)
    D0 = F * emb_dim

    key = jax.random.PRNGKey(0)
    keys = jax.random.split(key, 64)
    ki = 0

    # EmbeddingNet tables. Values are kept bf16-representable so the in-kernel one-hot
    # gather is bit-exact regardless of the MXU's f32-pass configuration.
    emb_tables = []
    for sz in feature_sizes:
        t = 0.1 * jax.random.normal(keys[ki], (sz, emb_dim), jnp.float32); ki += 1
        emb_tables.append(t.astype(jnp.bfloat16).astype(jnp.float32))

    # MLP params: Linear -> BN -> ReLU -> Dropout per hidden layer, then Linear(last, 1)
    dims = [D0] + hidden_dim
    mlp_params = []
    for in_d, out_d in zip(dims, dims[1:]):
        w = jax.random.normal(keys[ki], (in_d, out_d), jnp.float32) / jnp.sqrt(float(in_d)); ki += 1
        b = 0.05 * jax.random.normal(keys[ki], (1, out_d), jnp.float32); ki += 1
        gamma = 1.0 + 0.1 * jax.random.normal(keys[ki], (1, out_d), jnp.float32); ki += 1
        beta = 0.1 * jax.random.normal(keys[ki], (1, out_d), jnp.float32); ki += 1
        running_mean = 0.1 * jax.random.normal(keys[ki], (1, out_d), jnp.float32); ki += 1
        running_var = 0.5 + jax.random.uniform(keys[ki], (1, out_d), jnp.float32); ki += 1
        mlp_params += [w, b, gamma, beta, running_mean, running_var]
    w_out = jax.random.normal(keys[ki], (dims[-1], 1), jnp.float32) / jnp.sqrt(float(dims[-1])); ki += 1
    b_out = 0.05 * jax.random.normal(keys[ki], (1, 1), jnp.float32); ki += 1
    mlp_params += [w_out, b_out]

    # Input: (B, F) integer feature ids (PyTorch casts x[:, i] to long)
    cols = []
    for i in range(F):
        cols.append(jax.random.randint(keys[ki], (B,), 0, feature_sizes[i])); ki += 1
    x = jnp.stack(cols, axis=1).astype(jnp.int32)

    out = deepfm_forward(x, emb_tables, mlp_params, tb=TB)
    out = jax.block_until_ready(out)

    ref = _reference(x, emb_tables, mlp_params)
    assert out.shape == (B, 1), out.shape
    assert jnp.allclose(out, ref, rtol=5e-3, atol=5e-3), (
        float(jnp.max(jnp.abs(out - ref))))

    print("KERNEL_OK")
</pallas_src>

<mosaic_0001>
module attributes {stable_mosaic.version = 11 : i64} {
  func.func @_deepfm_kernel(%arg0: i32, %arg1: memref<8x128xi32, #tpu.memory_space<vmem>>, %arg2: memref<128x768xf32, #tpu.memory_space<vmem>>, %arg3: memref<128x128xbf16, #tpu.memory_space<vmem>>, %arg4: memref<128x1xf32, #tpu.memory_space<vmem>>, %arg5: memref<128x128xbf16, #tpu.memory_space<vmem>>, %arg6: memref<128x1xf32, #tpu.memory_space<vmem>>, %arg7: memref<128x1xf32, #tpu.memory_space<vmem>>, %arg8: memref<1x1xf32, #tpu.memory_space<vmem>>, %arg9: memref<1x1x128xf32, #tpu.memory_space<vmem>>) attributes {dimension_semantics = [#tpu.dimension_semantics<parallel>], iteration_bounds = array<i64: 2>, scalar_prefetch = 0 : i64, scratch_operands = 0 : i64, tpu.core_type = #tpu.core_type<tc>, window_params = [{transform_indices = @transform_0, window_bounds = array<i64: 8, 128>}, {pipeline_mode = #tpu.pipeline_mode<synchronous>, transform_indices = @transform_1, window_bounds = array<i64: 128, 768>}, {pipeline_mode = #tpu.pipeline_mode<synchronous>, transform_indices = @transform_2, window_bounds = array<i64: 128, 128>}, {pipeline_mode = #tpu.pipeline_mode<synchronous>, transform_indices = @transform_3, window_bounds = array<i64: 128, 1>}, {pipeline_mode = #tpu.pipeline_mode<synchronous>, transform_indices = @transform_4, window_bounds = array<i64: 128, 128>}, {pipeline_mode = #tpu.pipeline_mode<synchronous>, transform_indices = @transform_5, window_bounds = array<i64: 128, 1>}, {pipeline_mode = #tpu.pipeline_mode<synchronous>, transform_indices = @transform_6, window_bounds = array<i64: 128, 1>}, {pipeline_mode = #tpu.pipeline_mode<synchronous>, transform_indices = @transform_7, window_bounds = array<i64: 1, 1>}, {transform_indices = @transform_8, window_bounds = array<i64: 1, 1, 128>}]} {
    %c0 = arith.constant 0 : index
    %c0_0 = arith.constant 0 : index
    %0 = vector.load %arg1[%c0, %c0_0] : memref<8x128xi32, #tpu.memory_space<vmem>>, vector<8x128xi32>
    %1 = tpu.iota {dimensions = array<i32: 0>} : vector<768x128xi32>
    %cst = arith.constant 0.000000e+00 : f32
    %2 = vector.broadcast %cst : f32 to vector<768x128xf32>
    %3 = vector.extract_strided_slice %0 {offsets = [0, 0], sizes = [1, 128], strides = [1, 1]} : vector<8x128xi32> to vector<1x128xi32>
    %4 = vector.broadcast %3 : vector<1x128xi32> to vector<768x128xi32>
    %5 = arith.cmpi eq, %1, %4 : vector<768x128xi32>
    %6 = arith.extui %5 : vector<768x128xi1> to vector<768x128xi32>
    %7 = arith.sitofp %6 : vector<768x128xi32> to vector<768x128xf32>
    %8 = arith.addf %2, %7 : vector<768x128xf32>
    %9 = vector.extract_strided_slice %0 {offsets = [1, 0], sizes = [1, 128], strides = [1, 1]} : vector<8x128xi32> to vector<1x128xi32>
    %10 = vector.broadcast %9 : vector<1x128xi32> to vector<768x128xi32>
    %11 = arith.cmpi eq, %1, %10 : vector<768x128xi32>
    %12 = arith.extui %11 : vector<768x128xi1> to vector<768x128xi32>
    %13 = arith.sitofp %12 : vector<768x128xi32> to vector<768x128xf32>
    %14 = arith.addf %8, %13 : vector<768x128xf32>
    %15 = vector.extract_strided_slice %0 {offsets = [2, 0], sizes = [1, 128], strides = [1, 1]} : vector<8x128xi32> to vector<1x128xi32>
    %16 = vector.broadcast %15 : vector<1x128xi32> to vector<768x128xi32>
    %17 = arith.cmpi eq, %1, %16 : vector<768x128xi32>
    %18 = arith.extui %17 : vector<768x128xi1> to vector<768x128xi32>
    %19 = arith.sitofp %18 : vector<768x128xi32> to vector<768x128xf32>
    %20 = arith.addf %14, %19 : vector<768x128xf32>
    %21 = vector.extract_strided_slice %0 {offsets = [3, 0], sizes = [1, 128], strides = [1, 1]} : vector<8x128xi32> to vector<1x128xi32>
    %22 = vector.broadcast %21 : vector<1x128xi32> to vector<768x128xi32>
    %23 = arith.cmpi eq, %1, %22 : vector<768x128xi32>
    %24 = arith.extui %23 : vector<768x128xi1> to vector<768x128xi32>
    %25 = arith.sitofp %24 : vector<768x128xi32> to vector<768x128xf32>
    %26 = arith.addf %20, %25 : vector<768x128xf32>
    %27 = vector.extract_strided_slice %0 {offsets = [4, 0], sizes = [1, 128], strides = [1, 1]} : vector<8x128xi32> to vector<1x128xi32>
    %28 = vector.broadcast %27 : vector<1x128xi32> to vector<768x128xi32>
    %29 = arith.cmpi eq, %1, %28 : vector<768x128xi32>
    %30 = arith.extui %29 : vector<768x128xi1> to vector<768x128xi32>
    %31 = arith.sitofp %30 : vector<768x128xi32> to vector<768x128xf32>
    %32 = arith.addf %26, %31 : vector<768x128xf32>
    %33 = vector.extract_strided_slice %0 {offsets = [5, 0], sizes = [1, 128], strides = [1, 1]} : vector<8x128xi32> to vector<1x128xi32>
    %34 = vector.broadcast %33 : vector<1x128xi32> to vector<768x128xi32>
    %35 = arith.cmpi eq, %1, %34 : vector<768x128xi32>
    %36 = arith.extui %35 : vector<768x128xi1> to vector<768x128xi32>
    %37 = arith.sitofp %36 : vector<768x128xi32> to vector<768x128xf32>
    %38 = arith.addf %32, %37 : vector<768x128xf32>
    %39 = vector.extract_strided_slice %0 {offsets = [6, 0], sizes = [1, 128], strides = [1, 1]} : vector<8x128xi32> to vector<1x128xi32>
    %40 = vector.broadcast %39 : vector<1x128xi32> to vector<768x128xi32>
    %41 = arith.cmpi eq, %1, %40 : vector<768x128xi32>
    %42 = arith.extui %41 : vector<768x128xi1> to vector<768x128xi32>
    %43 = arith.sitofp %42 : vector<768x128xi32> to vector<768x128xf32>
    %44 = arith.addf %38, %43 : vector<768x128xf32>
    %45 = vector.extract_strided_slice %0 {offsets = [7, 0], sizes = [1, 128], strides = [1, 1]} : vector<8x128xi32> to vector<1x128xi32>
    %46 = vector.broadcast %45 : vector<1x128xi32> to vector<768x128xi32>
    %47 = arith.cmpi eq, %1, %46 : vector<768x128xi32>
    %48 = arith.extui %47 : vector<768x128xi1> to vector<768x128xi32>
    %49 = arith.sitofp %48 : vector<768x128xi32> to vector<768x128xf32>
    %50 = arith.addf %44, %49 : vector<768x128xf32>
    %c0_1 = arith.constant 0 : index
    %c0_2 = arith.constant 0 : index
    %51 = vector.load %arg2[%c0_1, %c0_2] : memref<128x768xf32, #tpu.memory_space<vmem>>, vector<128x768xf32>
    %cst_3 = arith.constant dense<0.000000e+00> : vector<128x128xf32>
    %52 = tpu.matmul %51, %50, %cst_3 {dimension_numbers = #tpu.dot_dimension_numbers<[1], [0], [0], [1], [0, 0, 1, 1], [], []>} : vector<128x768xf32>, vector<768x128xf32>, vector<128x128xf32> -> vector<128x128xf32>
    %cst_4 = arith.constant dense<0.000000e+00> : vector<128xf32>
    %53 = vector.multi_reduction <add>, %52, %cst_4 [0] : vector<128x128xf32> to vector<128xf32>
    %54 = vector.shape_cast %53 : vector<128xf32> to vector<1x128xf32>
    %55 = arith.mulf %52, %52 : vector<128x128xf32>
    %cst_5 = arith.constant dense<0.000000e+00> : vector<128xf32>
    %56 = vector.multi_reduction <add>, %55, %cst_5 [0] : vector<128x128xf32> to vector<128xf32>
    %57 = vector.shape_cast %56 : vector<128xf32> to vector<1x128xf32>
    %58 = arith.mulf %54, %54 : vector<1x128xf32>
    %59 = arith.subf %58, %57 : vector<1x128xf32>
    %cst_6 = arith.constant 5.000000e-01 : f32
    %60 = vector.broadcast %cst_6 : f32 to vector<1x128xf32>
    %61 = arith.mulf %60, %59 : vector<1x128xf32>
    %62 = arith.truncf %52 : vector<128x128xf32> to vector<128x128xbf16>
    %c0_7 = arith.constant 0 : index
    %c0_8 = arith.constant 0 : index
    %63 = vector.load %arg3[%c0_7, %c0_8] : memref<128x128xbf16, #tpu.memory_space<vmem>>, vector<128x128xbf16>
    %cst_9 = arith.constant dense<0.000000e+00> : vector<128x128xf32>
    %64 = tpu.matmul %63, %62, %cst_9 {dimension_numbers = #tpu.dot_dimension_numbers<[1], [0], [0], [1], [0, 0, 1, 1], [], []>} : vector<128x128xbf16>, vector<128x128xbf16>, vector<128x128xf32> -> vector<128x128xf32>
    %c0_10 = arith.constant 0 : index
    %c0_11 = arith.constant 0 : index
    %65 = vector.load %arg4[%c0_10, %c0_11] : memref<128x1xf32, #tpu.memory_space<vmem>>, vector<128x1xf32>
    %66 = vector.broadcast %65 : vector<128x1xf32> to vector<128x128xf32>
    %67 = arith.addf %64, %66 : vector<128x128xf32>
    %cst_12 = arith.constant 0.000000e+00 : f32
    %68 = vector.broadcast %cst_12 : f32 to vector<128x128xf32>
    %69 = arith.maximumf %67, %68 : vector<128x128xf32>
    %70 = arith.truncf %69 : vector<128x128xf32> to vector<128x128xbf16>
    %c0_13 = arith.constant 0 : index
    %c0_14 = arith.constant 0 : index
    %71 = vector.load %arg5[%c0_13, %c0_14] : memref<128x128xbf16, #tpu.memory_space<vmem>>, vector<128x128xbf16>
    %cst_15 = arith.constant dense<0.000000e+00> : vector<128x128xf32>
    %72 = tpu.matmul %71, %70, %cst_15 {dimension_numbers = #tpu.dot_dimension_numbers<[1], [0], [0], [1], [0, 0, 1, 1], [], []>} : vector<128x128xbf16>, vector<128x128xbf16>, vector<128x128xf32> -> vector<128x128xf32>
    %c0_16 = arith.constant 0 : index
    %c0_17 = arith.constant 0 : index
    %73 = vector.load %arg6[%c0_16, %c0_17] : memref<128x1xf32, #tpu.memory_space<vmem>>, vector<128x1xf32>
    %74 = vector.broadcast %73 : vector<128x1xf32> to vector<128x128xf32>
    %75 = arith.addf %72, %74 : vector<128x128xf32>
    %cst_18 = arith.constant 0.000000e+00 : f32
    %76 = vector.broadcast %cst_18 : f32 to vector<128x128xf32>
    %77 = arith.maximumf %75, %76 : vector<128x128xf32>
    %c0_19 = arith.constant 0 : index
    %c0_20 = arith.constant 0 : index
    %78 = vector.load %arg7[%c0_19, %c0_20] : memref<128x1xf32, #tpu.memory_space<vmem>>, vector<128x1xf32>
    %79 = vector.broadcast %78 : vector<128x1xf32> to vector<128x128xf32>
    %80 = arith.mulf %77, %79 : vector<128x128xf32>
    %cst_21 = arith.constant dense<0.000000e+00> : vector<128xf32>
    %81 = vector.multi_reduction <add>, %80, %cst_21 [0] : vector<128x128xf32> to vector<128xf32>
    %82 = vector.shape_cast %81 : vector<128xf32> to vector<1x128xf32>
    %c0_22 = arith.constant 0 : index
    %c0_23 = arith.constant 0 : index
    %83 = vector.load %arg8[%c0_22, %c0_23] : memref<1x1xf32, #tpu.memory_space<vmem>>, vector<1x1xf32>
    %84 = vector.broadcast %83 : vector<1x1xf32> to vector<1x128xf32>
    %85 = arith.addf %82, %84 : vector<1x128xf32>
    %86 = arith.addf %61, %85 : vector<1x128xf32>
    %87 = vector.shape_cast %86 : vector<1x128xf32> to vector<1x1x128xf32>
    %c0_24 = arith.constant 0 : index
    %c0_25 = arith.constant 0 : index
    %c0_26 = arith.constant 0 : index
    %88 = vector.load %arg9[%c0_24, %c0_25, %c0_26] : memref<1x1x128xf32, #tpu.memory_space<vmem>>, vector<1x1x128xf32>
    tpu.vector_store %arg9[%c0_24, %c0_25, %c0_26], %87 {strides = array<i32>} : memref<1x1x128xf32, #tpu.memory_space<vmem>>, vector<1x1x128xf32>,
    return
  }
  func.func @transform_0(%arg0: i32) -> (i32, i32) {
    %c0_i32 = arith.constant 0 : i32
    %c0_i32_0 = arith.constant 0 : i32
    return %c0_i32, %arg0 : i32, i32
  }
  func.func @transform_1(%arg0: i32) -> (i32, i32) {
    %c0_i32 = arith.constant 0 : i32
    %c0_i32_0 = arith.constant 0 : i32
    %c0_i32_1 = arith.constant 0 : i32
    return %c0_i32, %c0_i32_0 : i32, i32
  }
  func.func @transform_2(%arg0: i32) -> (i32, i32) {
    %c0_i32 = arith.constant 0 : i32
    %c0_i32_0 = arith.constant 0 : i32
    %c0_i32_1 = arith.constant 0 : i32
    return %c0_i32, %c0_i32_0 : i32, i32
  }
  func.func @transform_3(%arg0: i32) -> (i32, i32) {
    %c0_i32 = arith.constant 0 : i32
    %c0_i32_0 = arith.constant 0 : i32
    %c0_i32_1 = arith.constant 0 : i32
    return %c0_i32, %c0_i32_0 : i32, i32
  }
  func.func @transform_4(%arg0: i32) -> (i32, i32) {
    %c0_i32 = arith.constant 0 : i32
    %c0_i32_0 = arith.constant 0 : i32
    %c0_i32_1 = arith.constant 0 : i32
    return %c0_i32, %c0_i32_0 : i32, i32
  }
  func.func @transform_5(%arg0: i32) -> (i32, i32) {
    %c0_i32 = arith.constant 0 : i32
    %c0_i32_0 = arith.constant 0 : i32
    %c0_i32_1 = arith.constant 0 : i32
    return %c0_i32, %c0_i32_0 : i32, i32
  }
  func.func @transform_6(%arg0: i32) -> (i32, i32) {
    %c0_i32 = arith.constant 0 : i32
    %c0_i32_0 = arith.constant 0 : i32
    %c0_i32_1 = arith.constant 0 : i32
    return %c0_i32, %c0_i32_0 : i32, i32
  }
  func.func @transform_7(%arg0: i32) -> (i32, i32) {
    %c0_i32 = arith.constant 0 : i32
    %c0_i32_0 = arith.constant 0 : i32
    %c0_i32_1 = arith.constant 0 : i32
    return %c0_i32, %c0_i32_0 : i32, i32
  }
  func.func @transform_8(%arg0: i32) -> (i32, i32, i32) {
    %c0_i32 = arith.constant 0 : i32
    %c0_i32_0 = arith.constant 0 : i32
    %c0_i32_1 = arith.constant 0 : i32
    return %arg0, %c0_i32, %c0_i32_0 : i32, i32, i32
  }
}

</mosaic_0001>

<llo_original>
// kernel: tpu_custom_call.1
$region0: #{tpu_custom_call.1}
  #allocation0 [shape = 'u32[]', space=smem, size = 0x4, offset = 0x4, fixed_abs, tag = 'smem constant byte address 0x4 - core index']
  #allocation1 [shape = 'u32[144,128]{1,0:T(1,128)}', space=vmem, size = 0x12000, scoped, tag = 'internal scratch']
  #allocation2 [shape = 'f32[1,1]{1,0:T(1,128)S(1)}', space=vmem, size = 0x200, scoped, tag = 'scoped memory for tpu_custom_call.1']
  %s0 = inlined_call_operand.vmem [shape: s32[8,256], index: 0, kind: input, shape index: {}]
  %s1 = inlined_call_operand.hbm [shape: f32[128,768], index: 1, kind: input, shape index: {}]
  %s2 = inlined_call_operand.vmem [shape: bf16[128,128], index: 2, kind: input, shape index: {}]
  %s3 = inlined_call_operand.vmem [shape: f32[128,1], index: 3, kind: input, shape index: {}]
  %s4 = inlined_call_operand.vmem [shape: bf16[128,128], index: 4, kind: input, shape index: {}]
  %s5 = inlined_call_operand.vmem [shape: f32[128,1], index: 5, kind: input, shape index: {}]
  %s6 = inlined_call_operand.vmem [shape: f32[128,1], index: 6, kind: input, shape index: {}]
  %s7 = inlined_call_operand.<no memory space> [shape: f32[1,1], index: 7, kind: input, shape index: {}]
  %s8 = inlined_call_operand.hbm [shape: f32[2,1,128], index: 8, kind: output, shape index: {}]
  %s9 = sld [smem:[#allocation0]]
  $region69: #{tpu_custom_call.1} parent=0
    _
  %s11 = ssub.s32 1, %s9
  %s12 = scalar_select 0, %s11, %s9
  %v13 = vstv %s7
  %14 = vst [vmem:[#allocation2] sm:$0x1] %v13
  $region1: #{tpu_custom_call.1} parent=0
    #allocation3 [shape = 'u8[393216]{0}', space=vmem, size = 0x60000, scoped, tag = 'input window, operand 1, single buffered']
    #allocation4 [shape = 's32[2]{0}', space=sflag, size = 0x8, scoped, tag = 'scoped memory for tpu_custom_call.1']
    #allocation5 [shape = 's32[2]{0}', space=sflag, size = 0x8, scoped, tag = 'scoped memory for tpu_custom_call.1']
    #allocation6 [shape = 'u8[1024]{0}', space=vmem, size = 0x400, scoped, tag = 'output window, operand 0']
    %15 = vsyncpa [#allocation4], 0
    %16 = vsyncpa [#allocation5], 0
    %s17 = scalar_lea.sflag [#allocation5], 1
    %18 = vsyncpa %s17, 0
    loop: start=0, step=1, limit=4
    $region2: #{tpu_custom_call.1} parent=1 // loop_pre_header
      _
    $region3: #{tpu_custom_call.1} parent=1 // loop_header
      %s20 = sphi 0, %s24
      %p21 = scmp.ge.s32.totalorder %s20, 4
      %s30 = sphi 0, %s32
      %s33 = sphi 0, %s30
      %s34 = sphi 0, %s33
      %s50 = sphi 0, %s34
      %s54 = sphi 0, %s54
      %s56 = sphi 0, %s54
      %s57 = sphi 0, %s56
      %s71 = sphi 0, %s57
      %s75 = sphi 0, %s75
      %s77 = sphi 0, %s75
      %s78 = sphi 0, %s77
      %s92 = sphi 0, %s78
      %s96 = sphi 0, %s96
      %s98 = sphi 0, %s96
      %s99 = sphi 0, %s98
      %s113 = sphi 0, %s99
      %s117 = sphi 0, %s117
      %s119 = sphi 0, %s117
      %s120 = sphi 0, %s119
      %s134 = sphi 0, %s120
      %s138 = sphi 0, %s138
      %s140 = sphi 0, %s138
      %s141 = sphi 0, %s140
      %s155 = sphi 0, %s141
      %s159 = sphi 0, %s159
      %s161 = sphi 0, %s159
      %s162 = sphi 0, %s161
      %s176 = sphi 0, %s162
      %s180 = sphi 0, %s180
      %s182 = sphi 0, %s180
      %s183 = sphi 0, %s182
      %s197 = sphi 0, %s183
      %s203 = sphi 0, %s205
      %s206 = sphi 0, %s203
      %s207 = sphi 0, %s206
      %s223 = sphi 0, %s207
    $region4: #{tpu_custom_call.1} parent=1 // loop_header_branch
      %23 = sbr.rel (%p21) target = $region8
    $region5: #{tpu_custom_call.1} parent=1 // loop_body
      %s25 = ssub.s32 %s20, 1
      %s26 = ssub.s32 %s20, 2
      %s27 = sadd.s32 %s20, 1
      %s28 = ssub.s32 %s20, %s27
      %p29 = scmp.eq.s32.totalorder %s28, 0
      %s31 = sadd.s32 %s30, 1
      %s32 = scalar_select %p29, %s30, %s31
      %p35 = pneg %p29
      %p36 = scmp.eq.s32.totalorder %s20, 1
      %p37 = por %p35, %p36
      %p38 = scmp.ne.s32.totalorder %s30, %s33
      %p39 = scmp.eq.s32.totalorder %s20, 0
      %p40 = por %p38, %p39
      %p41 = scmp.ne.s32.totalorder %s30, %s33
      %p42 = scmp.eq.s32.totalorder %s25, 1
      %p43 = por %p41, %p42
      %p44 = scmp.ne.s32.totalorder %s33, %s34
      %p45 = scmp.eq.s32.totalorder %s25, 0
      %p46 = por %p44, %p45
      %p47 = scmp.ne.s32.totalorder %s33, %s34
      %p48 = scmp.eq.s32.totalorder %s26, 1
      %p49 = por %p47, %p48
      %p51 = scmp.ne.s32.totalorder %s34, %s50
      %p52 = scmp.eq.s32.totalorder %s26, 0
      %p53 = por %p51, %p52
      %s55 = sadd.s32 %s54, 1
      %p58 = scmp.eq.s32.totalorder %s20, 1
      %p59 = scmp.ne.s32.totalorder %s54, %s56
      %p60 = scmp.eq.s32.totalorder %s20, 0
      %p61 = por %p59, %p60
      %p62 = scmp.ne.s32.totalorder %s54, %s56
      %p63 = scmp.eq.s32.totalorder %s25, 1
      %p64 = por %p62, %p63
      %p65 = scmp.ne.s32.totalorder %s56, %s57
      %p66 = scmp.eq.s32.totalorder %s25, 0
      %p67 = por %p65, %p66
      %p68 = scmp.ne.s32.totalorder %s56, %s57
      %p69 = scmp.eq.s32.totalorder %s26, 1
      %p70 = por %p68, %p69
      %p72 = scmp.ne.s32.totalorder %s57, %s71
      %p73 = scmp.eq.s32.totalorder %s26, 0
      %p74 = por %p72, %p73
      %s76 = sadd.s32 %s75, 1
      %p79 = scmp.eq.s32.totalorder %s20, 1
      %p80 = scmp.ne.s32.totalorder %s75, %s77
      %p81 = scmp.eq.s32.totalorder %s20, 0
      %p82 = por %p80, %p81
      %p83 = scmp.ne.s32.totalorder %s75, %s77
      %p84 = scmp.eq.s32.totalorder %s25, 1
      %p85 = por %p83, %p84
      %p86 = scmp.ne.s32.totalorder %s77, %s78
      %p87 = scmp.eq.s32.totalorder %s25, 0
      %p88 = por %p86, %p87
      %p89 = scmp.ne.s32.totalorder %s77, %s78
      %p90 = scmp.eq.s32.totalorder %s26, 1
      %p91 = por %p89, %p90
      %p93 = scmp.ne.s32.totalorder %s78, %s92
      %p94 = scmp.eq.s32.totalorder %s26, 0
      %p95 = por %p93, %p94
      %s97 = sadd.s32 %s96, 1
      %p100 = scmp.eq.s32.totalorder %s20, 1
      %p101 = scmp.ne.s32.totalorder %s96, %s98
      %p102 = scmp.eq.s32.totalorder %s20, 0
      %p103 = por %p101, %p102
      %p104 = scmp.ne.s32.totalorder %s96, %s98
      %p105 = scmp.eq.s32.totalorder %s25, 1
      %p106 = por %p104, %p105
      %p107 = scmp.ne.s32.totalorder %s98, %s99
      %p108 = scmp.eq.s32.totalorder %s25, 0
      %p109 = por %p107, %p108
      %p110 = scmp.ne.s32.totalorder %s98, %s99
      %p111 = scmp.eq.s32.totalorder %s26, 1
      %p112 = por %p110, %p111
      %p114 = scmp.ne.s32.totalorder %s99, %s113
      %p115 = scmp.eq.s32.totalorder %s26, 0
      %p116 = por %p114, %p115
      %s118 = sadd.s32 %s117, 1
      %p121 = scmp.eq.s32.totalorder %s20, 1
      %p122 = scmp.ne.s32.totalorder %s117, %s119
      %p123 = scmp.eq.s32.totalorder %s20, 0
      %p124 = por %p122, %p123
      %p125 = scmp.ne.s32.totalorder %s117, %s119
      %p126 = scmp.eq.s32.totalorder %s25, 1
      %p127 = por %p125, %p126
      %p128 = scmp.ne.s32.totalorder %s119, %s120
      %p129 = scmp.eq.s32.totalorder %s25, 0
      %p130 = por %p128, %p129
      %p131 = scmp.ne.s32.totalorder %s119, %s120
      %p132 = scmp.eq.s32.totalorder %s26, 1
      %p133 = por %p131, %p132
      %p135 = scmp.ne.s32.totalorder %s120, %s134
      %p136 = scmp.eq.s32.totalorder %s26, 0
      %p137 = por %p135, %p136
      %s139 = sadd.s32 %s138, 1
      %p142 = scmp.eq.s32.totalorder %s20, 1
      %p143 = scmp.ne.s32.totalorder %s138, %s140
      %p144 = scmp.eq.s32.totalorder %s20, 0
      %p145 = por %p143, %p144
      %p146 = scmp.ne.s32.totalorder %s138, %s140
      %p147 = scmp.eq.s32.totalorder %s25, 1
      %p148 = por %p146, %p147
      %p149 = scmp.ne.s32.totalorder %s140, %s141
      %p150 = scmp.eq.s32.totalorder %s25, 0
      %p151 = por %p149, %p150
      %p152 = scmp.ne.s32.totalorder %s140, %s141
      %p153 = scmp.eq.s32.totalorder %s26, 1
      %p154 = por %p152, %p153
      %p156 = scmp.ne.s32.totalorder %s141, %s155
      %p157 = scmp.eq.s32.totalorder %s26, 0
      %p158 = por %p156, %p157
      %s160 = sadd.s32 %s159, 1
      %p163 = scmp.eq.s32.totalorder %s20, 1
      %p164 = scmp.ne.s32.totalorder %s159, %s161
      %p165 = scmp.eq.s32.totalorder %s20, 0
      %p166 = por %p164, %p165
      %p167 = scmp.ne.s32.totalorder %s159, %s161
      %p168 = scmp.eq.s32.totalorder %s25, 1
      %p169 = por %p167, %p168
      %p170 = scmp.ne.s32.totalorder %s161, %s162
      %p171 = scmp.eq.s32.totalorder %s25, 0
      %p172 = por %p170, %p171
      %p173 = scmp.ne.s32.totalorder %s161, %s162
      %p174 = scmp.eq.s32.totalorder %s26, 1
      %p175 = por %p173, %p174
      %p177 = scmp.ne.s32.totalorder %s162, %s176
      %p178 = scmp.eq.s32.totalorder %s26, 0
      %p179 = por %p177, %p178
      %s181 = sadd.s32 %s180, 1
      %p184 = scmp.eq.s32.totalorder %s20, 1
      %p185 = scmp.ne.s32.totalorder %s180, %s182
      %p186 = scmp.eq.s32.totalorder %s20, 0
      %p187 = por %p185, %p186
      %p188 = scmp.ne.s32.totalorder %s180, %s182
      %p189 = scmp.eq.s32.totalorder %s25, 1
      %p190 = por %p188, %p189
      %p191 = scmp.ne.s32.totalorder %s182, %s183
      %p192 = scmp.eq.s32.totalorder %s25, 0
      %p193 = por %p191, %p192
      %p194 = scmp.ne.s32.totalorder %s182, %s183
      %p195 = scmp.eq.s32.totalorder %s26, 1
      %p196 = por %p194, %p195
      %p198 = scmp.ne.s32.totalorder %s183, %s197
      %p199 = scmp.eq.s32.totalorder %s26, 0
      %p200 = por %p198, %p199
      %s201 = ssub.s32 %s20, %s27
      %p202 = scmp.eq.s32.totalorder %s201, 0
      %s204 = sadd.s32 %s203, 1
      %s205 = scalar_select %p202, %s203, %s204
      %p208 = pneg %p202
      %p209 = scmp.eq.s32.totalorder %s20, 1
      %p210 = por %p208, %p209
      %p211 = scmp.ne.s32.totalorder %s203, %s206
      %p212 = scmp.eq.s32.totalorder %s20, 0
      %p213 = por %p211, %p212
      %p214 = scmp.ne.s32.totalorder %s203, %s206
      %p215 = scmp.eq.s32.totalorder %s25, 1
      %p216 = por %p214, %p215
      %p217 = scmp.ne.s32.totalorder %s206, %s207
      %p218 = scmp.eq.s32.totalorder %s25, 0
      %p219 = por %p217, %p218
      %p220 = scmp.ne.s32.totalorder %s206, %s207
      %p221 = scmp.eq.s32.totalorder %s26, 1
      %p222 = por %p220, %p221
      %p224 = scmp.ne.s32.totalorder %s207, %s223
      %p225 = scmp.eq.s32.totalorder %s26, 0
      %p226 = por %p224, %p225
      %p227 = scmp.le.s32.totalorder 1, %s20
      %p228 = scmp.lt.s32.totalorder %s20, 3
      %p229 = pnand %p227, %p228
      %p230 = pneg %p229
      // Predicated region
      $region9: #{tpu_custom_call.1} parent=5 // pred_check
        _
      $region10: #{tpu_custom_call.1} parent=5 // pred_check_branch
        %232 = sbr.rel (%p229) target = $region12
      $region11: #{tpu_custom_call.1} parent=5 // pred_region
        %s233 = ssub.s32 %s20, 1
        // Predicated region
        $region13: #{tpu_custom_call.1} parent=11 // pred_check
          %p234 = pneg %p67
        $region14: #{tpu_custom_call.1} parent=11 // pred_check_branch
          %236 = sbr.rel (%p234) target = $region16
        $region15: #{tpu_custom_call.1} parent=11 // pred_region
          %s238 = ssub.s32 12288, 12288
          %239 = vsyncadd [#allocation4], %s238
          %s240 = sshll.u32 [#allocation3], 4
          %s241 = int_to_ptr.vmem [resolvable:$true] %s240
          %246 = dma.hbm_to_vmem [thread:$0]  %s1, 12288, %s241, [#allocation4], 768, 768, 48
        $region16: #{tpu_custom_call.1} parent=11 // pred_fallthru
          _
        // Predicated region
        $region17: #{tpu_custom_call.1} parent=11 // pred_check
          %p247 = pneg %p88
        $region18: #{tpu_custom_call.1} parent=11 // pred_check_branch
          %249 = sbr.rel (%p247) target = $region20
        $region19: #{tpu_custom_call.1} parent=11 // pred_region
          _
        $region20: #{tpu_custom_call.1} parent=11 // pred_fallthru
          _
        // Predicated region
        $region21: #{tpu_custom_call.1} parent=11 // pred_check
          %p250 = pneg %p109
        $region22: #{tpu_custom_call.1} parent=11 // pred_check_branch
          %252 = sbr.rel (%p250) target = $region24
        $region23: #{tpu_custom_call.1} parent=11 // pred_region
          _
        $region24: #{tpu_custom_call.1} parent=11 // pred_fallthru
          _
        // Predicated region
        $region25: #{tpu_custom_call.1} parent=11 // pred_check
          %p253 = pneg %p130
        $region26: #{tpu_custom_call.1} parent=11 // pred_check_branch
          %255 = sbr.rel (%p253) target = $region28
        $region27: #{tpu_custom_call.1} parent=11 // pred_region
          _
        $region28: #{tpu_custom_call.1} parent=11 // pred_fallthru
          _
        // Predicated region
        $region29: #{tpu_custom_call.1} parent=11 // pred_check
          %p256 = pneg %p151
        $region30: #{tpu_custom_call.1} parent=11 // pred_check_branch
          %258 = sbr.rel (%p256) target = $region32
        $region31: #{tpu_custom_call.1} parent=11 // pred_region
          _
        $region32: #{tpu_custom_call.1} parent=11 // pred_fallthru
          _
        // Predicated region
        $region33: #{tpu_custom_call.1} parent=11 // pred_check
          %p259 = pneg %p172
        $region34: #{tpu_custom_call.1} parent=11 // pred_check_branch
          %261 = sbr.rel (%p259) target = $region36
        $region35: #{tpu_custom_call.1} parent=11 // pred_region
          _
        $region36: #{tpu_custom_call.1} parent=11 // pred_fallthru
          _
        // Predicated region
        $region37: #{tpu_custom_call.1} parent=11 // pred_check
          %p262 = pneg %p193
        $region38: #{tpu_custom_call.1} parent=11 // pred_check_branch
          %264 = sbr.rel (%p262) target = $region40
        $region39: #{tpu_custom_call.1} parent=11 // pred_region
          _
        $region40: #{tpu_custom_call.1} parent=11 // pred_fallthru
          _
      $region12: #{tpu_custom_call.1} parent=5 // pred_fallthru
        _
      %p265 = scmp.lt.s32.totalorder %s20, 2
      // Predicated region
      $region41: #{tpu_custom_call.1} parent=5 // pred_check
        %p266 = pneg %p265
      $region42: #{tpu_custom_call.1} parent=5 // pred_check_branch
        %268 = sbr.rel (%p266) target = $region44
      $region43: #{tpu_custom_call.1} parent=5 // pred_region
        // Predicated region
        $region45: #{tpu_custom_call.1} parent=43 // pred_check
          %p269 = pneg %p40
        $region46: #{tpu_custom_call.1} parent=43 // pred_check_branch
          %271 = sbr.rel (%p269) target = $region48
        $region47: #{tpu_custom_call.1} parent=43 // pred_region
          %p272 = scmp.lt.s32.totalorder %s20, 1
          %s273 = scalar_select %p272, %s20, 1
          %s274 = smul.addr %s273, 8
          %s275 = scalar_lea.vmem %s0, %s274
        $region48: #{tpu_custom_call.1} parent=43 // pred_fallthru
          _
      $region44: #{tpu_custom_call.1} parent=5 // pred_fallthru
        _
      %p276 = scmp.le.s32.totalorder 1, %s20
      %p277 = scmp.lt.s32.totalorder %s20, 3
      %p278 = pnand %p276, %p277
      %p279 = pneg %p278
      // Predicated region
      $region49: #{tpu_custom_call.1} parent=5 // pred_check
        _
      $region50: #{tpu_custom_call.1} parent=5 // pred_check_branch
        %281 = sbr.rel (%p278) target = $region52
      $region51: #{tpu_custom_call.1} parent=5 // pred_region
        %s282 = ssub.s32 %s20, 1
        // Predicated region
        $region53: #{tpu_custom_call.1} parent=51 // pred_check
          %p283 = pneg %p67
        $region54: #{tpu_custom_call.1} parent=51 // pred_check_branch
          %285 = sbr.rel (%p283) target = $region56
        $region55: #{tpu_custom_call.1} parent=51 // pred_region
          %286 = dma.done [#allocation4], 12288
        $region56: #{tpu_custom_call.1} parent=51 // pred_fallthru
          _
        %p287 = scmp.lt.s32.totalorder %s25, 1
        %s288 = scalar_select %p287, %s25, 1
        %s289 = smul.addr %s288, 8
        %s290 = scalar_lea.vmem %s0, %s289
        %p291 = pneg %p46
        %p292 = pneg %p43
        %p293 = pneg %p67
        %p294 = pneg %p64
        %p295 = pneg %p88
        %p296 = pneg %p85
        %p297 = pneg %p109
        %p298 = pneg %p106
        %p299 = pneg %p130
        %p300 = pneg %p127
        %p301 = pneg %p151
        %p302 = pneg %p148
        %p303 = pneg %p172
        %p304 = pneg %p169
        %p305 = pneg %p193
        %p306 = pneg %p190
        %p307 = pneg %p219
        %p308 = pneg %p216
        %s309 = sand.u32 %s206, 1
        %s310 = scalar_lea.sflag [#allocation5], %s309
        %s311 = sand.u32 %s206, 1
        %s312 = scalar_lea.vmem [#allocation6], %s311
        %p313 = scmp.lt.s32.totalorder %s25, 1
        %s314 = scalar_select %p313, %s25, 1
        %s315 = smul.addr %s314, 8
        %s316 = scalar_lea.vmem %s0, %s315
        %v318 = vld [vmem:[%s316] sm:$0xff]
        %v319 = vlaneseq
        %v320 = vshrl.u32 %v319, 7
        %v321 = vadd.s32 %v320, 8
        %v322 = vadd.s32 %v320, 16
        %v323 = vadd.s32 %v320, 24
        %v324 = vadd.s32 %v320, 32
        %v325 = vadd.s32 %v320, 40
        %v326 = vadd.s32 %v320, 48
        %v327 = vadd.s32 %v320, 56
        %v328 = vadd.s32 %v320, 64
        %v329 = vadd.s32 %v320, 72
        %v330 = vadd.s32 %v320, 80
        %v331 = vadd.s32 %v320, 88
        %v332 = vadd.s32 %v320, 96
        %v333 = vadd.s32 %v320, 104
        %v334 = vadd.s32 %v320, 112
        %v335 = vadd.s32 %v320, 120
        %v336 = vadd.s32 %v320, 128
        %v337 = vadd.s32 %v320, 136
        %v338 = vadd.s32 %v320, 144
        %v339 = vadd.s32 %v320, 152
        %v340 = vadd.s32 %v320, 160
        %v341 = vadd.s32 %v320, 168
        %v342 = vadd.s32 %v320, 176
        %v343 = vadd.s32 %v320, 184
        %v344 = vadd.s32 %v320, 192
        %v345 = vadd.s32 %v320, 200
        %v346 = vadd.s32 %v320, 208
        %v347 = vadd.s32 %v320, 216
        %v348 = vadd.s32 %v320, 224
        %v349 = vadd.s32 %v320, 232
        %v350 = vadd.s32 %v320, 240
        %v351 = vadd.s32 %v320, 248
        %v352 = vadd.s32 %v320, 256
        %v353 = vadd.s32 %v320, 264
        %v354 = vadd.s32 %v320, 272
        %v355 = vadd.s32 %v320, 280
        %v356 = vadd.s32 %v320, 288
        %v357 = vadd.s32 %v320, 296
        %v358 = vadd.s32 %v320, 304
        %v359 = vadd.s32 %v320, 312
        %v360 = vadd.s32 %v320, 320
        %v361 = vadd.s32 %v320, 328
        %v362 = vadd.s32 %v320, 336
        %v363 = vadd.s32 %v320, 344
        %v364 = vadd.s32 %v320, 352
        %v365 = vadd.s32 %v320, 360
        %v366 = vadd.s32 %v320, 368
        %v367 = vadd.s32 %v320, 376
        %v368 = vadd.s32 %v320, 384
        %v369 = vadd.s32 %v320, 392
        %v370 = vadd.s32 %v320, 400
        %v371 = vadd.s32 %v320, 408
        %v372 = vadd.s32 %v320, 416
        %v373 = vadd.s32 %v320, 424
        %v374 = vadd.s32 %v320, 432
        %v375 = vadd.s32 %v320, 440
        %v376 = vadd.s32 %v320, 448
        %v377 = vadd.s32 %v320, 456
        %v378 = vadd.s32 %v320, 464
        %v379 = vadd.s32 %v320, 472
        %v380 = vadd.s32 %v320, 480
        %v381 = vadd.s32 %v320, 488
        %v382 = vadd.s32 %v320, 496
        %v383 = vadd.s32 %v320, 504
        %v384 = vadd.s32 %v320, 512
        %v385 = vadd.s32 %v320, 520
        %v386 = vadd.s32 %v320, 528
        %v387 = vadd.s32 %v320, 536
        %v388 = vadd.s32 %v320, 544
        %v389 = vadd.s32 %v320, 552
        %v390 = vadd.s32 %v320, 560
        %v391 = vadd.s32 %v320, 568
        %v392 = vadd.s32 %v320, 576
        %v393 = vadd.s32 %v320, 584
        %v394 = vadd.s32 %v320, 592
        %v395 = vadd.s32 %v320, 600
        %v396 = vadd.s32 %v320, 608
        %v397 = vadd.s32 %v320, 616
        %v398 = vadd.s32 %v320, 624
        %v399 = vadd.s32 %v320, 632
        %v400 = vadd.s32 %v320, 640
        %v401 = vadd.s32 %v320, 648
        %v402 = vadd.s32 %v320, 656
        %v403 = vadd.s32 %v320, 664
        %v404 = vadd.s32 %v320, 672
        %v405 = vadd.s32 %v320, 680
        %v406 = vadd.s32 %v320, 688
        %v407 = vadd.s32 %v320, 696
        %v408 = vadd.s32 %v320, 704
        %v409 = vadd.s32 %v320, 712
        %v410 = vadd.s32 %v320, 720
        %v411 = vadd.s32 %v320, 728
        %v412 = vadd.s32 %v320, 736
        %v413 = vadd.s32 %v320, 744
        %v414 = vadd.s32 %v320, 752
        %v415 = vadd.s32 %v320, 760
        %v416 = vlaneseq
        %v417 = vshrl.u32 %v416, 7
        %v418 = vsub.s32 0, %v417
        %v419 = vrot.slane %v318, %v418
        %vm420 = vcmp.eq.s32.totalorder %v320, %v419
        %vm421 = vcmp.eq.s32.totalorder %v321, %v419
        %vm422 = vcmp.eq.s32.totalorder %v322, %v419
        %vm423 = vcmp.eq.s32.totalorder %v323, %v419
        %vm424 = vcmp.eq.s32.totalorder %v324, %v419
        %vm425 = vcmp.eq.s32.totalorder %v325, %v419
        %vm426 = vcmp.eq.s32.totalorder %v326, %v419
        %vm427 = vcmp.eq.s32.totalorder %v327, %v419
        %vm428 = vcmp.eq.s32.totalorder %v328, %v419
        %vm429 = vcmp.eq.s32.totalorder %v329, %v419
        %vm430 = vcmp.eq.s32.totalorder %v330, %v419
        %vm431 = vcmp.eq.s32.totalorder %v331, %v419
        %vm432 = vcmp.eq.s32.totalorder %v332, %v419
        %vm433 = vcmp.eq.s32.totalorder %v333, %v419
        %vm434 = vcmp.eq.s32.totalorder %v334, %v419
        %vm435 = vcmp.eq.s32.totalorder %v335, %v419
        %vm436 = vcmp.eq.s32.totalorder %v336, %v419
        %vm437 = vcmp.eq.s32.totalorder %v337, %v419
        %vm438 = vcmp.eq.s32.totalorder %v338, %v419
        %vm439 = vcmp.eq.s32.totalorder %v339, %v419
        %vm440 = vcmp.eq.s32.totalorder %v340, %v419
        %vm441 = vcmp.eq.s32.totalorder %v341, %v419
        %vm442 = vcmp.eq.s32.totalorder %v342, %v419
        %vm443 = vcmp.eq.s32.totalorder %v343, %v419
        %vm444 = vcmp.eq.s32.totalorder %v344, %v419
        %vm445 = vcmp.eq.s32.totalorder %v345, %v419
        %vm446 = vcmp.eq.s32.totalorder %v346, %v419
        %vm447 = vcmp.eq.s32.totalorder %v347, %v419
        %vm448 = vcmp.eq.s32.totalorder %v348, %v419
        %vm449 = vcmp.eq.s32.totalorder %v349, %v419
        %vm450 = vcmp.eq.s32.totalorder %v350, %v419
        %vm451 = vcmp.eq.s32.totalorder %v351, %v419
        %vm452 = vcmp.eq.s32.totalorder %v352, %v419
        %vm453 = vcmp.eq.s32.totalorder %v353, %v419
        %vm454 = vcmp.eq.s32.totalorder %v354, %v419
        %vm455 = vcmp.eq.s32.totalorder %v355, %v419
        %vm456 = vcmp.eq.s32.totalorder %v356, %v419
        %vm457 = vcmp.eq.s32.totalorder %v357, %v419
        %vm458 = vcmp.eq.s32.totalorder %v358, %v419
        %vm459 = vcmp.eq.s32.totalorder %v359, %v419
        %vm460 = vcmp.eq.s32.totalorder %v360, %v419
        %vm461 = vcmp.eq.s32.totalorder %v361, %v419
        %vm462 = vcmp.eq.s32.totalorder %v362, %v419
        %vm463 = vcmp.eq.s32.totalorder %v363, %v419
        %vm464 = vcmp.eq.s32.totalorder %v364, %v419
        %vm465 = vcmp.eq.s32.totalorder %v365, %v419
        %vm466 = vcmp.eq.s32.totalorder %v366, %v419
        %vm467 = vcmp.eq.s32.totalorder %v367, %v419
        %vm468 = vcmp.eq.s32.totalorder %v368, %v419
        %vm469 = vcmp.eq.s32.totalorder %v369, %v419
        %vm470 = vcmp.eq.s32.totalorder %v370, %v419
        %vm471 = vcmp.eq.s32.totalorder %v371, %v419
        %vm472 = vcmp.eq.s32.totalorder %v372, %v419
        %vm473 = vcmp.eq.s32.totalorder %v373, %v419
        %vm474 = vcmp.eq.s32.totalorder %v374, %v419
        %vm475 = vcmp.eq.s32.totalorder %v375, %v419
        %vm476 = vcmp.eq.s32.totalorder %v376, %v419
        %vm477 = vcmp.eq.s32.totalorder %v377, %v419
        %vm478 = vcmp.eq.s32.totalorder %v378, %v419
        %vm479 = vcmp.eq.s32.totalorder %v379, %v419
        %vm480 = vcmp.eq.s32.totalorder %v380, %v419
        %vm481 = vcmp.eq.s32.totalorder %v381, %v419
        %vm482 = vcmp.eq.s32.totalorder %v382, %v419
        %vm483 = vcmp.eq.s32.totalorder %v383, %v419
        %vm484 = vcmp.eq.s32.totalorder %v384, %v419
        %vm485 = vcmp.eq.s32.totalorder %v385, %v419
        %vm486 = vcmp.eq.s32.totalorder %v386, %v419
        %vm487 = vcmp.eq.s32.totalorder %v387, %v419
        %vm488 = vcmp.eq.s32.totalorder %v388, %v419
        %vm489 = vcmp.eq.s32.totalorder %v389, %v419
        %vm490 = vcmp.eq.s32.totalorder %v390, %v419
        %vm491 = vcmp.eq.s32.totalorder %v391, %v419
        %vm492 = vcmp.eq.s32.totalorder %v392, %v419
        %vm493 = vcmp.eq.s32.totalorder %v393, %v419
        %vm494 = vcmp.eq.s32.totalorder %v394, %v419
        %vm495 = vcmp.eq.s32.totalorder %v395, %v419
        %vm496 = vcmp.eq.s32.totalorder %v396, %v419
        %vm497 = vcmp.eq.s32.totalorder %v397, %v419
        %vm498 = vcmp.eq.s32.totalorder %v398, %v419
        %vm499 = vcmp.eq.s32.totalorder %v399, %v419
        %vm500 = vcmp.eq.s32.totalorder %v400, %v419
        %vm501 = vcmp.eq.s32.totalorder %v401, %v419
        %vm502 = vcmp.eq.s32.totalorder %v402, %v419
        %vm503 = vcmp.eq.s32.totalorder %v403, %v419
        %vm504 = vcmp.eq.s32.totalorder %v404, %v419
        %vm505 = vcmp.eq.s32.totalorder %v405, %v419
        %vm506 = vcmp.eq.s32.totalorder %v406, %v419
        %vm507 = vcmp.eq.s32.totalorder %v407, %v419
        %vm508 = vcmp.eq.s32.totalorder %v408, %v419
        %vm509 = vcmp.eq.s32.totalorder %v409, %v419
        %vm510 = vcmp.eq.s32.totalorder %v410, %v419
        %vm511 = vcmp.eq.s32.totalorder %v411, %v419
        %vm512 = vcmp.eq.s32.totalorder %v412, %v419
        %vm513 = vcmp.eq.s32.totalorder %v413, %v419
        %vm514 = vcmp.eq.s32.totalorder %v414, %v419
        %vm515 = vcmp.eq.s32.totalorder %v415, %v419
        %v516 = vsel %vm420, 1, 0
        %v517 = vsel %vm421, 1, 0
        %v518 = vsel %vm422, 1, 0
        %v519 = vsel %vm423, 1, 0
        %v520 = vsel %vm424, 1, 0
        %v521 = vsel %vm425, 1, 0
        %v522 = vsel %vm426, 1, 0
        %v523 = vsel %vm427, 1, 0
        %v524 = vsel %vm428, 1, 0
        %v525 = vsel %vm429, 1, 0
        %v526 = vsel %vm430, 1, 0
        %v527 = vsel %vm431, 1, 0
        %v528 = vsel %vm432, 1, 0
        %v529 = vsel %vm433, 1, 0
        %v530 = vsel %vm434, 1, 0
        %v531 = vsel %vm435, 1, 0
        %v532 = vsel %vm436, 1, 0
        %v533 = vsel %vm437, 1, 0
        %v534 = vsel %vm438, 1, 0
        %v535 = vsel %vm439, 1, 0
        %v536 = vsel %vm440, 1, 0
        %v537 = vsel %vm441, 1, 0
        %v538 = vsel %vm442, 1, 0
        %v539 = vsel %vm443, 1, 0
        %v540 = vsel %vm444, 1, 0
        %v541 = vsel %vm445, 1, 0
        %v542 = vsel %vm446, 1, 0
        %v543 = vsel %vm447, 1, 0
        %v544 = vsel %vm448, 1, 0
        %v545 = vsel %vm449, 1, 0
        %v546 = vsel %vm450, 1, 0
        %v547 = vsel %vm451, 1, 0
        %v548 = vsel %vm452, 1, 0
        %v549 = vsel %vm453, 1, 0
        %v550 = vsel %vm454, 1, 0
        %v551 = vsel %vm455, 1, 0
        %v552 = vsel %vm456, 1, 0
        %v553 = vsel %vm457, 1, 0
        %v554 = vsel %vm458, 1, 0
        %v555 = vsel %vm459, 1, 0
        %v556 = vsel %vm460, 1, 0
        %v557 = vsel %vm461, 1, 0
        %v558 = vsel %vm462, 1, 0
        %v559 = vsel %vm463, 1, 0
        %v560 = vsel %vm464, 1, 0
        %v561 = vsel %vm465, 1, 0
        %v562 = vsel %vm466, 1, 0
        %v563 = vsel %vm467, 1, 0
        %v564 = vsel %vm468, 1, 0
        %v565 = vsel %vm469, 1, 0
        %v566 = vsel %vm470, 1, 0
        %v567 = vsel %vm471, 1, 0
        %v568 = vsel %vm472, 1, 0
        %v569 = vsel %vm473, 1, 0
        %v570 = vsel %vm474, 1, 0
        %v571 = vsel %vm475, 1, 0
        %v572 = vsel %vm476, 1, 0
        %v573 = vsel %vm477, 1, 0
        %v574 = vsel %vm478, 1, 0
        %v575 = vsel %vm479, 1, 0
        %v576 = vsel %vm480, 1, 0
        %v577 = vsel %vm481, 1, 0
        %v578 = vsel %vm482, 1, 0
        %v579 = vsel %vm483, 1, 0
        %v580 = vsel %vm484, 1, 0
        %v581 = vsel %vm485, 1, 0
        %v582 = vsel %vm486, 1, 0
        %v583 = vsel %vm487, 1, 0
        %v584 = vsel %vm488, 1, 0
        %v585 = vsel %vm489, 1, 0
        %v586 = vsel %vm490, 1, 0
        %v587 = vsel %vm491, 1, 0
        %v588 = vsel %vm492, 1, 0
        %v589 = vsel %vm493, 1, 0
        %v590 = vsel %vm494, 1, 0
        %v591 = vsel %vm495, 1, 0
        %v592 = vsel %vm496, 1, 0
        %v593 = vsel %vm497, 1, 0
        %v594 = vsel %vm498, 1, 0
        %v595 = vsel %vm499, 1, 0
        %v596 = vsel %vm500, 1, 0
        %v597 = vsel %vm501, 1, 0
        %v598 = vsel %vm502, 1, 0
        %v599 = vsel %vm503, 1, 0
        %v600 = vsel %vm504, 1, 0
        %v601 = vsel %vm505, 1, 0
        %v602 = vsel %vm506, 1, 0
        %v603 = vsel %vm507, 1, 0
        %v604 = vsel %vm508, 1, 0
        %v605 = vsel %vm509, 1, 0
        %v606 = vsel %vm510, 1, 0
        %v607 = vsel %vm511, 1, 0
        %v608 = vsel %vm512, 1, 0
        %v609 = vsel %vm513, 1, 0
        %v610 = vsel %vm514, 1, 0
        %v611 = vsel %vm515, 1, 0
        %v612 = vcvt.s32.f32 %v516
        %v613 = vcvt.s32.f32 %v517
        %v614 = vcvt.s32.f32 %v518
        %v615 = vcvt.s32.f32 %v519
        %v616 = vcvt.s32.f32 %v520
        %v617 = vcvt.s32.f32 %v521
        %v618 = vcvt.s32.f32 %v522
        %v619 = vcvt.s32.f32 %v523
        %v620 = vcvt.s32.f32 %v524
        %v621 = vcvt.s32.f32 %v525
        %v622 = vcvt.s32.f32 %v526
        %v623 = vcvt.s32.f32 %v527
        %v624 = vcvt.s32.f32 %v528
        %v625 = vcvt.s32.f32 %v529
        %v626 = vcvt.s32.f32 %v530
        %v627 = vcvt.s32.f32 %v531
        %v628 = vcvt.s32.f32 %v532
        %v629 = vcvt.s32.f32 %v533
        %v630 = vcvt.s32.f32 %v534
        %v631 = vcvt.s32.f32 %v535
        %v632 = vcvt.s32.f32 %v536
        %v633 = vcvt.s32.f32 %v537
        %v634 = vcvt.s32.f32 %v538
        %v635 = vcvt.s32.f32 %v539
        %v636 = vcvt.s32.f32 %v540
        %v637 = vcvt.s32.f32 %v541
        %v638 = vcvt.s32.f32 %v542
        %v639 = vcvt.s32.f32 %v543
        %v640 = vcvt.s32.f32 %v544
        %v641 = vcvt.s32.f32 %v545
        %v642 = vcvt.s32.f32 %v546
        %v643 = vcvt.s32.f32 %v547
        %v644 = vcvt.s32.f32 %v548
        %v645 = vcvt.s32.f32 %v549
        %v646 = vcvt.s32.f32 %v550
        %v647 = vcvt.s32.f32 %v551
        %v648 = vcvt.s32.f32 %v552
        %v649 = vcvt.s32.f32 %v553
        %v650 = vcvt.s32.f32 %v554
        %v651 = vcvt.s32.f32 %v555
        %v652 = vcvt.s32.f32 %v556
        %v653 = vcvt.s32.f32 %v557
        %v654 = vcvt.s32.f32 %v558
        %v655 = vcvt.s32.f32 %v559
        %v656 = vcvt.s32.f32 %v560
        %v657 = vcvt.s32.f32 %v561
        %v658 = vcvt.s32.f32 %v562
        %v659 = vcvt.s32.f32 %v563
        %v660 = vcvt.s32.f32 %v564
        %v661 = vcvt.s32.f32 %v565
        %v662 = vcvt.s32.f32 %v566
        %v663 = vcvt.s32.f32 %v567
        %v664 = vcvt.s32.f32 %v568
        %v665 = vcvt.s32.f32 %v569
        %v666 = vcvt.s32.f32 %v570
        %v667 = vcvt.s32.f32 %v571
        %v668 = vcvt.s32.f32 %v572
        %v669 = vcvt.s32.f32 %v573
        %v670 = vcvt.s32.f32 %v574
        %v671 = vcvt.s32.f32 %v575
        %v672 = vcvt.s32.f32 %v576
        %v673 = vcvt.s32.f32 %v577
        %v674 = vcvt.s32.f32 %v578
        %v675 = vcvt.s32.f32 %v579
        %v676 = vcvt.s32.f32 %v580
        %v677 = vcvt.s32.f32 %v581
        %v678 = vcvt.s32.f32 %v582
        %v679 = vcvt.s32.f32 %v583
        %v680 = vcvt.s32.f32 %v584
        %v681 = vcvt.s32.f32 %v585
        %v682 = vcvt.s32.f32 %v586
        %v683 = vcvt.s32.f32 %v587
        %v684 = vcvt.s32.f32 %v588
        %v685 = vcvt.s32.f32 %v589
        %v686 = vcvt.s32.f32 %v590
        %v687 = vcvt.s32.f32 %v591
        %v688 = vcvt.s32.f32 %v592
        %v689 = vcvt.s32.f32 %v593
        %v690 = vcvt.s32.f32 %v594
        %v691 = vcvt.s32.f32 %v595
        %v692 = vcvt.s32.f32 %v596
        %v693 = vcvt.s32.f32 %v597
        %v694 = vcvt.s32.f32 %v598
        %v695 = vcvt.s32.f32 %v599
        %v696 = vcvt.s32.f32 %v600
        %v697 = vcvt.s32.f32 %v601
        %v698 = vcvt.s32.f32 %v602
        %v699 = vcvt.s32.f32 %v603
        %v700 = vcvt.s32.f32 %v604
        %v701 = vcvt.s32.f32 %v605
        %v702 = vcvt.s32.f32 %v606
        %v703 = vcvt.s32.f32 %v607
        %v704 = vcvt.s32.f32 %v608
        %v705 = vcvt.s32.f32 %v609
        %v706 = vcvt.s32.f32 %v610
        %v707 = vcvt.s32.f32 %v611
        %v708 = vadd.f32 %v612, 0.0
        %v709 = vadd.f32 %v613, 0.0
        %v710 = vadd.f32 %v614, 0.0
        %v711 = vadd.f32 %v615, 0.0
        %v712 = vadd.f32 %v616, 0.0
        %v713 = vadd.f32 %v617, 0.0
        %v714 = vadd.f32 %v618, 0.0
        %v715 = vadd.f32 %v619, 0.0
        %v716 = vadd.f32 %v620, 0.0
        %v717 = vadd.f32 %v621, 0.0
        %v718 = vadd.f32 %v622, 0.0
        %v719 = vadd.f32 %v623, 0.0
        %v720 = vadd.f32 %v624, 0.0
        %v721 = vadd.f32 %v625, 0.0
        %v722 = vadd.f32 %v626, 0.0
        %v723 = vadd.f32 %v627, 0.0
        %v724 = vadd.f32 %v628, 0.0
        %v725 = vadd.f32 %v629, 0.0
        %v726 = vadd.f32 %v630, 0.0
        %v727 = vadd.f32 %v631, 0.0
        %v728 = vadd.f32 %v632, 0.0
        %v729 = vadd.f32 %v633, 0.0
        %v730 = vadd.f32 %v634, 0.0
        %v731 = vadd.f32 %v635, 0.0
        %v732 = vadd.f32 %v636, 0.0
        %v733 = vadd.f32 %v637, 0.0
        %v734 = vadd.f32 %v638, 0.0
        %v735 = vadd.f32 %v639, 0.0
        %v736 = vadd.f32 %v640, 0.0
        %v737 = vadd.f32 %v641, 0.0
        %v738 = vadd.f32 %v642, 0.0
        %v739 = vadd.f32 %v643, 0.0
        %v740 = vadd.f32 %v644, 0.0
        %v741 = vadd.f32 %v645, 0.0
        %v742 = vadd.f32 %v646, 0.0
        %v743 = vadd.f32 %v647, 0.0
        %v744 = vadd.f32 %v648, 0.0
        %v745 = vadd.f32 %v649, 0.0
        %v746 = vadd.f32 %v650, 0.0
        %v747 = vadd.f32 %v651, 0.0
        %v748 = vadd.f32 %v652, 0.0
        %v749 = vadd.f32 %v653, 0.0
        %v750 = vadd.f32 %v654, 0.0
        %v751 = vadd.f32 %v655, 0.0
        %v752 = vadd.f32 %v656, 0.0
        %v753 = vadd.f32 %v657, 0.0
        %v754 = vadd.f32 %v658, 0.0
        %v755 = vadd.f32 %v659, 0.0
        %v756 = vadd.f32 %v660, 0.0
        %v757 = vadd.f32 %v661, 0.0
        %v758 = vadd.f32 %v662, 0.0
        %v759 = vadd.f32 %v663, 0.0
        %v760 = vadd.f32 %v664, 0.0
        %v761 = vadd.f32 %v665, 0.0
        %v762 = vadd.f32 %v666, 0.0
        %v763 = vadd.f32 %v667, 0.0
        %v764 = vadd.f32 %v668, 0.0
        %v765 = vadd.f32 %v669, 0.0
        %v766 = vadd.f32 %v670, 0.0
        %v767 = vadd.f32 %v671, 0.0
        %v768 = vadd.f32 %v672, 0.0
        %v769 = vadd.f32 %v673, 0.0
        %v770 = vadd.f32 %v674, 0.0
        %v771 = vadd.f32 %v675, 0.0
        %v772 = vadd.f32 %v676, 0.0
        %v773 = vadd.f32 %v677, 0.0
        %v774 = vadd.f32 %v678, 0.0
        %v775 = vadd.f32 %v679, 0.0
        %v776 = vadd.f32 %v680, 0.0
        %v777 = vadd.f32 %v681, 0.0
        %v778 = vadd.f32 %v682, 0.0
        %v779 = vadd.f32 %v683, 0.0
        %v780 = vadd.f32 %v684, 0.0
        %v781 = vadd.f32 %v685, 0.0
        %v782 = vadd.f32 %v686, 0.0
        %v783 = vadd.f32 %v687, 0.0
        %v784 = vadd.f32 %v688, 0.0
        %v785 = vadd.f32 %v689, 0.0
        %v786 = vadd.f32 %v690, 0.0
        %v787 = vadd.f32 %v691, 0.0
        %v788 = vadd.f32 %v692, 0.0
        %v789 = vadd.f32 %v693, 0.0
        %v790 = vadd.f32 %v694, 0.0
        %v791 = vadd.f32 %v695, 0.0
        %v792 = vadd.f32 %v696, 0.0
        %v793 = vadd.f32 %v697, 0.0
        %v794 = vadd.f32 %v698, 0.0
        %v795 = vadd.f32 %v699, 0.0
        %v796 = vadd.f32 %v700, 0.0
        %v797 = vadd.f32 %v701, 0.0
        %v798 = vadd.f32 %v702, 0.0
        %v799 = vadd.f32 %v703, 0.0
        %v800 = vadd.f32 %v704, 0.0
        %v801 = vadd.f32 %v705, 0.0
        %v802 = vadd.f32 %v706, 0.0
        %v803 = vadd.f32 %v707, 0.0
        %v804 = vlaneseq
        %v805 = vshrl.u32 %v804, 7
        %v806 = vsub.s32 1, %v805
        %v807 = vrot.slane %v318, %v806
        %vm808 = vcmp.eq.s32.totalorder %v320, %v807
        %vm809 = vcmp.eq.s32.totalorder %v321, %v807
        %vm810 = vcmp.eq.s32.totalorder %v322, %v807
        %vm811 = vcmp.eq.s32.totalorder %v323, %v807
        %vm812 = vcmp.eq.s32.totalorder %v324, %v807
        %vm813 = vcmp.eq.s32.totalorder %v325, %v807
        %vm814 = vcmp.eq.s32.totalorder %v326, %v807
        %vm815 = vcmp.eq.s32.totalorder %v327, %v807
        %vm816 = vcmp.eq.s32.totalorder %v328, %v807
        %vm817 = vcmp.eq.s32.totalorder %v329, %v807
        %vm818 = vcmp.eq.s32.totalorder %v330, %v807
        %vm819 = vcmp.eq.s32.totalorder %v331, %v807
        %vm820 = vcmp.eq.s32.totalorder %v332, %v807
        %vm821 = vcmp.eq.s32.totalorder %v333, %v807
        %vm822 = vcmp.eq.s32.totalorder %v334, %v807
        %vm823 = vcmp.eq.s32.totalorder %v335, %v807
        %vm824 = vcmp.eq.s32.totalorder %v336, %v807
        %vm825 = vcmp.eq.s32.totalorder %v337, %v807
        %vm826 = vcmp.eq.s32.totalorder %v338, %v807
        %vm827 = vcmp.eq.s32.totalorder %v339, %v807
        %vm828 = vcmp.eq.s32.totalorder %v340, %v807
        %vm829 = vcmp.eq.s32.totalorder %v341, %v807
        %vm830 = vcmp.eq.s32.totalorder %v342, %v807
        %vm831 = vcmp.eq.s32.totalorder %v343, %v807
        %vm832 = vcmp.eq.s32.totalorder %v344, %v807
        %vm833 = vcmp.eq.s32.totalorder %v345, %v807
        %vm834 = vcmp.eq.s32.totalorder %v346, %v807
        %vm835 = vcmp.eq.s32.totalorder %v347, %v807
        %vm836 = vcmp.eq.s32.totalorder %v348, %v807
        %vm837 = vcmp.eq.s32.totalorder %v349, %v807
        %vm838 = vcmp.eq.s32.totalorder %v350, %v807
        %vm839 = vcmp.eq.s32.totalorder %v351, %v807
        %vm840 = vcmp.eq.s32.totalorder %v352, %v807
        %vm841 = vcmp.eq.s32.totalorder %v353, %v807
        %vm842 = vcmp.eq.s32.totalorder %v354, %v807
        %vm843 = vcmp.eq.s32.totalorder %v355, %v807
        %vm844 = vcmp.eq.s32.totalorder %v356, %v807
        %vm845 = vcmp.eq.s32.totalorder %v357, %v807
        %vm846 = vcmp.eq.s32.totalorder %v358, %v807
        %vm847 = vcmp.eq.s32.totalorder %v359, %v807
        %vm848 = vcmp.eq.s32.totalorder %v360, %v807
        %vm849 = vcmp.eq.s32.totalorder %v361, %v807
        %vm850 = vcmp.eq.s32.totalorder %v362, %v807
        %vm851 = vcmp.eq.s32.totalorder %v363, %v807
        %vm852 = vcmp.eq.s32.totalorder %v364, %v807
        %vm853 = vcmp.eq.s32.totalorder %v365, %v807
        %vm854 = vcmp.eq.s32.totalorder %v366, %v807
        %vm855 = vcmp.eq.s32.totalorder %v367, %v807
        %vm856 = vcmp.eq.s32.totalorder %v368, %v807
        %vm857 = vcmp.eq.s32.totalorder %v369, %v807
        %vm858 = vcmp.eq.s32.totalorder %v370, %v807
        %vm859 = vcmp.eq.s32.totalorder %v371, %v807
        %vm860 = vcmp.eq.s32.totalorder %v372, %v807
        %vm861 = vcmp.eq.s32.totalorder %v373, %v807
        %vm862 = vcmp.eq.s32.totalorder %v374, %v807
        %vm863 = vcmp.eq.s32.totalorder %v375, %v807
        %vm864 = vcmp.eq.s32.totalorder %v376, %v807
        %vm865 = vcmp.eq.s32.totalorder %v377, %v807
        %vm866 = vcmp.eq.s32.totalorder %v378, %v807
        %vm867 = vcmp.eq.s32.totalorder %v379, %v807
        %vm868 = vcmp.eq.s32.totalorder %v380, %v807
        %vm869 = vcmp.eq.s32.totalorder %v381, %v807
        %vm870 = vcmp.eq.s32.totalorder %v382, %v807
        %vm871 = vcmp.eq.s32.totalorder %v383, %v807
        %vm872 = vcmp.eq.s32.totalorder %v384, %v807
        %vm873 = vcmp.eq.s32.totalorder %v385, %v807
        %vm874 = vcmp.eq.s32.totalorder %v386, %v807
        %vm875 = vcmp.eq.s32.totalorder %v387, %v807
        %vm876 = vcmp.eq.s32.totalorder %v388, %v807
        %vm877 = vcmp.eq.s32.totalorder %v389, %v807
        %vm878 = vcmp.eq.s32.totalorder %v390, %v807
        %vm879 = vcmp.eq.s32.totalorder %v391, %v807
        %vm880 = vcmp.eq.s32.totalorder %v392, %v807
        %vm881 = vcmp.eq.s32.totalorder %v393, %v807
        %vm882 = vcmp.eq.s32.totalorder %v394, %v807
        %vm883 = vcmp.eq.s32.totalorder %v395, %v807
        %vm884 = vcmp.eq.s32.totalorder %v396, %v807
        %vm885 = vcmp.eq.s32.totalorder %v397, %v807
        %vm886 = vcmp.eq.s32.totalorder %v398, %v807
        %vm887 = vcmp.eq.s32.totalorder %v399, %v807
        %vm888 = vcmp.eq.s32.totalorder %v400, %v807
        %vm889 = vcmp.eq.s32.totalorder %v401, %v807
        %vm890 = vcmp.eq.s32.totalorder %v402, %v807
        %vm891 = vcmp.eq.s32.totalorder %v403, %v807
        %vm892 = vcmp.eq.s32.totalorder %v404, %v807
        %vm893 = vcmp.eq.s32.totalorder %v405, %v807
        %vm894 = vcmp.eq.s32.totalorder %v406, %v807
        %vm895 = vcmp.eq.s32.totalorder %v407, %v807
        %vm896 = vcmp.eq.s32.totalorder %v408, %v807
        %vm897 = vcmp.eq.s32.totalorder %v409, %v807
        %vm898 = vcmp.eq.s32.totalorder %v410, %v807
        %vm899 = vcmp.eq.s32.totalorder %v411, %v807
        %vm900 = vcmp.eq.s32.totalorder %v412, %v807
        %vm901 = vcmp.eq.s32.totalorder %v413, %v807
        %vm902 = vcmp.eq.s32.totalorder %v414, %v807
        %vm903 = vcmp.eq.s32.totalorder %v415, %v807
        %v904 = vsel %vm808, 1, 0
        %v905 = vsel %vm809, 1, 0
        %v906 = vsel %vm810, 1, 0
        %v907 = vsel %vm811, 1, 0
        %v908 = vsel %vm812, 1, 0
        %v909 = vsel %vm813, 1, 0
        %v910 = vsel %vm814, 1, 0
        %v911 = vsel %vm815, 1, 0
        %v912 = vsel %vm816, 1, 0
        %v913 = vsel %vm817, 1, 0
        %v914 = vsel %vm818, 1, 0
        %v915 = vsel %vm819, 1, 0
        %v916 = vsel %vm820, 1, 0
        %v917 = vsel %vm821, 1, 0
        %v918 = vsel %vm822, 1, 0
        %v919 = vsel %vm823, 1, 0
        %v920 = vsel %vm824, 1, 0
        %v921 = vsel %vm825, 1, 0
        %v922 = vsel %vm826, 1, 0
        %v923 = vsel %vm827, 1, 0
        %v924 = vsel %vm828, 1, 0
        %v925 = vsel %vm829, 1, 0
        %v926 = vsel %vm830, 1, 0
        %v927 = vsel %vm831, 1, 0
        %v928 = vsel %vm832, 1, 0
        %v929 = vsel %vm833, 1, 0
        %v930 = vsel %vm834, 1, 0
        %v931 = vsel %vm835, 1, 0
        %v932 = vsel %vm836, 1, 0
        %v933 = vsel %vm837, 1, 0
        %v934 = vsel %vm838, 1, 0
        %v935 = vsel %vm839, 1, 0
        %v936 = vsel %vm840, 1, 0
        %v937 = vsel %vm841, 1, 0
        %v938 = vsel %vm842, 1, 0
        %v939 = vsel %vm843, 1, 0
        %v940 = vsel %vm844, 1, 0
        %v941 = vsel %vm845, 1, 0
        %v942 = vsel %vm846, 1, 0
        %v943 = vsel %vm847, 1, 0
        %v944 = vsel %vm848, 1, 0
        %v945 = vsel %vm849, 1, 0
        %v946 = vsel %vm850, 1, 0
        %v947 = vsel %vm851, 1, 0
        %v948 = vsel %vm852, 1, 0
        %v949 = vsel %vm853, 1, 0
        %v950 = vsel %vm854, 1, 0
        %v951 = vsel %vm855, 1, 0
        %v952 = vsel %vm856, 1, 0
        %v953 = vsel %vm857, 1, 0
        %v954 = vsel %vm858, 1, 0
        %v955 = vsel %vm859, 1, 0
        %v956 = vsel %vm860, 1, 0
        %v957 = vsel %vm861, 1, 0
        %v958 = vsel %vm862, 1, 0
        %v959 = vsel %vm863, 1, 0
        %v960 = vsel %vm864, 1, 0
        %v961 = vsel %vm865, 1, 0
        %v962 = vsel %vm866, 1, 0
        %v963 = vsel %vm867, 1, 0
        %v964 = vsel %vm868, 1, 0
        %v965 = vsel %vm869, 1, 0
        %v966 = vsel %vm870, 1, 0
        %v967 = vsel %vm871, 1, 0
        %v968 = vsel %vm872, 1, 0
        %v969 = vsel %vm873, 1, 0
        %v970 = vsel %vm874, 1, 0
        %v971 = vsel %vm875, 1, 0
        %v972 = vsel %vm876, 1, 0
        %v973 = vsel %vm877, 1, 0
        %v974 = vsel %vm878, 1, 0
        %v975 = vsel %vm879, 1, 0
        %v976 = vsel %vm880, 1, 0
        %v977 = vsel %vm881, 1, 0
        %v978 = vsel %vm882, 1, 0
        %v979 = vsel %vm883, 1, 0
        %v980 = vsel %vm884, 1, 0
        %v981 = vsel %vm885, 1, 0
        %v982 = vsel %vm886, 1, 0
        %v983 = vsel %vm887, 1, 0
        %v984 = vsel %vm888, 1, 0
        %v985 = vsel %vm889, 1, 0
        %v986 = vsel %vm890, 1, 0
        %v987 = vsel %vm891, 1, 0
        %v988 = vsel %vm892, 1, 0
        %v989 = vsel %vm893, 1, 0
        %v990 = vsel %vm894, 1, 0
        %v991 = vsel %vm895, 1, 0
        %v992 = vsel %vm896, 1, 0
        %v993 = vsel %vm897, 1, 0
        %v994 = vsel %vm898, 1, 0
        %v995 = vsel %vm899, 1, 0
        %v996 = vsel %vm900, 1, 0
        %v997 = vsel %vm901, 1, 0
        %v998 = vsel %vm902, 1, 0
        %v999 = vsel %vm903, 1, 0
        %v1000 = vcvt.s32.f32 %v904
        %v1001 = vcvt.s32.f32 %v905
        %v1002 = vcvt.s32.f32 %v906
        %v1003 = vcvt.s32.f32 %v907
        %v1004 = vcvt.s32.f32 %v908
        %v1005 = vcvt.s32.f32 %v909
        %v1006 = vcvt.s32.f32 %v910
        %v1007 = vcvt.s32.f32 %v911
        %v1008 = vcvt.s32.f32 %v912
        %v1009 = vcvt.s32.f32 %v913
        %v1010 = vcvt.s32.f32 %v914
        %v1011 = vcvt.s32.f32 %v915
        %v1012 = vcvt.s32.f32 %v916
        %v1013 = vcvt.s32.f32 %v917
        %v1014 = vcvt.s32.f32 %v918
        %v1015 = vcvt.s32.f32 %v919
        %v1016 = vcvt.s32.f32 %v920
        %v1017 = vcvt.s32.f32 %v921
        %v1018 = vcvt.s32.f32 %v922
        %v1019 = vcvt.s32.f32 %v923
        %v1020 = vcvt.s32.f32 %v924
        %v1021 = vcvt.s32.f32 %v925
        %v1022 = vcvt.s32.f32 %v926
        %v1023 = vcvt.s32.f32 %v927
        %v1024 = vcvt.s32.f32 %v928
        %v1025 = vcvt.s32.f32 %v929
        %v1026 = vcvt.s32.f32 %v930
        %v1027 = vcvt.s32.f32 %v931
        %v1028 = vcvt.s32.f32 %v932
        %v1029 = vcvt.s32.f32 %v933
        %v1030 = vcvt.s32.f32 %v934
        %v1031 = vcvt.s32.f32 %v935
        %v1032 = vcvt.s32.f32 %v936
        %v1033 = vcvt.s32.f32 %v937
        %v1034 = vcvt.s32.f32 %v938
        %v1035 = vcvt.s32.f32 %v939
        %v1036 = vcvt.s32.f32 %v940
        %v1037 = vcvt.s32.f32 %v941
        %v1038 = vcvt.s32.f32 %v942
        %v1039 = vcvt.s32.f32 %v943
        %v1040 = vcvt.s32.f32 %v944
        %v1041 = vcvt.s32.f32 %v945
        %v1042 = vcvt.s32.f32 %v946
        %v1043 = vcvt.s32.f32 %v947
        %v1044 = vcvt.s32.f32 %v948
        %v1045 = vcvt.s32.f32 %v949
        %v1046 = vcvt.s32.f32 %v950
        %v1047 = vcvt.s32.f32 %v951
        %v1048 = vcvt.s32.f32 %v952
        %v1049 = vcvt.s32.f32 %v953
        %v1050 = vcvt.s32.f32 %v954
        %v1051 = vcvt.s32.f32 %v955
        %v1052 = vcvt.s32.f32 %v956
        %v1053 = vcvt.s32.f32 %v957
        %v1054 = vcvt.s32.f32 %v958
        %v1055 = vcvt.s32.f32 %v959
        %v1056 = vcvt.s32.f32 %v960
        %v1057 = vcvt.s32.f32 %v961
        %v1058 = vcvt.s32.f32 %v962
        %v1059 = vcvt.s32.f32 %v963
        %v1060 = vcvt.s32.f32 %v964
        %v1061 = vcvt.s32.f32 %v965
        %v1062 = vcvt.s32.f32 %v966
        %v1063 = vcvt.s32.f32 %v967
        %v1064 = vcvt.s32.f32 %v968
        %v1065 = vcvt.s32.f32 %v969
        %v1066 = vcvt.s32.f32 %v970
        %v1067 = vcvt.s32.f32 %v971
        %v1068 = vcvt.s32.f32 %v972
        %v1069 = vcvt.s32.f32 %v973
        %v1070 = vcvt.s32.f32 %v974
        %v1071 = vcvt.s32.f32 %v975
        %v1072 = vcvt.s32.f32 %v976
        %v1073 = vcvt.s32.f32 %v977
        %v1074 = vcvt.s32.f32 %v978
        %v1075 = vcvt.s32.f32 %v979
        %v1076 = vcvt.s32.f32 %v980
        %v1077 = vcvt.s32.f32 %v981
        %v1078 = vcvt.s32.f32 %v982
        %v1079 = vcvt.s32.f32 %v983
        %v1080 = vcvt.s32.f32 %v984
        %v1081 = vcvt.s32.f32 %v985
        %v1082 = vcvt.s32.f32 %v986
        %v1083 = vcvt.s32.f32 %v987
        %v1084 = vcvt.s32.f32 %v988
        %v1085 = vcvt.s32.f32 %v989
        %v1086 = vcvt.s32.f32 %v990
        %v1087 = vcvt.s32.f32 %v991
        %v1088 = vcvt.s32.f32 %v992
        %v1089 = vcvt.s32.f32 %v993
        %v1090 = vcvt.s32.f32 %v994
        %v1091 = vcvt.s32.f32 %v995
        %v1092 = vcvt.s32.f32 %v996
        %v1093 = vcvt.s32.f32 %v997
        %v1094 = vcvt.s32.f32 %v998
        %v1095 = vcvt.s32.f32 %v999
        %v1096 = vadd.f32 %v708, %v1000
        %v1097 = vadd.f32 %v709, %v1001
        %v1098 = vadd.f32 %v710, %v1002
        %v1099 = vadd.f32 %v711, %v1003
        %v1100 = vadd.f32 %v712, %v1004
        %v1101 = vadd.f32 %v713, %v1005
        %v1102 = vadd.f32 %v714, %v1006
        %v1103 = vadd.f32 %v715, %v1007
        %v1104 = vadd.f32 %v716, %v1008
        %v1105 = vadd.f32 %v717, %v1009
        %v1106 = vadd.f32 %v718, %v1010
        %v1107 = vadd.f32 %v719, %v1011
        %v1108 = vadd.f32 %v720, %v1012
        %v1109 = vadd.f32 %v721, %v1013
        %v1110 = vadd.f32 %v722, %v1014
        %v1111 = vadd.f32 %v723, %v1015
        %v1112 = vadd.f32 %v724, %v1016
        %v1113 = vadd.f32 %v725, %v1017
        %v1114 = vadd.f32 %v726, %v1018
        %v1115 = vadd.f32 %v727, %v1019
        %v1116 = vadd.f32 %v728, %v1020
        %v1117 = vadd.f32 %v729, %v1021
        %v1118 = vadd.f32 %v730, %v1022
        %v1119 = vadd.f32 %v731, %v1023
        %v1120 = vadd.f32 %v732, %v1024
        %v1121 = vadd.f32 %v733, %v1025
        %v1122 = vadd.f32 %v734, %v1026
        %v1123 = vadd.f32 %v735, %v1027
        %v1124 = vadd.f32 %v736, %v1028
        %v1125 = vadd.f32 %v737, %v1029
        %v1126 = vadd.f32 %v738, %v1030
        %v1127 = vadd.f32 %v739, %v1031
        %v1128 = vadd.f32 %v740, %v1032
        %v1129 = vadd.f32 %v741, %v1033
        %v1130 = vadd.f32 %v742, %v1034
        %v1131 = vadd.f32 %v743, %v1035
        %v1132 = vadd.f32 %v744, %v1036
        %v1133 = vadd.f32 %v745, %v1037
        %v1134 = vadd.f32 %v746, %v1038
        %v1135 = vadd.f32 %v747, %v1039
        %v1136 = vadd.f32 %v748, %v1040
        %v1137 = vadd.f32 %v749, %v1041
        %v1138 = vadd.f32 %v750, %v1042
        %v1139 = vadd.f32 %v751, %v1043
        %v1140 = vadd.f32 %v752, %v1044
        %v1141 = vadd.f32 %v753, %v1045
        %v1142 = vadd.f32 %v754, %v1046
        %v1143 = vadd.f32 %v755, %v1047
        %v1144 = vadd.f32 %v756, %v1048
        %v1145 = vadd.f32 %v757, %v1049
        %v1146 = vadd.f32 %v758, %v1050
        %v1147 = vadd.f32 %v759, %v1051
        %v1148 = vadd.f32 %v760, %v1052
        %v1149 = vadd.f32 %v761, %v1053
        %v1150 = vadd.f32 %v762, %v1054
        %v1151 = vadd.f32 %v763, %v1055
        %v1152 = vadd.f32 %v764, %v1056
        %v1153 = vadd.f32 %v765, %v1057
        %v1154 = vadd.f32 %v766, %v1058
        %v1155 = vadd.f32 %v767, %v1059
        %v1156 = vadd.f32 %v768, %v1060
        %v1157 = vadd.f32 %v769, %v1061
        %v1158 = vadd.f32 %v770, %v1062
        %v1159 = vadd.f32 %v771, %v1063
        %v1160 = vadd.f32 %v772, %v1064
        %v1161 = vadd.f32 %v773, %v1065
        %v1162 = vadd.f32 %v774, %v1066
        %v1163 = vadd.f32 %v775, %v1067
        %v1164 = vadd.f32 %v776, %v1068
        %v1165 = vadd.f32 %v777, %v1069
        %v1166 = vadd.f32 %v778, %v1070
        %v1167 = vadd.f32 %v779, %v1071
        %v1168 = vadd.f32 %v780, %v1072
        %v1169 = vadd.f32 %v781, %v1073
        %v1170 = vadd.f32 %v782, %v1074
        %v1171 = vadd.f32 %v783, %v1075
        %v1172 = vadd.f32 %v784, %v1076
        %v1173 = vadd.f32 %v785, %v1077
        %v1174 = vadd.f32 %v786, %v1078
        %v1175 = vadd.f32 %v787, %v1079
        %v1176 = vadd.f32 %v788, %v1080
        %v1177 = vadd.f32 %v789, %v1081
        %v1178 = vadd.f32 %v790, %v1082
        %v1179 = vadd.f32 %v791, %v1083
        %v1180 = vadd.f32 %v792, %v1084
        %v1181 = vadd.f32 %v793, %v1085
        %v1182 = vadd.f32 %v794, %v1086
        %v1183 = vadd.f32 %v795, %v1087
        %v1184 = vadd.f32 %v796, %v1088
        %v1185 = vadd.f32 %v797, %v1089
        %v1186 = vadd.f32 %v798, %v1090
        %v1187 = vadd.f32 %v799, %v1091
        %v1188 = vadd.f32 %v800, %v1092
        %v1189 = vadd.f32 %v801, %v1093
        %v1190 = vadd.f32 %v802, %v1094
        %v1191 = vadd.f32 %v803, %v1095
        %v1192 = vlaneseq
        %v1193 = vshrl.u32 %v1192, 7
        %v1194 = vsub.s32 2, %v1193
        %v1195 = vrot.slane %v318, %v1194
        %vm1196 = vcmp.eq.s32.totalorder %v320, %v1195
        %vm1197 = vcmp.eq.s32.totalorder %v321, %v1195
        %vm1198 = vcmp.eq.s32.totalorder %v322, %v1195
        %vm1199 = vcmp.eq.s32.totalorder %v323, %v1195
        %vm1200 = vcmp.eq.s32.totalorder %v324, %v1195
        %vm1201 = vcmp.eq.s32.totalorder %v325, %v1195
        %vm1202 = vcmp.eq.s32.totalorder %v326, %v1195
        %vm1203 = vcmp.eq.s32.totalorder %v327, %v1195
        %vm1204 = vcmp.eq.s32.totalorder %v328, %v1195
        %vm1205 = vcmp.eq.s32.totalorder %v329, %v1195
        %vm1206 = vcmp.eq.s32.totalorder %v330, %v1195
        %vm1207 = vcmp.eq.s32.totalorder %v331, %v1195
        %vm1208 = vcmp.eq.s32.totalorder %v332, %v1195
        %vm1209 = vcmp.eq.s32.totalorder %v333, %v1195
        %vm1210 = vcmp.eq.s32.totalorder %v334, %v1195
        %vm1211 = vcmp.eq.s32.totalorder %v335, %v1195
        %vm1212 = vcmp.eq.s32.totalorder %v336, %v1195
        %vm1213 = vcmp.eq.s32.totalorder %v337, %v1195
        %vm1214 = vcmp.eq.s32.totalorder %v338, %v1195
        %vm1215 = vcmp.eq.s32.totalorder %v339, %v1195
        %vm1216 = vcmp.eq.s32.totalorder %v340, %v1195
        %vm1217 = vcmp.eq.s32.totalorder %v341, %v1195
        %vm1218 = vcmp.eq.s32.totalorder %v342, %v1195
        %vm1219 = vcmp.eq.s32.totalorder %v343, %v1195
        %vm1220 = vcmp.eq.s32.totalorder %v344, %v1195
        %vm1221 = vcmp.eq.s32.totalorder %v345, %v1195
        %vm1222 = vcmp.eq.s32.totalorder %v346, %v1195
        %vm1223 = vcmp.eq.s32.totalorder %v347, %v1195
        %vm1224 = vcmp.eq.s32.totalorder %v348, %v1195
        %vm1225 = vcmp.eq.s32.totalorder %v349, %v1195
        %vm1226 = vcmp.eq.s32.totalorder %v350, %v1195
        %vm1227 = vcmp.eq.s32.totalorder %v351, %v1195
        %vm1228 = vcmp.eq.s32.totalorder %v352, %v1195
        %vm1229 = vcmp.eq.s32.totalorder %v353, %v1195
        %vm1230 = vcmp.eq.s32.totalorder %v354, %v1195
        %vm1231 = vcmp.eq.s32.totalorder %v355, %v1195
        %vm1232 = vcmp.eq.s32.totalorder %v356, %v1195
        %vm1233 = vcmp.eq.s32.totalorder %v357, %v1195
        %vm1234 = vcmp.eq.s32.totalorder %v358, %v1195
        %vm1235 = vcmp.eq.s32.totalorder %v359, %v1195
        %vm1236 = vcmp.eq.s32.totalorder %v360, %v1195
        %vm1237 = vcmp.eq.s32.totalorder %v361, %v1195
        %vm1238 = vcmp.eq.s32.totalorder %v362, %v1195
        %vm1239 = vcmp.eq.s32.totalorder %v363, %v1195
        %vm1240 = vcmp.eq.s32.totalorder %v364, %v1195
        %vm1241 = vcmp.eq.s32.totalorder %v365, %v1195
        %vm1242 = vcmp.eq.s32.totalorder %v366, %v1195
        %vm1243 = vcmp.eq.s32.totalorder %v367, %v1195
        %vm1244 = vcmp.eq.s32.totalorder %v368, %v1195
        %vm1245 = vcmp.eq.s32.totalorder %v369, %v1195
        %vm1246 = vcmp.eq.s32.totalorder %v370, %v1195
        %vm1247 = vcmp.eq.s32.totalorder %v371, %v1195
        %vm1248 = vcmp.eq.s32.totalorder %v372, %v1195
        %vm1249 = vcmp.eq.s32.totalorder %v373, %v1195
        %vm1250 = vcmp.eq.s32.totalorder %v374, %v1195
        %vm1251 = vcmp.eq.s32.totalorder %v375, %v1195
        %vm1252 = vcmp.eq.s32.totalorder %v376, %v1195
        %vm1253 = vcmp.eq.s32.totalorder %v377, %v1195
        %vm1254 = vcmp.eq.s32.totalorder %v378, %v1195
        %vm1255 = vcmp.eq.s32.totalorder %v379, %v1195
        %vm1256 = vcmp.eq.s32.totalorder %v380, %v1195
        %vm1257 = vcmp.eq.s32.totalorder %v381, %v1195
        %vm1258 = vcmp.eq.s32.totalorder %v382, %v1195
        %vm1259 = vcmp.eq.s32.totalorder %v383, %v1195
        %vm1260 = vcmp.eq.s32.totalorder %v384, %v1195
        %vm1261 = vcmp.eq.s32.totalorder %v385, %v1195
        %vm1262 = vcmp.eq.s32.totalorder %v386, %v1195
        %vm1263 = vcmp.eq.s32.totalorder %v387, %v1195
        %vm1264 = vcmp.eq.s32.totalorder %v388, %v1195
        %vm1265 = vcmp.eq.s32.totalorder %v389, %v1195
        %vm1266 = vcmp.eq.s32.totalorder %v390, %v1195
        %vm1267 = vcmp.eq.s32.totalorder %v391, %v1195
        %vm1268 = vcmp.eq.s32.totalorder %v392, %v1195
        %vm1269 = vcmp.eq.s32.totalorder %v393, %v1195
        %vm1270 = vcmp.eq.s32.totalorder %v394, %v1195
        %vm1271 = vcmp.eq.s32.totalorder %v395, %v1195
        %vm1272 = vcmp.eq.s32.totalorder %v396, %v1195
        %vm1273 = vcmp.eq.s32.totalorder %v397, %v1195
        %vm1274 = vcmp.eq.s32.totalorder %v398, %v1195
        %vm1275 = vcmp.eq.s32.totalorder %v399, %v1195
        %vm1276 = vcmp.eq.s32.totalorder %v400, %v1195
        %vm1277 = vcmp.eq.s32.totalorder %v401, %v1195
        %vm1278 = vcmp.eq.s32.totalorder %v402, %v1195
        %vm1279 = vcmp.eq.s32.totalorder %v403, %v1195
        %vm1280 = vcmp.eq.s32.totalorder %v404, %v1195
        %vm1281 = vcmp.eq.s32.totalorder %v405, %v1195
        %vm1282 = vcmp.eq.s32.totalorder %v406, %v1195
        %vm1283 = vcmp.eq.s32.totalorder %v407, %v1195
        %vm1284 = vcmp.eq.s32.totalorder %v408, %v1195
        %vm1285 = vcmp.eq.s32.totalorder %v409, %v1195
        %vm1286 = vcmp.eq.s32.totalorder %v410, %v1195
        %vm1287 = vcmp.eq.s32.totalorder %v411, %v1195
        %vm1288 = vcmp.eq.s32.totalorder %v412, %v1195
        %vm1289 = vcmp.eq.s32.totalorder %v413, %v1195
        %vm1290 = vcmp.eq.s32.totalorder %v414, %v1195
        %vm1291 = vcmp.eq.s32.totalorder %v415, %v1195
        %v1292 = vsel %vm1196, 1, 0
        %v1293 = vsel %vm1197, 1, 0
        %v1294 = vsel %vm1198, 1, 0
        %v1295 = vsel %vm1199, 1, 0
        %v1296 = vsel %vm1200, 1, 0
        %v1297 = vsel %vm1201, 1, 0
        %v1298 = vsel %vm1202, 1, 0
        %v1299 = vsel %vm1203, 1, 0
        %v1300 = vsel %vm1204, 1, 0
        %v1301 = vsel %vm1205, 1, 0
        %v1302 = vsel %vm1206, 1, 0
        %v1303 = vsel %vm1207, 1, 0
        %v1304 = vsel %vm1208, 1, 0
        %v1305 = vsel %vm1209, 1, 0
        %v1306 = vsel %vm1210, 1, 0
        %v1307 = vsel %vm1211, 1, 0
        %v1308 = vsel %vm1212, 1, 0
        %v1309 = vsel %vm1213, 1, 0
        %v1310 = vsel %vm1214, 1, 0
        %v1311 = vsel %vm1215, 1, 0
        %v1312 = vsel %vm1216, 1, 0
        %v1313 = vsel %vm1217, 1, 0
        %v1314 = vsel %vm1218, 1, 0
        %v1315 = vsel %vm1219, 1, 0
        %v1316 = vsel %vm1220, 1, 0
        %v1317 = vsel %vm1221, 1, 0
        %v1318 = vsel %vm1222, 1, 0
        %v1319 = vsel %vm1223, 1, 0
        %v1320 = vsel %vm1224, 1, 0
        %v1321 = vsel %vm1225, 1, 0
        %v1322 = vsel %vm1226, 1, 0
        %v1323 = vsel %vm1227, 1, 0
        %v1324 = vsel %vm1228, 1, 0
        %v1325 = vsel %vm1229, 1, 0
        %v1326 = vsel %vm1230, 1, 0
        %v1327 = vsel %vm1231, 1, 0
        %v1328 = vsel %vm1232, 1, 0
        %v1329 = vsel %vm1233, 1, 0
        %v1330 = vsel %vm1234, 1, 0
        %v1331 = vsel %vm1235, 1, 0
        %v1332 = vsel %vm1236, 1, 0
        %v1333 = vsel %vm1237, 1, 0
        %v1334 = vsel %vm1238, 1, 0
        %v1335 = vsel %vm1239, 1, 0
        %v1336 = vsel %vm1240, 1, 0
        %v1337 = vsel %vm1241, 1, 0
        %v1338 = vsel %vm1242, 1, 0
        %v1339 = vsel %vm1243, 1, 0
        %v1340 = vsel %vm1244, 1, 0
        %v1341 = vsel %vm1245, 1, 0
        %v1342 = vsel %vm1246, 1, 0
        %v1343 = vsel %vm1247, 1, 0
        %v1344 = vsel %vm1248, 1, 0
        %v1345 = vsel %vm1249, 1, 0
        %v1346 = vsel %vm1250, 1, 0
        %v1347 = vsel %vm1251, 1, 0
        %v1348 = vsel %vm1252, 1, 0
        %v1349 = vsel %vm1253, 1, 0
        %v1350 = vsel %vm1254, 1, 0
        %v1351 = vsel %vm1255, 1, 0
        %v1352 = vsel %vm1256, 1, 0
        %v1353 = vsel %vm1257, 1, 0
        %v1354 = vsel %vm1258, 1, 0
        %v1355 = vsel %vm1259, 1, 0
        %v1356 = vsel %vm1260, 1, 0
        %v1357 = vsel %vm1261, 1, 0
        %v1358 = vsel %vm1262, 1, 0
        %v1359 = vsel %vm1263, 1, 0
        %v1360 = vsel %vm1264, 1, 0
        %v1361 = vsel %vm1265, 1, 0
        %v1362 = vsel %vm1266, 1, 0
        %v1363 = vsel %vm1267, 1, 0
        %v1364 = vsel %vm1268, 1, 0
        %v1365 = vsel %vm1269, 1, 0
        %v1366 = vsel %vm1270, 1, 0
        %v1367 = vsel %vm1271, 1, 0
        %v1368 = vsel %vm1272, 1, 0
        %v1369 = vsel %vm1273, 1, 0
        %v1370 = vsel %vm1274, 1, 0
        %v1371 = vsel %vm1275, 1, 0
        %v1372 = vsel %vm1276, 1, 0
        %v1373 = vsel %vm1277, 1, 0
        %v1374 = vsel %vm1278, 1, 0
        %v1375 = vsel %vm1279, 1, 0
        %v1376 = vsel %vm1280, 1, 0
        %v1377 = vsel %vm1281, 1, 0
        %v1378 = vsel %vm1282, 1, 0
        %v1379 = vsel %vm1283, 1, 0
        %v1380 = vsel %vm1284, 1, 0
        %v1381 = vsel %vm1285, 1, 0
        %v1382 = vsel %vm1286, 1, 0
        %v1383 = vsel %vm1287, 1, 0
        %v1384 = vsel %vm1288, 1, 0
        %v1385 = vsel %vm1289, 1, 0
        %v1386 = vsel %vm1290, 1, 0
        %v1387 = vsel %vm1291, 1, 0
        %v1388 = vcvt.s32.f32 %v1292
        %v1389 = vcvt.s32.f32 %v1293
        %v1390 = vcvt.s32.f32 %v1294
        %v1391 = vcvt.s32.f32 %v1295
        %v1392 = vcvt.s32.f32 %v1296
        %v1393 = vcvt.s32.f32 %v1297
        %v1394 = vcvt.s32.f32 %v1298
        %v1395 = vcvt.s32.f32 %v1299
        %v1396 = vcvt.s32.f32 %v1300
        %v1397 = vcvt.s32.f32 %v1301
        %v1398 = vcvt.s32.f32 %v1302
        %v1399 = vcvt.s32.f32 %v1303
        %v1400 = vcvt.s32.f32 %v1304
        %v1401 = vcvt.s32.f32 %v1305
        %v1402 = vcvt.s32.f32 %v1306
        %v1403 = vcvt.s32.f32 %v1307
        %v1404 = vcvt.s32.f32 %v1308
        %v1405 = vcvt.s32.f32 %v1309
        %v1406 = vcvt.s32.f32 %v1310
        %v1407 = vcvt.s32.f32 %v1311
        %v1408 = vcvt.s32.f32 %v1312
        %v1409 = vcvt.s32.f32 %v1313
        %v1410 = vcvt.s32.f32 %v1314
        %v1411 = vcvt.s32.f32 %v1315
        %v1412 = vcvt.s32.f32 %v1316
        %v1413 = vcvt.s32.f32 %v1317
        %v1414 = vcvt.s32.f32 %v1318
        %v1415 = vcvt.s32.f32 %v1319
        %v1416 = vcvt.s32.f32 %v1320
        %v1417 = vcvt.s32.f32 %v1321
        %v1418 = vcvt.s32.f32 %v1322
        %v1419 = vcvt.s32.f32 %v1323
        %v1420 = vcvt.s32.f32 %v1324
        %v1421 = vcvt.s32.f32 %v1325
        %v1422 = vcvt.s32.f32 %v1326
        %v1423 = vcvt.s32.f32 %v1327
        %v1424 = vcvt.s32.f32 %v1328
        %v1425 = vcvt.s32.f32 %v1329
        %v1426 = vcvt.s32.f32 %v1330
        %v1427 = vcvt.s32.f32 %v1331
        %v1428 = vcvt.s32.f32 %v1332
        %v1429 = vcvt.s32.f32 %v1333
        %v1430 = vcvt.s32.f32 %v1334
        %v1431 = vcvt.s32.f32 %v1335
        %v1432 = vcvt.s32.f32 %v1336
        %v1433 = vcvt.s32.f32 %v1337
        %v1434 = vcvt.s32.f32 %v1338
        %v1435 = vcvt.s32.f32 %v1339
        %v1436 = vcvt.s32.f32 %v1340
        %v1437 = vcvt.s32.f32 %v1341
        %v1438 = vcvt.s32.f32 %v1342
        %v1439 = vcvt.s32.f32 %v1343
        %v1440 = vcvt.s32.f32 %v1344
        %v1441 = vcvt.s32.f32 %v1345
        %v1442 = vcvt.s32.f32 %v1346
        %v1443 = vcvt.s32.f32 %v1347
        %v1444 = vcvt.s32.f32 %v1348
        %v1445 = vcvt.s32.f32 %v1349
        %v1446 = vcvt.s32.f32 %v1350
        %v1447 = vcvt.s32.f32 %v1351
        %v1448 = vcvt.s32.f32 %v1352
        %v1449 = vcvt.s32.f32 %v1353
        %v1450 = vcvt.s32.f32 %v1354
        %v1451 = vcvt.s32.f32 %v1355
        %v1452 = vcvt.s32.f32 %v1356
        %v1453 = vcvt.s32.f32 %v1357
        %v1454 = vcvt.s32.f32 %v1358
        %v1455 = vcvt.s32.f32 %v1359
        %v1456 = vcvt.s32.f32 %v1360
        %v1457 = vcvt.s32.f32 %v1361
        %v1458 = vcvt.s32.f32 %v1362
        %v1459 = vcvt.s32.f32 %v1363
        %v1460 = vcvt.s32.f32 %v1364
        %v1461 = vcvt.s32.f32 %v1365
        %v1462 = vcvt.s32.f32 %v1366
        %v1463 = vcvt.s32.f32 %v1367
        %v1464 = vcvt.s32.f32 %v1368
        %v1465 = vcvt.s32.f32 %v1369
        %v1466 = vcvt.s32.f32 %v1370
        %v1467 = vcvt.s32.f32 %v1371
        %v1468 = vcvt.s32.f32 %v1372
        %v1469 = vcvt.s32.f32 %v1373
        %v1470 = vcvt.s32.f32 %v1374
        %v1471 = vcvt.s32.f32 %v1375
        %v1472 = vcvt.s32.f32 %v1376
        %v1473 = vcvt.s32.f32 %v1377
        %v1474 = vcvt.s32.f32 %v1378
        %v1475 = vcvt.s32.f32 %v1379
        %v1476 = vcvt.s32.f32 %v1380
        %v1477 = vcvt.s32.f32 %v1381
        %v1478 = vcvt.s32.f32 %v1382
        %v1479 = vcvt.s32.f32 %v1383
        %v1480 = vcvt.s32.f32 %v1384
        %v1481 = vcvt.s32.f32 %v1385
        %v1482 = vcvt.s32.f32 %v1386
        %v1483 = vcvt.s32.f32 %v1387
        %v1484 = vadd.f32 %v1096, %v1388
        %v1485 = vadd.f32 %v1097, %v1389
        %v1486 = vadd.f32 %v1098, %v1390
        %v1487 = vadd.f32 %v1099, %v1391
        %v1488 = vadd.f32 %v1100, %v1392
        %v1489 = vadd.f32 %v1101, %v1393
        %v1490 = vadd.f32 %v1102, %v1394
        %v1491 = vadd.f32 %v1103, %v1395
        %v1492 = vadd.f32 %v1104, %v1396
        %v1493 = vadd.f32 %v1105, %v1397
        %v1494 = vadd.f32 %v1106, %v1398
        %v1495 = vadd.f32 %v1107, %v1399
        %v1496 = vadd.f32 %v1108, %v1400
        %v1497 = vadd.f32 %v1109, %v1401
        %v1498 = vadd.f32 %v1110, %v1402
        %v1499 = vadd.f32 %v1111, %v1403
        %v1500 = vadd.f32 %v1112, %v1404
        %v1501 = vadd.f32 %v1113, %v1405
        %v1502 = vadd.f32 %v1114, %v1406
        %v1503 = vadd.f32 %v1115, %v1407
        %v1504 = vadd.f32 %v1116, %v1408
        %v1505 = vadd.f32 %v1117, %v1409
        %v1506 = vadd.f32 %v1118, %v1410
        %v1507 = vadd.f32 %v1119, %v1411
        %v1508 = vadd.f32 %v1120, %v1412
        %v1509 = vadd.f32 %v1121, %v1413
        %v1510 = vadd.f32 %v1122, %v1414
        %v1511 = vadd.f32 %v1123, %v1415
        %v1512 = vadd.f32 %v1124, %v1416
        %v1513 = vadd.f32 %v1125, %v1417
        %v1514 = vadd.f32 %v1126, %v1418
        %v1515 = vadd.f32 %v1127, %v1419
        %v1516 = vadd.f32 %v1128, %v1420
        %v1517 = vadd.f32 %v1129, %v1421
        %v1518 = vadd.f32 %v1130, %v1422
        %v1519 = vadd.f32 %v1131, %v1423
        %v1520 = vadd.f32 %v1132, %v1424
        %v1521 = vadd.f32 %v1133, %v1425
        %v1522 = vadd.f32 %v1134, %v1426
        %v1523 = vadd.f32 %v1135, %v1427
        %v1524 = vadd.f32 %v1136, %v1428
        %v1525 = vadd.f32 %v1137, %v1429
        %v1526 = vadd.f32 %v1138, %v1430
        %v1527 = vadd.f32 %v1139, %v1431
        %v1528 = vadd.f32 %v1140, %v1432
        %v1529 = vadd.f32 %v1141, %v1433
        %v1530 = vadd.f32 %v1142, %v1434
        %v1531 = vadd.f32 %v1143, %v1435
        %v1532 = vadd.f32 %v1144, %v1436
        %v1533 = vadd.f32 %v1145, %v1437
        %v1534 = vadd.f32 %v1146, %v1438
        %v1535 = vadd.f32 %v1147, %v1439
        %v1536 = vadd.f32 %v1148, %v1440
        %v1537 = vadd.f32 %v1149, %v1441
        %v1538 = vadd.f32 %v1150, %v1442
        %v1539 = vadd.f32 %v1151, %v1443
        %v1540 = vadd.f32 %v1152, %v1444
        %v1541 = vadd.f32 %v1153, %v1445
        %v1542 = vadd.f32 %v1154, %v1446
        %v1543 = vadd.f32 %v1155, %v1447
        %v1544 = vadd.f32 %v1156, %v1448
        %v1545 = vadd.f32 %v1157, %v1449
        %v1546 = vadd.f32 %v1158, %v1450
        %v1547 = vadd.f32 %v1159, %v1451
        %v1548 = vadd.f32 %v1160, %v1452
        %v1549 = vadd.f32 %v1161, %v1453
        %v1550 = vadd.f32 %v1162, %v1454
        %v1551 = vadd.f32 %v1163, %v1455
        %v1552 = vadd.f32 %v1164, %v1456
        %v1553 = vadd.f32 %v1165, %v1457
        %v1554 = vadd.f32 %v1166, %v1458
        %v1555 = vadd.f32 %v1167, %v1459
        %v1556 = vadd.f32 %v1168, %v1460
        %v1557 = vadd.f32 %v1169, %v1461
        %v1558 = vadd.f32 %v1170, %v1462
        %v1559 = vadd.f32 %v1171, %v1463
        %v1560 = vadd.f32 %v1172, %v1464
        %v1561 = vadd.f32 %v1173, %v1465
        %v1562 = vadd.f32 %v1174, %v1466
        %v1563 = vadd.f32 %v1175, %v1467
        %v1564 = vadd.f32 %v1176, %v1468
        %v1565 = vadd.f32 %v1177, %v1469
        %v1566 = vadd.f32 %v1178, %v1470
        %v1567 = vadd.f32 %v1179, %v1471
        %v1568 = vadd.f32 %v1180, %v1472
        %v1569 = vadd.f32 %v1181, %v1473
        %v1570 = vadd.f32 %v1182, %v1474
        %v1571 = vadd.f32 %v1183, %v1475
        %v1572 = vadd.f32 %v1184, %v1476
        %v1573 = vadd.f32 %v1185, %v1477
        %v1574 = vadd.f32 %v1186, %v1478
        %v1575 = vadd.f32 %v1187, %v1479
        %v1576 = vadd.f32 %v1188, %v1480
        %v1577 = vadd.f32 %v1189, %v1481
        %v1578 = vadd.f32 %v1190, %v1482
        %v1579 = vadd.f32 %v1191, %v1483
        %v1580 = vlaneseq
        %v1581 = vshrl.u32 %v1580, 7
        %v1582 = vsub.s32 3, %v1581
        %v1583 = vrot.slane %v318, %v1582
        %vm1584 = vcmp.eq.s32.totalorder %v320, %v1583
        %vm1585 = vcmp.eq.s32.totalorder %v321, %v1583
        %vm1586 = vcmp.eq.s32.totalorder %v322, %v1583
        %vm1587 = vcmp.eq.s32.totalorder %v323, %v1583
        %vm1588 = vcmp.eq.s32.totalorder %v324, %v1583
        %vm1589 = vcmp.eq.s32.totalorder %v325, %v1583
        %vm1590 = vcmp.eq.s32.totalorder %v326, %v1583
        %vm1591 = vcmp.eq.s32.totalorder %v327, %v1583
        %vm1592 = vcmp.eq.s32.totalorder %v328, %v1583
        %vm1593 = vcmp.eq.s32.totalorder %v329, %v1583
        %vm1594 = vcmp.eq.s32.totalorder %v330, %v1583
        %vm1595 = vcmp.eq.s32.totalorder %v331, %v1583
        %vm1596 = vcmp.eq.s32.totalorder %v332, %v1583
        %vm1597 = vcmp.eq.s32.totalorder %v333, %v1583
        %vm1598 = vcmp.eq.s32.totalorder %v334, %v1583
        %vm1599 = vcmp.eq.s32.totalorder %v335, %v1583
        %vm1600 = vcmp.eq.s32.totalorder %v336, %v1583
        %vm1601 = vcmp.eq.s32.totalorder %v337, %v1583
        %vm1602 = vcmp.eq.s32.totalorder %v338, %v1583
        %vm1603 = vcmp.eq.s32.totalorder %v339, %v1583
        %vm1604 = vcmp.eq.s32.totalorder %v340, %v1583
        %vm1605 = vcmp.eq.s32.totalorder %v341, %v1583
        %vm1606 = vcmp.eq.s32.totalorder %v342, %v1583
        %vm1607 = vcmp.eq.s32.totalorder %v343, %v1583
        %vm1608 = vcmp.eq.s32.totalorder %v344, %v1583
        %vm1609 = vcmp.eq.s32.totalorder %v345, %v1583
        %vm1610 = vcmp.eq.s32.totalorder %v346, %v1583
        %vm1611 = vcmp.eq.s32.totalorder %v347, %v1583
        %vm1612 = vcmp.eq.s32.totalorder %v348, %v1583
        %vm1613 = vcmp.eq.s32.totalorder %v349, %v1583
        %vm1614 = vcmp.eq.s32.totalorder %v350, %v1583
        %vm1615 = vcmp.eq.s32.totalorder %v351, %v1583
        %vm1616 = vcmp.eq.s32.totalorder %v352, %v1583
        %vm1617 = vcmp.eq.s32.totalorder %v353, %v1583
        %vm1618 = vcmp.eq.s32.totalorder %v354, %v1583
        %vm1619 = vcmp.eq.s32.totalorder %v355, %v1583
        %vm1620 = vcmp.eq.s32.totalorder %v356, %v1583
        %vm1621 = vcmp.eq.s32.totalorder %v357, %v1583
        %vm1622 = vcmp.eq.s32.totalorder %v358, %v1583
        %vm1623 = vcmp.eq.s32.totalorder %v359, %v1583
        %vm1624 = vcmp.eq.s32.totalorder %v360, %v1583
        %vm1625 = vcmp.eq.s32.totalorder %v361, %v1583
        %vm1626 = vcmp.eq.s32.totalorder %v362, %v1583
        %vm1627 = vcmp.eq.s32.totalorder %v363, %v1583
        %vm1628 = vcmp.eq.s32.totalorder %v364, %v1583
        %vm1629 = vcmp.eq.s32.totalorder %v365, %v1583
        %vm1630 = vcmp.eq.s32.totalorder %v366, %v1583
        %vm1631 = vcmp.eq.s32.totalorder %v367, %v1583
        %vm1632 = vcmp.eq.s32.totalorder %v368, %v1583
        %vm1633 = vcmp.eq.s32.totalorder %v369, %v1583
        %vm1634 = vcmp.eq.s32.totalorder %v370, %v1583
        %vm1635 = vcmp.eq.s32.totalorder %v371, %v1583
        %vm1636 = vcmp.eq.s32.totalorder %v372, %v1583
        %vm1637 = vcmp.eq.s32.totalorder %v373, %v1583
        %vm1638 = vcmp.eq.s32.totalorder %v374, %v1583
        %vm1639 = vcmp.eq.s32.totalorder %v375, %v1583
        %vm1640 = vcmp.eq.s32.totalorder %v376, %v1583
        %vm1641 = vcmp.eq.s32.totalorder %v377, %v1583
        %vm1642 = vcmp.eq.s32.totalorder %v378, %v1583
        %vm1643 = vcmp.eq.s32.totalorder %v379, %v1583
        %vm1644 = vcmp.eq.s32.totalorder %v380, %v1583
        %vm1645 = vcmp.eq.s32.totalorder %v381, %v1583
        %vm1646 = vcmp.eq.s32.totalorder %v382, %v1583
        %vm1647 = vcmp.eq.s32.totalorder %v383, %v1583
        %vm1648 = vcmp.eq.s32.totalorder %v384, %v1583
        %vm1649 = vcmp.eq.s32.totalorder %v385, %v1583
        %vm1650 = vcmp.eq.s32.totalorder %v386, %v1583
        %vm1651 = vcmp.eq.s32.totalorder %v387, %v1583
        %vm1652 = vcmp.eq.s32.totalorder %v388, %v1583
        %vm1653 = vcmp.eq.s32.totalorder %v389, %v1583
        %vm1654 = vcmp.eq.s32.totalorder %v390, %v1583
        %vm1655 = vcmp.eq.s32.totalorder %v391, %v1583
        %vm1656 = vcmp.eq.s32.totalorder %v392, %v1583
        %vm1657 = vcmp.eq.s32.totalorder %v393, %v1583
        %vm1658 = vcmp.eq.s32.totalorder %v394, %v1583
        %vm1659 = vcmp.eq.s32.totalorder %v395, %v1583
        %vm1660 = vcmp.eq.s32.totalorder %v396, %v1583
        %vm1661 = vcmp.eq.s32.totalorder %v397, %v1583
        %vm1662 = vcmp.eq.s32.totalorder %v398, %v1583
        %vm1663 = vcmp.eq.s32.totalorder %v399, %v1583
        %vm1664 = vcmp.eq.s32.totalorder %v400, %v1583
        %vm1665 = vcmp.eq.s32.totalorder %v401, %v1583
        %vm1666 = vcmp.eq.s32.totalorder %v402, %v1583
        %vm1667 = vcmp.eq.s32.totalorder %v403, %v1583
        %vm1668 = vcmp.eq.s32.totalorder %v404, %v1583
        %vm1669 = vcmp.eq.s32.totalorder %v405, %v1583
        %vm1670 = vcmp.eq.s32.totalorder %v406, %v1583
        %vm1671 = vcmp.eq.s32.totalorder %v407, %v1583
        %vm1672 = vcmp.eq.s32.totalorder %v408, %v1583
        %vm1673 = vcmp.eq.s32.totalorder %v409, %v1583
        %vm1674 = vcmp.eq.s32.totalorder %v410, %v1583
        %vm1675 = vcmp.eq.s32.totalorder %v411, %v1583
        %vm1676 = vcmp.eq.s32.totalorder %v412, %v1583
        %vm1677 = vcmp.eq.s32.totalorder %v413, %v1583
        %vm1678 = vcmp.eq.s32.totalorder %v414, %v1583
        %vm1679 = vcmp.eq.s32.totalorder %v415, %v1583
        %v1680 = vsel %vm1584, 1, 0
        %v1681 = vsel %vm1585, 1, 0
        %v1682 = vsel %vm1586, 1, 0
        %v1683 = vsel %vm1587, 1, 0
        %v1684 = vsel %vm1588, 1, 0
        %v1685 = vsel %vm1589, 1, 0
        %v1686 = vsel %vm1590, 1, 0
        %v1687 = vsel %vm1591, 1, 0
        %v1688 = vsel %vm1592, 1, 0
        %v1689 = vsel %vm1593, 1, 0
        %v1690 = vsel %vm1594, 1, 0
        %v1691 = vsel %vm1595, 1, 0
        %v1692 = vsel %vm1596, 1, 0
        %v1693 = vsel %vm1597, 1, 0
        %v1694 = vsel %vm1598, 1, 0
        %v1695 = vsel %vm1599, 1, 0
        %v1696 = vsel %vm1600, 1, 0
        %v1697 = vsel %vm1601, 1, 0
        %v1698 = vsel %vm1602, 1, 0
        %v1699 = vsel %vm1603, 1, 0
        %v1700 = vsel %vm1604, 1, 0
        %v1701 = vsel %vm1605, 1, 0
        %v1702 = vsel %vm1606, 1, 0
        %v1703 = vsel %vm1607, 1, 0
        %v1704 = vsel %vm1608, 1, 0
        %v1705 = vsel %vm1609, 1, 0
        %v1706 = vsel %vm1610, 1, 0
        %v1707 = vsel %vm1611, 1, 0
        %v1708 = vsel %vm1612, 1, 0
        %v1709 = vsel %vm1613, 1, 0
        %v1710 = vsel %vm1614, 1, 0
        %v1711 = vsel %vm1615, 1, 0
        %v1712 = vsel %vm1616, 1, 0
        %v1713 = vsel %vm1617, 1, 0
        %v1714 = vsel %vm1618, 1, 0
        %v1715 = vsel %vm1619, 1, 0
        %v1716 = vsel %vm1620, 1, 0
        %v1717 = vsel %vm1621, 1, 0
        %v1718 = vsel %vm1622, 1, 0
        %v1719 = vsel %vm1623, 1, 0
        %v1720 = vsel %vm1624, 1, 0
        %v1721 = vsel %vm1625, 1, 0
        %v1722 = vsel %vm1626, 1, 0
        %v1723 = vsel %vm1627, 1, 0
        %v1724 = vsel %vm1628, 1, 0
        %v1725 = vsel %vm1629, 1, 0
        %v1726 = vsel %vm1630, 1, 0
        %v1727 = vsel %vm1631, 1, 0
        %v1728 = vsel %vm1632, 1, 0
        %v1729 = vsel %vm1633, 1, 0
        %v1730 = vsel %vm1634, 1, 0
        %v1731 = vsel %vm1635, 1, 0
        %v1732 = vsel %vm1636, 1, 0
        %v1733 = vsel %vm1637, 1, 0
        %v1734 = vsel %vm1638, 1, 0
        %v1735 = vsel %vm1639, 1, 0
        %v1736 = vsel %vm1640, 1, 0
        %v1737 = vsel %vm1641, 1, 0
        %v1738 = vsel %vm1642, 1, 0
        %v1739 = vsel %vm1643, 1, 0
        %v1740 = vsel %vm1644, 1, 0
        %v1741 = vsel %vm1645, 1, 0
        %v1742 = vsel %vm1646, 1, 0
        %v1743 = vsel %vm1647, 1, 0
        %v1744 = vsel %vm1648, 1, 0
        %v1745 = vsel %vm1649, 1, 0
        %v1746 = vsel %vm1650, 1, 0
        %v1747 = vsel %vm1651, 1, 0
        %v1748 = vsel %vm1652, 1, 0
        %v1749 = vsel %vm1653, 1, 0
        %v1750 = vsel %vm1654, 1, 0
        %v1751 = vsel %vm1655, 1, 0
        %v1752 = vsel %vm1656, 1, 0
        %v1753 = vsel %vm1657, 1, 0
        %v1754 = vsel %vm1658, 1, 0
        %v1755 = vsel %vm1659, 1, 0
        %v1756 = vsel %vm1660, 1, 0
        %v1757 = vsel %vm1661, 1, 0
        %v1758 = vsel %vm1662, 1, 0
        %v1759 = vsel %vm1663, 1, 0
        %v1760 = vsel %vm1664, 1, 0
        %v1761 = vsel %vm1665, 1, 0
        %v1762 = vsel %vm1666, 1, 0
        %v1763 = vsel %vm1667, 1, 0
        %v1764 = vsel %vm1668, 1, 0
        %v1765 = vsel %vm1669, 1, 0
        %v1766 = vsel %vm1670, 1, 0
        %v1767 = vsel %vm1671, 1, 0
        %v1768 = vsel %vm1672, 1, 0
        %v1769 = vsel %vm1673, 1, 0
        %v1770 = vsel %vm1674, 1, 0
        %v1771 = vsel %vm1675, 1, 0
        %v1772 = vsel %vm1676, 1, 0
        %v1773 = vsel %vm1677, 1, 0
        %v1774 = vsel %vm1678, 1, 0
        %v1775 = vsel %vm1679, 1, 0
        %v1776 = vcvt.s32.f32 %v1680
        %v1777 = vcvt.s32.f32 %v1681
        %v1778 = vcvt.s32.f32 %v1682
        %v1779 = vcvt.s32.f32 %v1683
        %v1780 = vcvt.s32.f32 %v1684
        %v1781 = vcvt.s32.f32 %v1685
        %v1782 = vcvt.s32.f32 %v1686
        %v1783 = vcvt.s32.f32 %v1687
        %v1784 = vcvt.s32.f32 %v1688
        %v1785 = vcvt.s32.f32 %v1689
        %v1786 = vcvt.s32.f32 %v1690
        %v1787 = vcvt.s32.f32 %v1691
        %v1788 = vcvt.s32.f32 %v1692
        %v1789 = vcvt.s32.f32 %v1693
        %v1790 = vcvt.s32.f32 %v1694
        %v1791 = vcvt.s32.f32 %v1695
        %v1792 = vcvt.s32.f32 %v1696
        %v1793 = vcvt.s32.f32 %v1697
        %v1794 = vcvt.s32.f32 %v1698
        %v1795 = vcvt.s32.f32 %v1699
        %v1796 = vcvt.s32.f32 %v1700
        %v1797 = vcvt.s32.f32 %v1701
        %v1798 = vcvt.s32.f32 %v1702
        %v1799 = vcvt.s32.f32 %v1703
        %v1800 = vcvt.s32.f32 %v1704
        %v1801 = vcvt.s32.f32 %v1705
        %v1802 = vcvt.s32.f32 %v1706
        %v1803 = vcvt.s32.f32 %v1707
        %v1804 = vcvt.s32.f32 %v1708
        %v1805 = vcvt.s32.f32 %v1709
        %v1806 = vcvt.s32.f32 %v1710
        %v1807 = vcvt.s32.f32 %v1711
        %v1808 = vcvt.s32.f32 %v1712
        %v1809 = vcvt.s32.f32 %v1713
        %v1810 = vcvt.s32.f32 %v1714
        %v1811 = vcvt.s32.f32 %v1715
        %v1812 = vcvt.s32.f32 %v1716
        %v1813 = vcvt.s32.f32 %v1717
        %v1814 = vcvt.s32.f32 %v1718
        %v1815 = vcvt.s32.f32 %v1719
        %v1816 = vcvt.s32.f32 %v1720
        %v1817 = vcvt.s32.f32 %v1721
        %v1818 = vcvt.s32.f32 %v1722
        %v1819 = vcvt.s32.f32 %v1723
        %v1820 = vcvt.s32.f32 %v1724
        %v1821 = vcvt.s32.f32 %v1725
        %v1822 = vcvt.s32.f32 %v1726
        %v1823 = vcvt.s32.f32 %v1727
        %v1824 = vcvt.s32.f32 %v1728
        %v1825 = vcvt.s32.f32 %v1729
        %v1826 = vcvt.s32.f32 %v1730
        %v1827 = vcvt.s32.f32 %v1731
        %v1828 = vcvt.s32.f32 %v1732
        %v1829 = vcvt.s32.f32 %v1733
        %v1830 = vcvt.s32.f32 %v1734
        %v1831 = vcvt.s32.f32 %v1735
        %v1832 = vcvt.s32.f32 %v1736
        %v1833 = vcvt.s32.f32 %v1737
        %v1834 = vcvt.s32.f32 %v1738
        %v1835 = vcvt.s32.f32 %v1739
        %v1836 = vcvt.s32.f32 %v1740
        %v1837 = vcvt.s32.f32 %v1741
        %v1838 = vcvt.s32.f32 %v1742
        %v1839 = vcvt.s32.f32 %v1743
        %v1840 = vcvt.s32.f32 %v1744
        %v1841 = vcvt.s32.f32 %v1745
        %v1842 = vcvt.s32.f32 %v1746
        %v1843 = vcvt.s32.f32 %v1747
        %v1844 = vcvt.s32.f32 %v1748
        %v1845 = vcvt.s32.f32 %v1749
        %v1846 = vcvt.s32.f32 %v1750
        %v1847 = vcvt.s32.f32 %v1751
        %v1848 = vcvt.s32.f32 %v1752
        %v1849 = vcvt.s32.f32 %v1753
        %v1850 = vcvt.s32.f32 %v1754
        %v1851 = vcvt.s32.f32 %v1755
        %v1852 = vcvt.s32.f32 %v1756
        %v1853 = vcvt.s32.f32 %v1757
        %v1854 = vcvt.s32.f32 %v1758
        %v1855 = vcvt.s32.f32 %v1759
        %v1856 = vcvt.s32.f32 %v1760
        %v1857 = vcvt.s32.f32 %v1761
        %v1858 = vcvt.s32.f32 %v1762
        %v1859 = vcvt.s32.f32 %v1763
        %v1860 = vcvt.s32.f32 %v1764
        %v1861 = vcvt.s32.f32 %v1765
        %v1862 = vcvt.s32.f32 %v1766
        %v1863 = vcvt.s32.f32 %v1767
        %v1864 = vcvt.s32.f32 %v1768
        %v1865 = vcvt.s32.f32 %v1769
        %v1866 = vcvt.s32.f32 %v1770
        %v1867 = vcvt.s32.f32 %v1771
        %v1868 = vcvt.s32.f32 %v1772
        %v1869 = vcvt.s32.f32 %v1773
        %v1870 = vcvt.s32.f32 %v1774
        %v1871 = vcvt.s32.f32 %v1775
        %v1872 = vadd.f32 %v1484, %v1776
        %v1873 = vadd.f32 %v1485, %v1777
        %v1874 = vadd.f32 %v1486, %v1778
        %v1875 = vadd.f32 %v1487, %v1779
        %v1876 = vadd.f32 %v1488, %v1780
        %v1877 = vadd.f32 %v1489, %v1781
        %v1878 = vadd.f32 %v1490, %v1782
        %v1879 = vadd.f32 %v1491, %v1783
        %v1880 = vadd.f32 %v1492, %v1784
        %v1881 = vadd.f32 %v1493, %v1785
        %v1882 = vadd.f32 %v1494, %v1786
        %v1883 = vadd.f32 %v1495, %v1787
        %v1884 = vadd.f32 %v1496, %v1788
        %v1885 = vadd.f32 %v1497, %v1789
        %v1886 = vadd.f32 %v1498, %v1790
        %v1887 = vadd.f32 %v1499, %v1791
        %v1888 = vadd.f32 %v1500, %v1792
        %v1889 = vadd.f32 %v1501, %v1793
        %v1890 = vadd.f32 %v1502, %v1794
        %v1891 = vadd.f32 %v1503, %v1795
        %v1892 = vadd.f32 %v1504, %v1796
        %v1893 = vadd.f32 %v1505, %v1797
        %v1894 = vadd.f32 %v1506, %v1798
        %v1895 = vadd.f32 %v1507, %v1799
        %v1896 = vadd.f32 %v1508, %v1800
        %v1897 = vadd.f32 %v1509, %v1801
        %v1898 = vadd.f32 %v1510, %v1802
        %v1899 = vadd.f32 %v1511, %v1803
        %v1900 = vadd.f32 %v1512, %v1804
        %v1901 = vadd.f32 %v1513, %v1805
        %v1902 = vadd.f32 %v1514, %v1806
        %v1903 = vadd.f32 %v1515, %v1807
        %v1904 = vadd.f32 %v1516, %v1808
        %v1905 = vadd.f32 %v1517, %v1809
        %v1906 = vadd.f32 %v1518, %v1810
        %v1907 = vadd.f32 %v1519, %v1811
        %v1908 = vadd.f32 %v1520, %v1812
        %v1909 = vadd.f32 %v1521, %v1813
        %v1910 = vadd.f32 %v1522, %v1814
        %v1911 = vadd.f32 %v1523, %v1815
        %v1912 = vadd.f32 %v1524, %v1816
        %v1913 = vadd.f32 %v1525, %v1817
        %v1914 = vadd.f32 %v1526, %v1818
        %v1915 = vadd.f32 %v1527, %v1819
        %v1916 = vadd.f32 %v1528, %v1820
        %v1917 = vadd.f32 %v1529, %v1821
        %v1918 = vadd.f32 %v1530, %v1822
        %v1919 = vadd.f32 %v1531, %v1823
        %v1920 = vadd.f32 %v1532, %v1824
        %v1921 = vadd.f32 %v1533, %v1825
        %v1922 = vadd.f32 %v1534, %v1826
        %v1923 = vadd.f32 %v1535, %v1827
        %v1924 = vadd.f32 %v1536, %v1828
        %v1925 = vadd.f32 %v1537, %v1829
        %v1926 = vadd.f32 %v1538, %v1830
        %v1927 = vadd.f32 %v1539, %v1831
        %v1928 = vadd.f32 %v1540, %v1832
        %v1929 = vadd.f32 %v1541, %v1833
        %v1930 = vadd.f32 %v1542, %v1834
        %v1931 = vadd.f32 %v1543, %v1835
        %v1932 = vadd.f32 %v1544, %v1836
        %v1933 = vadd.f32 %v1545, %v1837
        %v1934 = vadd.f32 %v1546, %v1838
        %v1935 = vadd.f32 %v1547, %v1839
        %v1936 = vadd.f32 %v1548, %v1840
        %v1937 = vadd.f32 %v1549, %v1841
        %v1938 = vadd.f32 %v1550, %v1842
        %v1939 = vadd.f32 %v1551, %v1843
        %v1940 = vadd.f32 %v1552, %v1844
        %v1941 = vadd.f32 %v1553, %v1845
        %v1942 = vadd.f32 %v1554, %v1846
        %v1943 = vadd.f32 %v1555, %v1847
        %v1944 = vadd.f32 %v1556, %v1848
        %v1945 = vadd.f32 %v1557, %v1849
        %v1946 = vadd.f32 %v1558, %v1850
        %v1947 = vadd.f32 %v1559, %v1851
        %v1948 = vadd.f32 %v1560, %v1852
        %v1949 = vadd.f32 %v1561, %v1853
        %v1950 = vadd.f32 %v1562, %v1854
        %v1951 = vadd.f32 %v1563, %v1855
        %v1952 = vadd.f32 %v1564, %v1856
        %v1953 = vadd.f32 %v1565, %v1857
        %v1954 = vadd.f32 %v1566, %v1858
        %v1955 = vadd.f32 %v1567, %v1859
        %v1956 = vadd.f32 %v1568, %v1860
        %v1957 = vadd.f32 %v1569, %v1861
        %v1958 = vadd.f32 %v1570, %v1862
        %v1959 = vadd.f32 %v1571, %v1863
        %v1960 = vadd.f32 %v1572, %v1864
        %v1961 = vadd.f32 %v1573, %v1865
        %v1962 = vadd.f32 %v1574, %v1866
        %v1963 = vadd.f32 %v1575, %v1867
        %v1964 = vadd.f32 %v1576, %v1868
        %v1965 = vadd.f32 %v1577, %v1869
        %v1966 = vadd.f32 %v1578, %v1870
        %v1967 = vadd.f32 %v1579, %v1871
        %v1968 = vlaneseq
        %v1969 = vshrl.u32 %v1968, 7
        %v1970 = vsub.s32 4, %v1969
        %v1971 = vrot.slane %v318, %v1970
        %vm1972 = vcmp.eq.s32.totalorder %v320, %v1971
        %vm1973 = vcmp.eq.s32.totalorder %v321, %v1971
        %vm1974 = vcmp.eq.s32.totalorder %v322, %v1971
        %vm1975 = vcmp.eq.s32.totalorder %v323, %v1971
        %vm1976 = vcmp.eq.s32.totalorder %v324, %v1971
        %vm1977 = vcmp.eq.s32.totalorder %v325, %v1971
        %vm1978 = vcmp.eq.s32.totalorder %v326, %v1971
        %vm1979 = vcmp.eq.s32.totalorder %v327, %v1971
        %vm1980 = vcmp.eq.s32.totalorder %v328, %v1971
        %vm1981 = vcmp.eq.s32.totalorder %v329, %v1971
        %vm1982 = vcmp.eq.s32.totalorder %v330, %v1971
        %vm1983 = vcmp.eq.s32.totalorder %v331, %v1971
        %vm1984 = vcmp.eq.s32.totalorder %v332, %v1971
        %vm1985 = vcmp.eq.s32.totalorder %v333, %v1971
        %vm1986 = vcmp.eq.s32.totalorder %v334, %v1971
        %vm1987 = vcmp.eq.s32.totalorder %v335, %v1971
        %vm1988 = vcmp.eq.s32.totalorder %v336, %v1971
        %vm1989 = vcmp.eq.s32.totalorder %v337, %v1971
        %vm1990 = vcmp.eq.s32.totalorder %v338, %v1971
        %vm1991 = vcmp.eq.s32.totalorder %v339, %v1971
        %vm1992 = vcmp.eq.s32.totalorder %v340, %v1971
        %vm1993 = vcmp.eq.s32.totalorder %v341, %v1971
        %vm1994 = vcmp.eq.s32.totalorder %v342, %v1971
        %vm1995 = vcmp.eq.s32.totalorder %v343, %v1971
        %vm1996 = vcmp.eq.s32.totalorder %v344, %v1971
        %vm1997 = vcmp.eq.s32.totalorder %v345, %v1971
        %vm1998 = vcmp.eq.s32.totalorder %v346, %v1971
        %vm1999 = vcmp.eq.s32.totalorder %v347, %v1971
        %vm2000 = vcmp.eq.s32.totalorder %v348, %v1971
        %vm2001 = vcmp.eq.s32.totalorder %v349, %v1971
        %vm2002 = vcmp.eq.s32.totalorder %v350, %v1971
        %vm2003 = vcmp.eq.s32.totalorder %v351, %v1971
        %vm2004 = vcmp.eq.s32.totalorder %v352, %v1971
        %vm2005 = vcmp.eq.s32.totalorder %v353, %v1971
        %vm2006 = vcmp.eq.s32.totalorder %v354, %v1971
        %vm2007 = vcmp.eq.s32.totalorder %v355, %v1971
        %vm2008 = vcmp.eq.s32.totalorder %v356, %v1971
        %vm2009 = vcmp.eq.s32.totalorder %v357, %v1971
        %vm2010 = vcmp.eq.s32.totalorder %v358, %v1971
        %vm2011 = vcmp.eq.s32.totalorder %v359, %v1971
        %vm2012 = vcmp.eq.s32.totalorder %v360, %v1971
        %vm2013 = vcmp.eq.s32.totalorder %v361, %v1971
        %vm2014 = vcmp.eq.s32.totalorder %v362, %v1971
        %vm2015 = vcmp.eq.s32.totalorder %v363, %v1971
        %vm2016 = vcmp.eq.s32.totalorder %v364, %v1971
        %vm2017 = vcmp.eq.s32.totalorder %v365, %v1971
        %vm2018 = vcmp.eq.s32.totalorder %v366, %v1971
        %vm2019 = vcmp.eq.s32.totalorder %v367, %v1971
        %vm2020 = vcmp.eq.s32.totalorder %v368, %v1971
        %vm2021 = vcmp.eq.s32.totalorder %v369, %v1971
        %vm2022 = vcmp.eq.s32.totalorder %v370, %v1971
        %vm2023 = vcmp.eq.s32.totalorder %v371, %v1971
        %vm2024 = vcmp.eq.s32.totalorder %v372, %v1971
        %vm2025 = vcmp.eq.s32.totalorder %v373, %v1971
        %vm2026 = vcmp.eq.s32.totalorder %v374, %v1971
        %vm2027 = vcmp.eq.s32.totalorder %v375, %v1971
        %vm2028 = vcmp.eq.s32.totalorder %v376, %v1971
        %vm2029 = vcmp.eq.s32.totalorder %v377, %v1971
        %vm2030 = vcmp.eq.s32.totalorder %v378, %v1971
        %vm2031 = vcmp.eq.s32.totalorder %v379, %v1971
        %vm2032 = vcmp.eq.s32.totalorder %v380, %v1971
        %vm2033 = vcmp.eq.s32.totalorder %v381, %v1971
        %vm2034 = vcmp.eq.s32.totalorder %v382, %v1971
        %vm2035 = vcmp.eq.s32.totalorder %v383, %v1971
        %vm2036 = vcmp.eq.s32.totalorder %v384, %v1971
        %vm2037 = vcmp.eq.s32.totalorder %v385, %v1971
        %vm2038 = vcmp.eq.s32.totalorder %v386, %v1971
        %vm2039 = vcmp.eq.s32.totalorder %v387, %v1971
        %vm2040 = vcmp.eq.s32.totalorder %v388, %v1971
        %vm2041 = vcmp.eq.s32.totalorder %v389, %v1971
        %vm2042 = vcmp.eq.s32.totalorder %v390, %v1971
        %vm2043 = vcmp.eq.s32.totalorder %v391, %v1971
        %vm2044 = vcmp.eq.s32.totalorder %v392, %v1971
        %vm2045 = vcmp.eq.s32.totalorder %v393, %v1971
        %vm2046 = vcmp.eq.s32.totalorder %v394, %v1971
        %vm2047 = vcmp.eq.s32.totalorder %v395, %v1971
        %vm2048 = vcmp.eq.s32.totalorder %v396, %v1971
        %vm2049 = vcmp.eq.s32.totalorder %v397, %v1971
        %vm2050 = vcmp.eq.s32.totalorder %v398, %v1971
        %vm2051 = vcmp.eq.s32.totalorder %v399, %v1971
        %vm2052 = vcmp.eq.s32.totalorder %v400, %v1971
        %vm2053 = vcmp.eq.s32.totalorder %v401, %v1971
        %vm2054 = vcmp.eq.s32.totalorder %v402, %v1971
        %vm2055 = vcmp.eq.s32.totalorder %v403, %v1971
        %vm2056 = vcmp.eq.s32.totalorder %v404, %v1971
        %vm2057 = vcmp.eq.s32.totalorder %v405, %v1971
        %vm2058 = vcmp.eq.s32.totalorder %v406, %v1971
        %vm2059 = vcmp.eq.s32.totalorder %v407, %v1971
        %vm2060 = vcmp.eq.s32.totalorder %v408, %v1971
        %vm2061 = vcmp.eq.s32.totalorder %v409, %v1971
        %vm2062 = vcmp.eq.s32.totalorder %v410, %v1971
        %vm2063 = vcmp.eq.s32.totalorder %v411, %v1971
        %vm2064 = vcmp.eq.s32.totalorder %v412, %v1971
        %vm2065 = vcmp.eq.s32.totalorder %v413, %v1971
        %vm2066 = vcmp.eq.s32.totalorder %v414, %v1971
        %vm2067 = vcmp.eq.s32.totalorder %v415, %v1971
        %v2068 = vsel %vm1972, 1, 0
        %v2069 = vsel %vm1973, 1, 0
        %v2070 = vsel %vm1974, 1, 0
        %v2071 = vsel %vm1975, 1, 0
        %v2072 = vsel %vm1976, 1, 0
        %v2073 = vsel %vm1977, 1, 0
        %v2074 = vsel %vm1978, 1, 0
        %v2075 = vsel %vm1979, 1, 0
        %v2076 = vsel %vm1980, 1, 0
        %v2077 = vsel %vm1981, 1, 0
        %v2078 = vsel %vm1982, 1, 0
        %v2079 = vsel %vm1983, 1, 0
        %v2080 = vsel %vm1984, 1, 0
        %v2081 = vsel %vm1985, 1, 0
        %v2082 = vsel %vm1986, 1, 0
        %v2083 = vsel %vm1987, 1, 0
        %v2084 = vsel %vm1988, 1, 0
        %v2085 = vsel %vm1989, 1, 0
        %v2086 = vsel %vm1990, 1, 0
        %v2087 = vsel %vm1991, 1, 0
        %v2088 = vsel %vm1992, 1, 0
        %v2089 = vsel %vm1993, 1, 0
        %v2090 = vsel %vm1994, 1, 0
        %v2091 = vsel %vm1995, 1, 0
        %v2092 = vsel %vm1996, 1, 0
        %v2093 = vsel %vm1997, 1, 0
        %v2094 = vsel %vm1998, 1, 0
        %v2095 = vsel %vm1999, 1, 0
        %v2096 = vsel %vm2000, 1, 0
        %v2097 = vsel %vm2001, 1, 0
        %v2098 = vsel %vm2002, 1, 0
        %v2099 = vsel %vm2003, 1, 0
        %v2100 = vsel %vm2004, 1, 0
        %v2101 = vsel %vm2005, 1, 0
        %v2102 = vsel %vm2006, 1, 0
        %v2103 = vsel %vm2007, 1, 0
        %v2104 = vsel %vm2008, 1, 0
        %v2105 = vsel %vm2009, 1, 0
        %v2106 = vsel %vm2010, 1, 0
        %v2107 = vsel %vm2011, 1, 0
        %v2108 = vsel %vm2012, 1, 0
        %v2109 = vsel %vm2013, 1, 0
        %v2110 = vsel %vm2014, 1, 0
        %v2111 = vsel %vm2015, 1, 0
        %v2112 = vsel %vm2016, 1, 0
        %v2113 = vsel %vm2017, 1, 0
        %v2114 = vsel %vm2018, 1, 0
        %v2115 = vsel %vm2019, 1, 0
        %v2116 = vsel %vm2020, 1, 0
        %v2117 = vsel %vm2021, 1, 0
        %v2118 = vsel %vm2022, 1, 0
        %v2119 = vsel %vm2023, 1, 0
        %v2120 = vsel %vm2024, 1, 0
        %v2121 = vsel %vm2025, 1, 0
        %v2122 = vsel %vm2026, 1, 0
        %v2123 = vsel %vm2027, 1, 0
        %v2124 = vsel %vm2028, 1, 0
        %v2125 = vsel %vm2029, 1, 0
        %v2126 = vsel %vm2030, 1, 0
        %v2127 = vsel %vm2031, 1, 0
        %v2128 = vsel %vm2032, 1, 0
        %v2129 = vsel %vm2033, 1, 0
        %v2130 = vsel %vm2034, 1, 0
        %v2131 = vsel %vm2035, 1, 0
        %v2132 = vsel %vm2036, 1, 0
        %v2133 = vsel %vm2037, 1, 0
        %v2134 = vsel %vm2038, 1, 0
        %v2135 = vsel %vm2039, 1, 0
        %v2136 = vsel %vm2040, 1, 0
        %v2137 = vsel %vm2041, 1, 0
        %v2138 = vsel %vm2042, 1, 0
        %v2139 = vsel %vm2043, 1, 0
        %v2140 = vsel %vm2044, 1, 0
        %v2141 = vsel %vm2045, 1, 0
        %v2142 = vsel %vm2046, 1, 0
        %v2143 = vsel %vm2047, 1, 0
        %v2144 = vsel %vm2048, 1, 0
        %v2145 = vsel %vm2049, 1, 0
        %v2146 = vsel %vm2050, 1, 0
        %v2147 = vsel %vm2051, 1, 0
        %v2148 = vsel %vm2052, 1, 0
        %v2149 = vsel %vm2053, 1, 0
        %v2150 = vsel %vm2054, 1, 0
        %v2151 = vsel %vm2055, 1, 0
        %v2152 = vsel %vm2056, 1, 0
        %v2153 = vsel %vm2057, 1, 0
        %v2154 = vsel %vm2058, 1, 0
        %v2155 = vsel %vm2059, 1, 0
        %v2156 = vsel %vm2060, 1, 0
        %v2157 = vsel %vm2061, 1, 0
        %v2158 = vsel %vm2062, 1, 0
        %v2159 = vsel %vm2063, 1, 0
        %v2160 = vsel %vm2064, 1, 0
        %v2161 = vsel %vm2065, 1, 0
        %v2162 = vsel %vm2066, 1, 0
        %v2163 = vsel %vm2067, 1, 0
        %v2164 = vcvt.s32.f32 %v2068
        %v2165 = vcvt.s32.f32 %v2069
        %v2166 = vcvt.s32.f32 %v2070
        %v2167 = vcvt.s32.f32 %v2071
        %v2168 = vcvt.s32.f32 %v2072
        %v2169 = vcvt.s32.f32 %v2073
        %v2170 = vcvt.s32.f32 %v2074
        %v2171 = vcvt.s32.f32 %v2075
        %v2172 = vcvt.s32.f32 %v2076
        %v2173 = vcvt.s32.f32 %v2077
        %v2174 = vcvt.s32.f32 %v2078
        %v2175 = vcvt.s32.f32 %v2079
        %v2176 = vcvt.s32.f32 %v2080
        %v2177 = vcvt.s32.f32 %v2081
        %v2178 = vcvt.s32.f32 %v2082
        %v2179 = vcvt.s32.f32 %v2083
        %v2180 = vcvt.s32.f32 %v2084
        %v2181 = vcvt.s32.f32 %v2085
        %v2182 = vcvt.s32.f32 %v2086
        %v2183 = vcvt.s32.f32 %v2087
        %v2184 = vcvt.s32.f32 %v2088
        %v2185 = vcvt.s32.f32 %v2089
        %v2186 = vcvt.s32.f32 %v2090
        %v2187 = vcvt.s32.f32 %v2091
        %v2188 = vcvt.s32.f32 %v2092
        %v2189 = vcvt.s32.f32 %v2093
        %v2190 = vcvt.s32.f32 %v2094
        %v2191 = vcvt.s32.f32 %v2095
        %v2192 = vcvt.s32.f32 %v2096
        %v2193 = vcvt.s32.f32 %v2097
        %v2194 = vcvt.s32.f32 %v2098
        %v2195 = vcvt.s32.f32 %v2099
        %v2196 = vcvt.s32.f32 %v2100
        %v2197 = vcvt.s32.f32 %v2101
        %v2198 = vcvt.s32.f32 %v2102
        %v2199 = vcvt.s32.f32 %v2103
        %v2200 = vcvt.s32.f32 %v2104
        %v2201 = vcvt.s32.f32 %v2105
        %v2202 = vcvt.s32.f32 %v2106
        %v2203 = vcvt.s32.f32 %v2107
        %v2204 = vcvt.s32.f32 %v2108
        %v2205 = vcvt.s32.f32 %v2109
        %v2206 = vcvt.s32.f32 %v2110
        %v2207 = vcvt.s32.f32 %v2111
        %v2208 = vcvt.s32.f32 %v2112
        %v2209 = vcvt.s32.f32 %v2113
        %v2210 = vcvt.s32.f32 %v2114
        %v2211 = vcvt.s32.f32 %v2115
        %v2212 = vcvt.s32.f32 %v2116
        %v2213 = vcvt.s32.f32 %v2117
        %v2214 = vcvt.s32.f32 %v2118
        %v2215 = vcvt.s32.f32 %v2119
        %v2216 = vcvt.s32.f32 %v2120
        %v2217 = vcvt.s32.f32 %v2121
        %v2218 = vcvt.s32.f32 %v2122
        %v2219 = vcvt.s32.f32 %v2123
        %v2220 = vcvt.s32.f32 %v2124
        %v2221 = vcvt.s32.f32 %v2125
        %v2222 = vcvt.s32.f32 %v2126
        %v2223 = vcvt.s32.f32 %v2127
        %v2224 = vcvt.s32.f32 %v2128
        %v2225 = vcvt.s32.f32 %v2129
        %v2226 = vcvt.s32.f32 %v2130
        %v2227 = vcvt.s32.f32 %v2131
        %v2228 = vcvt.s32.f32 %v2132
        %v2229 = vcvt.s32.f32 %v2133
        %v2230 = vcvt.s32.f32 %v2134
        %v2231 = vcvt.s32.f32 %v2135
        %v2232 = vcvt.s32.f32 %v2136
        %v2233 = vcvt.s32.f32 %v2137
        %v2234 = vcvt.s32.f32 %v2138
        %v2235 = vcvt.s32.f32 %v2139
        %v2236 = vcvt.s32.f32 %v2140
        %v2237 = vcvt.s32.f32 %v2141
        %v2238 = vcvt.s32.f32 %v2142
        %v2239 = vcvt.s32.f32 %v2143
        %v2240 = vcvt.s32.f32 %v2144
        %v2241 = vcvt.s32.f32 %v2145
        %v2242 = vcvt.s32.f32 %v2146
        %v2243 = vcvt.s32.f32 %v2147
        %v2244 = vcvt.s32.f32 %v2148
        %v2245 = vcvt.s32.f32 %v2149
        %v2246 = vcvt.s32.f32 %v2150
        %v2247 = vcvt.s32.f32 %v2151
        %v2248 = vcvt.s32.f32 %v2152
        %v2249 = vcvt.s32.f32 %v2153
        %v2250 = vcvt.s32.f32 %v2154
        %v2251 = vcvt.s32.f32 %v2155
        %v2252 = vcvt.s32.f32 %v2156
        %v2253 = vcvt.s32.f32 %v2157
        %v2254 = vcvt.s32.f32 %v2158
        %v2255 = vcvt.s32.f32 %v2159
        %v2256 = vcvt.s32.f32 %v2160
        %v2257 = vcvt.s32.f32 %v2161
        %v2258 = vcvt.s32.f32 %v2162
        %v2259 = vcvt.s32.f32 %v2163
        %v2260 = vadd.f32 %v1872, %v2164
        %v2261 = vadd.f32 %v1873, %v2165
        %v2262 = vadd.f32 %v1874, %v2166
        %v2263 = vadd.f32 %v1875, %v2167
        %v2264 = vadd.f32 %v1876, %v2168
        %v2265 = vadd.f32 %v1877, %v2169
        %v2266 = vadd.f32 %v1878, %v2170
        %v2267 = vadd.f32 %v1879, %v2171
        %v2268 = vadd.f32 %v1880, %v2172
        %v2269 = vadd.f32 %v1881, %v2173
        %v2270 = vadd.f32 %v1882, %v2174
        %v2271 = vadd.f32 %v1883, %v2175
        %v2272 = vadd.f32 %v1884, %v2176
        %v2273 = vadd.f32 %v1885, %v2177
        %v2274 = vadd.f32 %v1886, %v2178
        %v2275 = vadd.f32 %v1887, %v2179
        %v2276 = vadd.f32 %v1888, %v2180
        %v2277 = vadd.f32 %v1889, %v2181
        %v2278 = vadd.f32 %v1890, %v2182
        %v2279 = vadd.f32 %v1891, %v2183
        %v2280 = vadd.f32 %v1892, %v2184
        %v2281 = vadd.f32 %v1893, %v2185
        %v2282 = vadd.f32 %v1894, %v2186
        %v2283 = vadd.f32 %v1895, %v2187
        %v2284 = vadd.f32 %v1896, %v2188
        %v2285 = vadd.f32 %v1897, %v2189
        %v2286 = vadd.f32 %v1898, %v2190
        %v2287 = vadd.f32 %v1899, %v2191
        %v2288 = vadd.f32 %v1900, %v2192
        %v2289 = vadd.f32 %v1901, %v2193
        %v2290 = vadd.f32 %v1902, %v2194
        %v2291 = vadd.f32 %v1903, %v2195
        %v2292 = vadd.f32 %v1904, %v2196
        %v2293 = vadd.f32 %v1905, %v2197
        %v2294 = vadd.f32 %v1906, %v2198
        %v2295 = vadd.f32 %v1907, %v2199
        %v2296 = vadd.f32 %v1908, %v2200
        %v2297 = vadd.f32 %v1909, %v2201
        %v2298 = vadd.f32 %v1910, %v2202
        %v2299 = vadd.f32 %v1911, %v2203
        %v2300 = vadd.f32 %v1912, %v2204
        %v2301 = vadd.f32 %v1913, %v2205
        %v2302 = vadd.f32 %v1914, %v2206
        %v2303 = vadd.f32 %v1915, %v2207
        %v2304 = vadd.f32 %v1916, %v2208
        %v2305 = vadd.f32 %v1917, %v2209
        %v2306 = vadd.f32 %v1918, %v2210
        %v2307 = vadd.f32 %v1919, %v2211
        %v2308 = vadd.f32 %v1920, %v2212
        %v2309 = vadd.f32 %v1921, %v2213
        %v2310 = vadd.f32 %v1922, %v2214
        %v2311 = vadd.f32 %v1923, %v2215
        %v2312 = vadd.f32 %v1924, %v2216
        %v2313 = vadd.f32 %v1925, %v2217
        %v2314 = vadd.f32 %v1926, %v2218
        %v2315 = vadd.f32 %v1927, %v2219
        %v2316 = vadd.f32 %v1928, %v2220
        %v2317 = vadd.f32 %v1929, %v2221
        %v2318 = vadd.f32 %v1930, %v2222
        %v2319 = vadd.f32 %v1931, %v2223
        %v2320 = vadd.f32 %v1932, %v2224
        %v2321 = vadd.f32 %v1933, %v2225
        %v2322 = vadd.f32 %v1934, %v2226
        %v2323 = vadd.f32 %v1935, %v2227
        %v2324 = vadd.f32 %v1936, %v2228
        %v2325 = vadd.f32 %v1937, %v2229
        %v2326 = vadd.f32 %v1938, %v2230
        %v2327 = vadd.f32 %v1939, %v2231
        %v2328 = vadd.f32 %v1940, %v2232
        %v2329 = vadd.f32 %v1941, %v2233
        %v2330 = vadd.f32 %v1942, %v2234
        %v2331 = vadd.f32 %v1943, %v2235
        %v2332 = vadd.f32 %v1944, %v2236
        %v2333 = vadd.f32 %v1945, %v2237
        %v2334 = vadd.f32 %v1946, %v2238
        %v2335 = vadd.f32 %v1947, %v2239
        %v2336 = vadd.f32 %v1948, %v2240
        %v2337 = vadd.f32 %v1949, %v2241
        %v2338 = vadd.f32 %v1950, %v2242
        %v2339 = vadd.f32 %v1951, %v2243
        %v2340 = vadd.f32 %v1952, %v2244
        %v2341 = vadd.f32 %v1953, %v2245
        %v2342 = vadd.f32 %v1954, %v2246
        %v2343 = vadd.f32 %v1955, %v2247
        %v2344 = vadd.f32 %v1956, %v2248
        %v2345 = vadd.f32 %v1957, %v2249
        %v2346 = vadd.f32 %v1958, %v2250
        %v2347 = vadd.f32 %v1959, %v2251
        %v2348 = vadd.f32 %v1960, %v2252
        %v2349 = vadd.f32 %v1961, %v2253
        %v2350 = vadd.f32 %v1962, %v2254
        %v2351 = vadd.f32 %v1963, %v2255
        %v2352 = vadd.f32 %v1964, %v2256
        %v2353 = vadd.f32 %v1965, %v2257
        %v2354 = vadd.f32 %v1966, %v2258
        %v2355 = vadd.f32 %v1967, %v2259
        %v2356 = vlaneseq
        %v2357 = vshrl.u32 %v2356, 7
        %v2358 = vsub.s32 5, %v2357
        %v2359 = vrot.slane %v318, %v2358
        %vm2360 = vcmp.eq.s32.totalorder %v320, %v2359
        %vm2361 = vcmp.eq.s32.totalorder %v321, %v2359
        %vm2362 = vcmp.eq.s32.totalorder %v322, %v2359
        %vm2363 = vcmp.eq.s32.totalorder %v323, %v2359
        %vm2364 = vcmp.eq.s32.totalorder %v324, %v2359
        %vm2365 = vcmp.eq.s32.totalorder %v325, %v2359
        %vm2366 = vcmp.eq.s32.totalorder %v326, %v2359
        %vm2367 = vcmp.eq.s32.totalorder %v327, %v2359
        %vm2368 = vcmp.eq.s32.totalorder %v328, %v2359
        %vm2369 = vcmp.eq.s32.totalorder %v329, %v2359
        %vm2370 = vcmp.eq.s32.totalorder %v330, %v2359
        %vm2371 = vcmp.eq.s32.totalorder %v331, %v2359
        %vm2372 = vcmp.eq.s32.totalorder %v332, %v2359
        %vm2373 = vcmp.eq.s32.totalorder %v333, %v2359
        %vm2374 = vcmp.eq.s32.totalorder %v334, %v2359
        %vm2375 = vcmp.eq.s32.totalorder %v335, %v2359
        %vm2376 = vcmp.eq.s32.totalorder %v336, %v2359
        %vm2377 = vcmp.eq.s32.totalorder %v337, %v2359
        %vm2378 = vcmp.eq.s32.totalorder %v338, %v2359
        %vm2379 = vcmp.eq.s32.totalorder %v339, %v2359
        %vm2380 = vcmp.eq.s32.totalorder %v340, %v2359
        %vm2381 = vcmp.eq.s32.totalorder %v341, %v2359
        %vm2382 = vcmp.eq.s32.totalorder %v342, %v2359
        %vm2383 = vcmp.eq.s32.totalorder %v343, %v2359
        %vm2384 = vcmp.eq.s32.totalorder %v344, %v2359
        %vm2385 = vcmp.eq.s32.totalorder %v345, %v2359
        %vm2386 = vcmp.eq.s32.totalorder %v346, %v2359
        %vm2387 = vcmp.eq.s32.totalorder %v347, %v2359
        %vm2388 = vcmp.eq.s32.totalorder %v348, %v2359
        %vm2389 = vcmp.eq.s32.totalorder %v349, %v2359
        %vm2390 = vcmp.eq.s32.totalorder %v350, %v2359
        %vm2391 = vcmp.eq.s32.totalorder %v351, %v2359
        %vm2392 = vcmp.eq.s32.totalorder %v352, %v2359
        %vm2393 = vcmp.eq.s32.totalorder %v353, %v2359
        %vm2394 = vcmp.eq.s32.totalorder %v354, %v2359
        %vm2395 = vcmp.eq.s32.totalorder %v355, %v2359
        %vm2396 = vcmp.eq.s32.totalorder %v356, %v2359
        %vm2397 = vcmp.eq.s32.totalorder %v357, %v2359
        %vm2398 = vcmp.eq.s32.totalorder %v358, %v2359
        %vm2399 = vcmp.eq.s32.totalorder %v359, %v2359
        %vm2400 = vcmp.eq.s32.totalorder %v360, %v2359
        %vm2401 = vcmp.eq.s32.totalorder %v361, %v2359
        %vm2402 = vcmp.eq.s32.totalorder %v362, %v2359
        %vm2403 = vcmp.eq.s32.totalorder %v363, %v2359
        %vm2404 = vcmp.eq.s32.totalorder %v364, %v2359
        %vm2405 = vcmp.eq.s32.totalorder %v365, %v2359
        %vm2406 = vcmp.eq.s32.totalorder %v366, %v2359
        %vm2407 = vcmp.eq.s32.totalorder %v367, %v2359
        %vm2408 = vcmp.eq.s32.totalorder %v368, %v2359
        %vm2409 = vcmp.eq.s32.totalorder %v369, %v2359
        %vm2410 = vcmp.eq.s32.totalorder %v370, %v2359
        %vm2411 = vcmp.eq.s32.totalorder %v371, %v2359
        %vm2412 = vcmp.eq.s32.totalorder %v372, %v2359
        %vm2413 = vcmp.eq.s32.totalorder %v373, %v2359
        %vm2414 = vcmp.eq.s32.totalorder %v374, %v2359
        %vm2415 = vcmp.eq.s32.totalorder %v375, %v2359
        %vm2416 = vcmp.eq.s32.totalorder %v376, %v2359
        %vm2417 = vcmp.eq.s32.totalorder %v377, %v2359
        %vm2418 = vcmp.eq.s32.totalorder %v378, %v2359
        %vm2419 = vcmp.eq.s32.totalorder %v379, %v2359
        %vm2420 = vcmp.eq.s32.totalorder %v380, %v2359
        %vm2421 = vcmp.eq.s32.totalorder %v381, %v2359
        %vm2422 = vcmp.eq.s32.totalorder %v382, %v2359
        %vm2423 = vcmp.eq.s32.totalorder %v383, %v2359
        %vm2424 = vcmp.eq.s32.totalorder %v384, %v2359
        %vm2425 = vcmp.eq.s32.totalorder %v385, %v2359
        %vm2426 = vcmp.eq.s32.totalorder %v386, %v2359
        %vm2427 = vcmp.eq.s32.totalorder %v387, %v2359
        %vm2428 = vcmp.eq.s32.totalorder %v388, %v2359
        %vm2429 = vcmp.eq.s32.totalorder %v389, %v2359
        %vm2430 = vcmp.eq.s32.totalorder %v390, %v2359
        %vm2431 = vcmp.eq.s32.totalorder %v391, %v2359
        %vm2432 = vcmp.eq.s32.totalorder %v392, %v2359
        %vm2433 = vcmp.eq.s32.totalorder %v393, %v2359
        %vm2434 = vcmp.eq.s32.totalorder %v394, %v2359
        %vm2435 = vcmp.eq.s32.totalorder %v395, %v2359
        %vm2436 = vcmp.eq.s32.totalorder %v396, %v2359
        %vm2437 = vcmp.eq.s32.totalorder %v397, %v2359
        %vm2438 = vcmp.eq.s32.totalorder %v398, %v2359
        %vm2439 = vcmp.eq.s32.totalorder %v399, %v2359
        %vm2440 = vcmp.eq.s32.totalorder %v400, %v2359
        %vm2441 = vcmp.eq.s32.totalorder %v401, %v2359
        %vm2442 = vcmp.eq.s32.totalorder %v402, %v2359
        %vm2443 = vcmp.eq.s32.totalorder %v403, %v2359
        %vm2444 = vcmp.eq.s32.totalorder %v404, %v2359
        %vm2445 = vcmp.eq.s32.totalorder %v405, %v2359
        %vm2446 = vcmp.eq.s32.totalorder %v406, %v2359
        %vm2447 = vcmp.eq.s32.totalorder %v407, %v2359
        %vm2448 = vcmp.eq.s32.totalorder %v408, %v2359
        %vm2449 = vcmp.eq.s32.totalorder %v409, %v2359
        %vm2450 = vcmp.eq.s32.totalorder %v410, %v2359
        %vm2451 = vcmp.eq.s32.totalorder %v411, %v2359
        %vm2452 = vcmp.eq.s32.totalorder %v412, %v2359
        %vm2453 = vcmp.eq.s32.totalorder %v413, %v2359
        %vm2454 = vcmp.eq.s32.totalorder %v414, %v2359
        %vm2455 = vcmp.eq.s32.totalorder %v415, %v2359
        %v2456 = vsel %vm2360, 1, 0
        %v2457 = vsel %vm2361, 1, 0
        %v2458 = vsel %vm2362, 1, 0
        %v2459 = vsel %vm2363, 1, 0
        %v2460 = vsel %vm2364, 1, 0
        %v2461 = vsel %vm2365, 1, 0
        %v2462 = vsel %vm2366, 1, 0
        %v2463 = vsel %vm2367, 1, 0
        %v2464 = vsel %vm2368, 1, 0
        %v2465 = vsel %vm2369, 1, 0
        %v2466 = vsel %vm2370, 1, 0
        %v2467 = vsel %vm2371, 1, 0
        %v2468 = vsel %vm2372, 1, 0
        %v2469 = vsel %vm2373, 1, 0
        %v2470 = vsel %vm2374, 1, 0
        %v2471 = vsel %vm2375, 1, 0
        %v2472 = vsel %vm2376, 1, 0
        %v2473 = vsel %vm2377, 1, 0
        %v2474 = vsel %vm2378, 1, 0
        %v2475 = vsel %vm2379, 1, 0
        %v2476 = vsel %vm2380, 1, 0
        %v2477 = vsel %vm2381, 1, 0
        %v2478 = vsel %vm2382, 1, 0
        %v2479 = vsel %vm2383, 1, 0
        %v2480 = vsel %vm2384, 1, 0
        %v2481 = vsel %vm2385, 1, 0
        %v2482 = vsel %vm2386, 1, 0
        %v2483 = vsel %vm2387, 1, 0
        %v2484 = vsel %vm2388, 1, 0
        %v2485 = vsel %vm2389, 1, 0
        %v2486 = vsel %vm2390, 1, 0
        %v2487 = vsel %vm2391, 1, 0
        %v2488 = vsel %vm2392, 1, 0
        %v2489 = vsel %vm2393, 1, 0
        %v2490 = vsel %vm2394, 1, 0
        %v2491 = vsel %vm2395, 1, 0
        %v2492 = vsel %vm2396, 1, 0
        %v2493 = vsel %vm2397, 1, 0
        %v2494 = vsel %vm2398, 1, 0
        %v2495 = vsel %vm2399, 1, 0
        %v2496 = vsel %vm2400, 1, 0
        %v2497 = vsel %vm2401, 1, 0
        %v2498 = vsel %vm2402, 1, 0
        %v2499 = vsel %vm2403, 1, 0
        %v2500 = vsel %vm2404, 1, 0
        %v2501 = vsel %vm2405, 1, 0
        %v2502 = vsel %vm2406, 1, 0
        %v2503 = vsel %vm2407, 1, 0
        %v2504 = vsel %vm2408, 1, 0
        %v2505 = vsel %vm2409, 1, 0
        %v2506 = vsel %vm2410, 1, 0
        %v2507 = vsel %vm2411, 1, 0
        %v2508 = vsel %vm2412, 1, 0
        %v2509 = vsel %vm2413, 1, 0
        %v2510 = vsel %vm2414, 1, 0
        %v2511 = vsel %vm2415, 1, 0
        %v2512 = vsel %vm2416, 1, 0
        %v2513 = vsel %vm2417, 1, 0
        %v2514 = vsel %vm2418, 1, 0
        %v2515 = vsel %vm2419, 1, 0
        %v2516 = vsel %vm2420, 1, 0
        %v2517 = vsel %vm2421, 1, 0
        %v2518 = vsel %vm2422, 1, 0
        %v2519 = vsel %vm2423, 1, 0
        %v2520 = vsel %vm2424, 1, 0
        %v2521 = vsel %vm2425, 1, 0
        %v2522 = vsel %vm2426, 1, 0
        %v2523 = vsel %vm2427, 1, 0
        %v2524 = vsel %vm2428, 1, 0
        %v2525 = vsel %vm2429, 1, 0
        %v2526 = vsel %vm2430, 1, 0
        %v2527 = vsel %vm2431, 1, 0
        %v2528 = vsel %vm2432, 1, 0
        %v2529 = vsel %vm2433, 1, 0
        %v2530 = vsel %vm2434, 1, 0
        %v2531 = vsel %vm2435, 1, 0
        %v2532 = vsel %vm2436, 1, 0
        %v2533 = vsel %vm2437, 1, 0
        %v2534 = vsel %vm2438, 1, 0
        %v2535 = vsel %vm2439, 1, 0
        %v2536 = vsel %vm2440, 1, 0
        %v2537 = vsel %vm2441, 1, 0
        %v2538 = vsel %vm2442, 1, 0
        %v2539 = vsel %vm2443, 1, 0
        %v2540 = vsel %vm2444, 1, 0
        %v2541 = vsel %vm2445, 1, 0
        %v2542 = vsel %vm2446, 1, 0
        %v2543 = vsel %vm2447, 1, 0
        %v2544 = vsel %vm2448, 1, 0
        %v2545 = vsel %vm2449, 1, 0
        %v2546 = vsel %vm2450, 1, 0
        %v2547 = vsel %vm2451, 1, 0
        %v2548 = vsel %vm2452, 1, 0
        %v2549 = vsel %vm2453, 1, 0
        %v2550 = vsel %vm2454, 1, 0
        %v2551 = vsel %vm2455, 1, 0
        %v2552 = vcvt.s32.f32 %v2456
        %v2553 = vcvt.s32.f32 %v2457
        %v2554 = vcvt.s32.f32 %v2458
        %v2555 = vcvt.s32.f32 %v2459
        %v2556 = vcvt.s32.f32 %v2460
        %v2557 = vcvt.s32.f32 %v2461
        %v2558 = vcvt.s32.f32 %v2462
        %v2559 = vcvt.s32.f32 %v2463
        %v2560 = vcvt.s32.f32 %v2464
        %v2561 = vcvt.s32.f32 %v2465
        %v2562 = vcvt.s32.f32 %v2466
        %v2563 = vcvt.s32.f32 %v2467
        %v2564 = vcvt.s32.f32 %v2468
        %v2565 = vcvt.s32.f32 %v2469
        %v2566 = vcvt.s32.f32 %v2470
        %v2567 = vcvt.s32.f32 %v2471
        %v2568 = vcvt.s32.f32 %v2472
        %v2569 = vcvt.s32.f32 %v2473
        %v2570 = vcvt.s32.f32 %v2474
        %v2571 = vcvt.s32.f32 %v2475
        %v2572 = vcvt.s32.f32 %v2476
        %v2573 = vcvt.s32.f32 %v2477
        %v2574 = vcvt.s32.f32 %v2478
        %v2575 = vcvt.s32.f32 %v2479
        %v2576 = vcvt.s32.f32 %v2480
        %v2577 = vcvt.s32.f32 %v2481
        %v2578 = vcvt.s32.f32 %v2482
        %v2579 = vcvt.s32.f32 %v2483
        %v2580 = vcvt.s32.f32 %v2484
        %v2581 = vcvt.s32.f32 %v2485
        %v2582 = vcvt.s32.f32 %v2486
        %v2583 = vcvt.s32.f32 %v2487
        %v2584 = vcvt.s32.f32 %v2488
        %v2585 = vcvt.s32.f32 %v2489
        %v2586 = vcvt.s32.f32 %v2490
        %v2587 = vcvt.s32.f32 %v2491
        %v2588 = vcvt.s32.f32 %v2492
        %v2589 = vcvt.s32.f32 %v2493
        %v2590 = vcvt.s32.f32 %v2494
        %v2591 = vcvt.s32.f32 %v2495
        %v2592 = vcvt.s32.f32 %v2496
        %v2593 = vcvt.s32.f32 %v2497
        %v2594 = vcvt.s32.f32 %v2498
        %v2595 = vcvt.s32.f32 %v2499
        %v2596 = vcvt.s32.f32 %v2500
        %v2597 = vcvt.s32.f32 %v2501
        %v2598 = vcvt.s32.f32 %v2502
        %v2599 = vcvt.s32.f32 %v2503
        %v2600 = vcvt.s32.f32 %v2504
        %v2601 = vcvt.s32.f32 %v2505
        %v2602 = vcvt.s32.f32 %v2506
        %v2603 = vcvt.s32.f32 %v2507
        %v2604 = vcvt.s32.f32 %v2508
        %v2605 = vcvt.s32.f32 %v2509
        %v2606 = vcvt.s32.f32 %v2510
        %v2607 = vcvt.s32.f32 %v2511
        %v2608 = vcvt.s32.f32 %v2512
        %v2609 = vcvt.s32.f32 %v2513
        %v2610 = vcvt.s32.f32 %v2514
        %v2611 = vcvt.s32.f32 %v2515
        %v2612 = vcvt.s32.f32 %v2516
        %v2613 = vcvt.s32.f32 %v2517
        %v2614 = vcvt.s32.f32 %v2518
        %v2615 = vcvt.s32.f32 %v2519
        %v2616 = vcvt.s32.f32 %v2520
        %v2617 = vcvt.s32.f32 %v2521
        %v2618 = vcvt.s32.f32 %v2522
        %v2619 = vcvt.s32.f32 %v2523
        %v2620 = vcvt.s32.f32 %v2524
        %v2621 = vcvt.s32.f32 %v2525
        %v2622 = vcvt.s32.f32 %v2526
        %v2623 = vcvt.s32.f32 %v2527
        %v2624 = vcvt.s32.f32 %v2528
        %v2625 = vcvt.s32.f32 %v2529
        %v2626 = vcvt.s32.f32 %v2530
        %v2627 = vcvt.s32.f32 %v2531
        %v2628 = vcvt.s32.f32 %v2532
        %v2629 = vcvt.s32.f32 %v2533
        %v2630 = vcvt.s32.f32 %v2534
        %v2631 = vcvt.s32.f32 %v2535
        %v2632 = vcvt.s32.f32 %v2536
        %v2633 = vcvt.s32.f32 %v2537
        %v2634 = vcvt.s32.f32 %v2538
        %v2635 = vcvt.s32.f32 %v2539
        %v2636 = vcvt.s32.f32 %v2540
        %v2637 = vcvt.s32.f32 %v2541
        %v2638 = vcvt.s32.f32 %v2542
        %v2639 = vcvt.s32.f32 %v2543
        %v2640 = vcvt.s32.f32 %v2544
        %v2641 = vcvt.s32.f32 %v2545
        %v2642 = vcvt.s32.f32 %v2546
        %v2643 = vcvt.s32.f32 %v2547
        %v2644 = vcvt.s32.f32 %v2548
        %v2645 = vcvt.s32.f32 %v2549
        %v2646 = vcvt.s32.f32 %v2550
        %v2647 = vcvt.s32.f32 %v2551
        %v2648 = vadd.f32 %v2260, %v2552
        %v2649 = vadd.f32 %v2261, %v2553
        %v2650 = vadd.f32 %v2262, %v2554
        %v2651 = vadd.f32 %v2263, %v2555
        %v2652 = vadd.f32 %v2264, %v2556
        %v2653 = vadd.f32 %v2265, %v2557
        %v2654 = vadd.f32 %v2266, %v2558
        %v2655 = vadd.f32 %v2267, %v2559
        %v2656 = vadd.f32 %v2268, %v2560
        %v2657 = vadd.f32 %v2269, %v2561
        %v2658 = vadd.f32 %v2270, %v2562
        %v2659 = vadd.f32 %v2271, %v2563
        %v2660 = vadd.f32 %v2272, %v2564
        %v2661 = vadd.f32 %v2273, %v2565
        %v2662 = vadd.f32 %v2274, %v2566
        %v2663 = vadd.f32 %v2275, %v2567
        %v2664 = vadd.f32 %v2276, %v2568
        %v2665 = vadd.f32 %v2277, %v2569
        %v2666 = vadd.f32 %v2278, %v2570
        %v2667 = vadd.f32 %v2279, %v2571
        %v2668 = vadd.f32 %v2280, %v2572
        %v2669 = vadd.f32 %v2281, %v2573
        %v2670 = vadd.f32 %v2282, %v2574
        %v2671 = vadd.f32 %v2283, %v2575
        %v2672 = vadd.f32 %v2284, %v2576
        %v2673 = vadd.f32 %v2285, %v2577
        %v2674 = vadd.f32 %v2286, %v2578
        %v2675 = vadd.f32 %v2287, %v2579
        %v2676 = vadd.f32 %v2288, %v2580
        %v2677 = vadd.f32 %v2289, %v2581
        %v2678 = vadd.f32 %v2290, %v2582
        %v2679 = vadd.f32 %v2291, %v2583
        %v2680 = vadd.f32 %v2292, %v2584
        %v2681 = vadd.f32 %v2293, %v2585
        %v2682 = vadd.f32 %v2294, %v2586
        %v2683 = vadd.f32 %v2295, %v2587
        %v2684 = vadd.f32 %v2296, %v2588
        %v2685 = vadd.f32 %v2297, %v2589
        %v2686 = vadd.f32 %v2298, %v2590
        %v2687 = vadd.f32 %v2299, %v2591
        %v2688 = vadd.f32 %v2300, %v2592
        %v2689 = vadd.f32 %v2301, %v2593
        %v2690 = vadd.f32 %v2302, %v2594
        %v2691 = vadd.f32 %v2303, %v2595
        %v2692 = vadd.f32 %v2304, %v2596
        %v2693 = vadd.f32 %v2305, %v2597
        %v2694 = vadd.f32 %v2306, %v2598
        %v2695 = vadd.f32 %v2307, %v2599
        %v2696 = vadd.f32 %v2308, %v2600
        %v2697 = vadd.f32 %v2309, %v2601
        %v2698 = vadd.f32 %v2310, %v2602
        %v2699 = vadd.f32 %v2311, %v2603
        %v2700 = vadd.f32 %v2312, %v2604
        %v2701 = vadd.f32 %v2313, %v2605
        %v2702 = vadd.f32 %v2314, %v2606
        %v2703 = vadd.f32 %v2315, %v2607
        %v2704 = vadd.f32 %v2316, %v2608
        %v2705 = vadd.f32 %v2317, %v2609
        %v2706 = vadd.f32 %v2318, %v2610
        %v2707 = vadd.f32 %v2319, %v2611
        %v2708 = vadd.f32 %v2320, %v2612
        %v2709 = vadd.f32 %v2321, %v2613
        %v2710 = vadd.f32 %v2322, %v2614
        %v2711 = vadd.f32 %v2323, %v2615
        %v2712 = vadd.f32 %v2324, %v2616
        %v2713 = vadd.f32 %v2325, %v2617
        %v2714 = vadd.f32 %v2326, %v2618
        %v2715 = vadd.f32 %v2327, %v2619
        %v2716 = vadd.f32 %v2328, %v2620
        %v2717 = vadd.f32 %v2329, %v2621
        %v2718 = vadd.f32 %v2330, %v2622
        %v2719 = vadd.f32 %v2331, %v2623
        %v2720 = vadd.f32 %v2332, %v2624
        %v2721 = vadd.f32 %v2333, %v2625
        %v2722 = vadd.f32 %v2334, %v2626
        %v2723 = vadd.f32 %v2335, %v2627
        %v2724 = vadd.f32 %v2336, %v2628
        %v2725 = vadd.f32 %v2337, %v2629
        %v2726 = vadd.f32 %v2338, %v2630
        %v2727 = vadd.f32 %v2339, %v2631
        %v2728 = vadd.f32 %v2340, %v2632
        %v2729 = vadd.f32 %v2341, %v2633
        %v2730 = vadd.f32 %v2342, %v2634
        %v2731 = vadd.f32 %v2343, %v2635
        %v2732 = vadd.f32 %v2344, %v2636
        %v2733 = vadd.f32 %v2345, %v2637
        %v2734 = vadd.f32 %v2346, %v2638
        %v2735 = vadd.f32 %v2347, %v2639
        %v2736 = vadd.f32 %v2348, %v2640
        %v2737 = vadd.f32 %v2349, %v2641
        %v2738 = vadd.f32 %v2350, %v2642
        %v2739 = vadd.f32 %v2351, %v2643
        %v2740 = vadd.f32 %v2352, %v2644
        %v2741 = vadd.f32 %v2353, %v2645
        %v2742 = vadd.f32 %v2354, %v2646
        %v2743 = vadd.f32 %v2355, %v2647
        %v2744 = vlaneseq
        %v2745 = vshrl.u32 %v2744, 7
        %v2746 = vsub.s32 6, %v2745
        %v2747 = vrot.slane %v318, %v2746
        %vm2748 = vcmp.eq.s32.totalorder %v320, %v2747
        %vm2749 = vcmp.eq.s32.totalorder %v321, %v2747
        %vm2750 = vcmp.eq.s32.totalorder %v322, %v2747
        %vm2751 = vcmp.eq.s32.totalorder %v323, %v2747
        %vm2752 = vcmp.eq.s32.totalorder %v324, %v2747
        %vm2753 = vcmp.eq.s32.totalorder %v325, %v2747
        %vm2754 = vcmp.eq.s32.totalorder %v326, %v2747
        %vm2755 = vcmp.eq.s32.totalorder %v327, %v2747
        %vm2756 = vcmp.eq.s32.totalorder %v328, %v2747
        %vm2757 = vcmp.eq.s32.totalorder %v329, %v2747
        %vm2758 = vcmp.eq.s32.totalorder %v330, %v2747
        %vm2759 = vcmp.eq.s32.totalorder %v331, %v2747
        %vm2760 = vcmp.eq.s32.totalorder %v332, %v2747
        %vm2761 = vcmp.eq.s32.totalorder %v333, %v2747
        %vm2762 = vcmp.eq.s32.totalorder %v334, %v2747
        %vm2763 = vcmp.eq.s32.totalorder %v335, %v2747
        %vm2764 = vcmp.eq.s32.totalorder %v336, %v2747
        %vm2765 = vcmp.eq.s32.totalorder %v337, %v2747
        %vm2766 = vcmp.eq.s32.totalorder %v338, %v2747
        %vm2767 = vcmp.eq.s32.totalorder %v339, %v2747
        %vm2768 = vcmp.eq.s32.totalorder %v340, %v2747
        %vm2769 = vcmp.eq.s32.totalorder %v341, %v2747
        %vm2770 = vcmp.eq.s32.totalorder %v342, %v2747
        %vm2771 = vcmp.eq.s32.totalorder %v343, %v2747
        %vm2772 = vcmp.eq.s32.totalorder %v344, %v2747
        %vm2773 = vcmp.eq.s32.totalorder %v345, %v2747
        %vm2774 = vcmp.eq.s32.totalorder %v346, %v2747
        %vm2775 = vcmp.eq.s32.totalorder %v347, %v2747
        %vm2776 = vcmp.eq.s32.totalorder %v348, %v2747
        %vm2777 = vcmp.eq.s32.totalorder %v349, %v2747
        %vm2778 = vcmp.eq.s32.totalorder %v350, %v2747
        %vm2779 = vcmp.eq.s32.totalorder %v351, %v2747
        %vm2780 = vcmp.eq.s32.totalorder %v352, %v2747
        %vm2781 = vcmp.eq.s32.totalorder %v353, %v2747
        %vm2782 = vcmp.eq.s32.totalorder %v354, %v2747
        %vm2783 = vcmp.eq.s32.totalorder %v355, %v2747
        %vm2784 = vcmp.eq.s32.totalorder %v356, %v2747
        %vm2785 = vcmp.eq.s32.totalorder %v357, %v2747
        %vm2786 = vcmp.eq.s32.totalorder %v358, %v2747
        %vm2787 = vcmp.eq.s32.totalorder %v359, %v2747
        %vm2788 = vcmp.eq.s32.totalorder %v360, %v2747
        %vm2789 = vcmp.eq.s32.totalorder %v361, %v2747
        %vm2790 = vcmp.eq.s32.totalorder %v362, %v2747
        %vm2791 = vcmp.eq.s32.totalorder %v363, %v2747
        %vm2792 = vcmp.eq.s32.totalorder %v364, %v2747
        %vm2793 = vcmp.eq.s32.totalorder %v365, %v2747
        %vm2794 = vcmp.eq.s32.totalorder %v366, %v2747
        %vm2795 = vcmp.eq.s32.totalorder %v367, %v2747
        %vm2796 = vcmp.eq.s32.totalorder %v368, %v2747
        %vm2797 = vcmp.eq.s32.totalorder %v369, %v2747
        %vm2798 = vcmp.eq.s32.totalorder %v370, %v2747
        %vm2799 = vcmp.eq.s32.totalorder %v371, %v2747
        %vm2800 = vcmp.eq.s32.totalorder %v372, %v2747
        %vm2801 = vcmp.eq.s32.totalorder %v373, %v2747
        %vm2802 = vcmp.eq.s32.totalorder %v374, %v2747
        %vm2803 = vcmp.eq.s32.totalorder %v375, %v2747
        %vm2804 = vcmp.eq.s32.totalorder %v376, %v2747
        %vm2805 = vcmp.eq.s32.totalorder %v377, %v2747
        %vm2806 = vcmp.eq.s32.totalorder %v378, %v2747
        %vm2807 = vcmp.eq.s32.totalorder %v379, %v2747
        %vm2808 = vcmp.eq.s32.totalorder %v380, %v2747
        %vm2809 = vcmp.eq.s32.totalorder %v381, %v2747
        %vm2810 = vcmp.eq.s32.totalorder %v382, %v2747
        %vm2811 = vcmp.eq.s32.totalorder %v383, %v2747
        %vm2812 = vcmp.eq.s32.totalorder %v384, %v2747
        %vm2813 = vcmp.eq.s32.totalorder %v385, %v2747
        %vm2814 = vcmp.eq.s32.totalorder %v386, %v2747
        %vm2815 = vcmp.eq.s32.totalorder %v387, %v2747
        %vm2816 = vcmp.eq.s32.totalorder %v388, %v2747
        %vm2817 = vcmp.eq.s32.totalorder %v389, %v2747
        %vm2818 = vcmp.eq.s32.totalorder %v390, %v2747
        %vm2819 = vcmp.eq.s32.totalorder %v391, %v2747
        %vm2820 = vcmp.eq.s32.totalorder %v392, %v2747
        %vm2821 = vcmp.eq.s32.totalorder %v393, %v2747
        %vm2822 = vcmp.eq.s32.totalorder %v394, %v2747
        %vm2823 = vcmp.eq.s32.totalorder %v395, %v2747
        %vm2824 = vcmp.eq.s32.totalorder %v396, %v2747
        %vm2825 = vcmp.eq.s32.totalorder %v397, %v2747
        %vm2826 = vcmp.eq.s32.totalorder %v398, %v2747
        %vm2827 = vcmp.eq.s32.totalorder %v399, %v2747
        %vm2828 = vcmp.eq.s32.totalorder %v400, %v2747
        %vm2829 = vcmp.eq.s32.totalorder %v401, %v2747
        %vm2830 = vcmp.eq.s32.totalorder %v402, %v2747
        %vm2831 = vcmp.eq.s32.totalorder %v403, %v2747
        %vm2832 = vcmp.eq.s32.totalorder %v404, %v2747
        %vm2833 = vcmp.eq.s32.totalorder %v405, %v2747
        %vm2834 = vcmp.eq.s32.totalorder %v406, %v2747
        %vm2835 = vcmp.eq.s32.totalorder %v407, %v2747
        %vm2836 = vcmp.eq.s32.totalorder %v408, %v2747
        %vm2837 = vcmp.eq.s32.totalorder %v409, %v2747
        %vm2838 = vcmp.eq.s32.totalorder %v410, %v2747
        %vm2839 = vcmp.eq.s32.totalorder %v411, %v2747
        %vm2840 = vcmp.eq.s32.totalorder %v412, %v2747
        %vm2841 = vcmp.eq.s32.totalorder %v413, %v2747
        %vm2842 = vcmp.eq.s32.totalorder %v414, %v2747
        %vm2843 = vcmp.eq.s32.totalorder %v415, %v2747
        %v2844 = vsel %vm2748, 1, 0
        %v2845 = vsel %vm2749, 1, 0
        %v2846 = vsel %vm2750, 1, 0
        %v2847 = vsel %vm2751, 1, 0
        %v2848 = vsel %vm2752, 1, 0
        %v2849 = vsel %vm2753, 1, 0
        %v2850 = vsel %vm2754, 1, 0
        %v2851 = vsel %vm2755, 1, 0
        %v2852 = vsel %vm2756, 1, 0
        %v2853 = vsel %vm2757, 1, 0
        %v2854 = vsel %vm2758, 1, 0
        %v2855 = vsel %vm2759, 1, 0
        %v2856 = vsel %vm2760, 1, 0
        %v2857 = vsel %vm2761, 1, 0
        %v2858 = vsel %vm2762, 1, 0
        %v2859 = vsel %vm2763, 1, 0
        %v2860 = vsel %vm2764, 1, 0
        %v2861 = vsel %vm2765, 1, 0
        %v2862 = vsel %vm2766, 1, 0
        %v2863 = vsel %vm2767, 1, 0
        %v2864 = vsel %vm2768, 1, 0
        %v2865 = vsel %vm2769, 1, 0
        %v2866 = vsel %vm2770, 1, 0
        %v2867 = vsel %vm2771, 1, 0
        %v2868 = vsel %vm2772, 1, 0
        %v2869 = vsel %vm2773, 1, 0
        %v2870 = vsel %vm2774, 1, 0
        %v2871 = vsel %vm2775, 1, 0
        %v2872 = vsel %vm2776, 1, 0
        %v2873 = vsel %vm2777, 1, 0
        %v2874 = vsel %vm2778, 1, 0
        %v2875 = vsel %vm2779, 1, 0
        %v2876 = vsel %vm2780, 1, 0
        %v2877 = vsel %vm2781, 1, 0
        %v2878 = vsel %vm2782, 1, 0
        %v2879 = vsel %vm2783, 1, 0
        %v2880 = vsel %vm2784, 1, 0
        %v2881 = vsel %vm2785, 1, 0
        %v2882 = vsel %vm2786, 1, 0
        %v2883 = vsel %vm2787, 1, 0
        %v2884 = vsel %vm2788, 1, 0
        %v2885 = vsel %vm2789, 1, 0
        %v2886 = vsel %vm2790, 1, 0
        %v2887 = vsel %vm2791, 1, 0
        %v2888 = vsel %vm2792, 1, 0
        %v2889 = vsel %vm2793, 1, 0
        %v2890 = vsel %vm2794, 1, 0
        %v2891 = vsel %vm2795, 1, 0
        %v2892 = vsel %vm2796, 1, 0
        %v2893 = vsel %vm2797, 1, 0
        %v2894 = vsel %vm2798, 1, 0
        %v2895 = vsel %vm2799, 1, 0
        %v2896 = vsel %vm2800, 1, 0
        %v2897 = vsel %vm2801, 1, 0
        %v2898 = vsel %vm2802, 1, 0
        %v2899 = vsel %vm2803, 1, 0
        %v2900 = vsel %vm2804, 1, 0
        %v2901 = vsel %vm2805, 1, 0
        %v2902 = vsel %vm2806, 1, 0
        %v2903 = vsel %vm2807, 1, 0
        %v2904 = vsel %vm2808, 1, 0
        %v2905 = vsel %vm2809, 1, 0
        %v2906 = vsel %vm2810, 1, 0
        %v2907 = vsel %vm2811, 1, 0
        %v2908 = vsel %vm2812, 1, 0
        %v2909 = vsel %vm2813, 1, 0
        %v2910 = vsel %vm2814, 1, 0
        %v2911 = vsel %vm2815, 1, 0
        %v2912 = vsel %vm2816, 1, 0
        %v2913 = vsel %vm2817, 1, 0
        %v2914 = vsel %vm2818, 1, 0
        %v2915 = vsel %vm2819, 1, 0
        %v2916 = vsel %vm2820, 1, 0
        %v2917 = vsel %vm2821, 1, 0
        %v2918 = vsel %vm2822, 1, 0
        %v2919 = vsel %vm2823, 1, 0
        %v2920 = vsel %vm2824, 1, 0
        %v2921 = vsel %vm2825, 1, 0
        %v2922 = vsel %vm2826, 1, 0
        %v2923 = vsel %vm2827, 1, 0
        %v2924 = vsel %vm2828, 1, 0
        %v2925 = vsel %vm2829, 1, 0
        %v2926 = vsel %vm2830, 1, 0
        %v2927 = vsel %vm2831, 1, 0
        %v2928 = vsel %vm2832, 1, 0
        %v2929 = vsel %vm2833, 1, 0
        %v2930 = vsel %vm2834, 1, 0
        %v2931 = vsel %vm2835, 1, 0
        %v2932 = vsel %vm2836, 1, 0
        %v2933 = vsel %vm2837, 1, 0
        %v2934 = vsel %vm2838, 1, 0
        %v2935 = vsel %vm2839, 1, 0
        %v2936 = vsel %vm2840, 1, 0
        %v2937 = vsel %vm2841, 1, 0
        %v2938 = vsel %vm2842, 1, 0
        %v2939 = vsel %vm2843, 1, 0
        %v2940 = vcvt.s32.f32 %v2844
        %v2941 = vcvt.s32.f32 %v2845
        %v2942 = vcvt.s32.f32 %v2846
        %v2943 = vcvt.s32.f32 %v2847
        %v2944 = vcvt.s32.f32 %v2848
        %v2945 = vcvt.s32.f32 %v2849
        %v2946 = vcvt.s32.f32 %v2850
        %v2947 = vcvt.s32.f32 %v2851
        %v2948 = vcvt.s32.f32 %v2852
        %v2949 = vcvt.s32.f32 %v2853
        %v2950 = vcvt.s32.f32 %v2854
        %v2951 = vcvt.s32.f32 %v2855
        %v2952 = vcvt.s32.f32 %v2856
        %v2953 = vcvt.s32.f32 %v2857
        %v2954 = vcvt.s32.f32 %v2858
        %v2955 = vcvt.s32.f32 %v2859
        %v2956 = vcvt.s32.f32 %v2860
        %v2957 = vcvt.s32.f32 %v2861
        %v2958 = vcvt.s32.f32 %v2862
        %v2959 = vcvt.s32.f32 %v2863
        %v2960 = vcvt.s32.f32 %v2864
        %v2961 = vcvt.s32.f32 %v2865
        %v2962 = vcvt.s32.f32 %v2866
        %v2963 = vcvt.s32.f32 %v2867
        %v2964 = vcvt.s32.f32 %v2868
        %v2965 = vcvt.s32.f32 %v2869
        %v2966 = vcvt.s32.f32 %v2870
        %v2967 = vcvt.s32.f32 %v2871
        %v2968 = vcvt.s32.f32 %v2872
        %v2969 = vcvt.s32.f32 %v2873
        %v2970 = vcvt.s32.f32 %v2874
        %v2971 = vcvt.s32.f32 %v2875
        %v2972 = vcvt.s32.f32 %v2876
        %v2973 = vcvt.s32.f32 %v2877
        %v2974 = vcvt.s32.f32 %v2878
        %v2975 = vcvt.s32.f32 %v2879
        %v2976 = vcvt.s32.f32 %v2880
        %v2977 = vcvt.s32.f32 %v2881
        %v2978 = vcvt.s32.f32 %v2882
        %v2979 = vcvt.s32.f32 %v2883
        %v2980 = vcvt.s32.f32 %v2884
        %v2981 = vcvt.s32.f32 %v2885
        %v2982 = vcvt.s32.f32 %v2886
        %v2983 = vcvt.s32.f32 %v2887
        %v2984 = vcvt.s32.f32 %v2888
        %v2985 = vcvt.s32.f32 %v2889
        %v2986 = vcvt.s32.f32 %v2890
        %v2987 = vcvt.s32.f32 %v2891
        %v2988 = vcvt.s32.f32 %v2892
        %v2989 = vcvt.s32.f32 %v2893
        %v2990 = vcvt.s32.f32 %v2894
        %v2991 = vcvt.s32.f32 %v2895
        %v2992 = vcvt.s32.f32 %v2896
        %v2993 = vcvt.s32.f32 %v2897
        %v2994 = vcvt.s32.f32 %v2898
        %v2995 = vcvt.s32.f32 %v2899
        %v2996 = vcvt.s32.f32 %v2900
        %v2997 = vcvt.s32.f32 %v2901
        %v2998 = vcvt.s32.f32 %v2902
        %v2999 = vcvt.s32.f32 %v2903
        %v3000 = vcvt.s32.f32 %v2904
        %v3001 = vcvt.s32.f32 %v2905
        %v3002 = vcvt.s32.f32 %v2906
        %v3003 = vcvt.s32.f32 %v2907
        %v3004 = vcvt.s32.f32 %v2908
        %v3005 = vcvt.s32.f32 %v2909
        %v3006 = vcvt.s32.f32 %v2910
        %v3007 = vcvt.s32.f32 %v2911
        %v3008 = vcvt.s32.f32 %v2912
        %v3009 = vcvt.s32.f32 %v2913
        %v3010 = vcvt.s32.f32 %v2914
        %v3011 = vcvt.s32.f32 %v2915
        %v3012 = vcvt.s32.f32 %v2916
        %v3013 = vcvt.s32.f32 %v2917
        %v3014 = vcvt.s32.f32 %v2918
        %v3015 = vcvt.s32.f32 %v2919
        %v3016 = vcvt.s32.f32 %v2920
        %v3017 = vcvt.s32.f32 %v2921
        %v3018 = vcvt.s32.f32 %v2922
        %v3019 = vcvt.s32.f32 %v2923
        %v3020 = vcvt.s32.f32 %v2924
        %v3021 = vcvt.s32.f32 %v2925
        %v3022 = vcvt.s32.f32 %v2926
        %v3023 = vcvt.s32.f32 %v2927
        %v3024 = vcvt.s32.f32 %v2928
        %v3025 = vcvt.s32.f32 %v2929
        %v3026 = vcvt.s32.f32 %v2930
        %v3027 = vcvt.s32.f32 %v2931
        %v3028 = vcvt.s32.f32 %v2932
        %v3029 = vcvt.s32.f32 %v2933
        %v3030 = vcvt.s32.f32 %v2934
        %v3031 = vcvt.s32.f32 %v2935
        %v3032 = vcvt.s32.f32 %v2936
        %v3033 = vcvt.s32.f32 %v2937
        %v3034 = vcvt.s32.f32 %v2938
        %v3035 = vcvt.s32.f32 %v2939
        %v3036 = vadd.f32 %v2648, %v2940
        %v3037 = vadd.f32 %v2649, %v2941
        %v3038 = vadd.f32 %v2650, %v2942
        %v3039 = vadd.f32 %v2651, %v2943
        %v3040 = vadd.f32 %v2652, %v2944
        %v3041 = vadd.f32 %v2653, %v2945
        %v3042 = vadd.f32 %v2654, %v2946
        %v3043 = vadd.f32 %v2655, %v2947
        %v3044 = vadd.f32 %v2656, %v2948
        %v3045 = vadd.f32 %v2657, %v2949
        %v3046 = vadd.f32 %v2658, %v2950
        %v3047 = vadd.f32 %v2659, %v2951
        %v3048 = vadd.f32 %v2660, %v2952
        %v3049 = vadd.f32 %v2661, %v2953
        %v3050 = vadd.f32 %v2662, %v2954
        %v3051 = vadd.f32 %v2663, %v2955
        %v3052 = vadd.f32 %v2664, %v2956
        %v3053 = vadd.f32 %v2665, %v2957
        %v3054 = vadd.f32 %v2666, %v2958
        %v3055 = vadd.f32 %v2667, %v2959
        %v3056 = vadd.f32 %v2668, %v2960
        %v3057 = vadd.f32 %v2669, %v2961
        %v3058 = vadd.f32 %v2670, %v2962
        %v3059 = vadd.f32 %v2671, %v2963
        %v3060 = vadd.f32 %v2672, %v2964
        %v3061 = vadd.f32 %v2673, %v2965
        %v3062 = vadd.f32 %v2674, %v2966
        %v3063 = vadd.f32 %v2675, %v2967
        %v3064 = vadd.f32 %v2676, %v2968
        %v3065 = vadd.f32 %v2677, %v2969
        %v3066 = vadd.f32 %v2678, %v2970
        %v3067 = vadd.f32 %v2679, %v2971
        %v3068 = vadd.f32 %v2680, %v2972
        %v3069 = vadd.f32 %v2681, %v2973
        %v3070 = vadd.f32 %v2682, %v2974
        %v3071 = vadd.f32 %v2683, %v2975
        %v3072 = vadd.f32 %v2684, %v2976
        %v3073 = vadd.f32 %v2685, %v2977
        %v3074 = vadd.f32 %v2686, %v2978
        %v3075 = vadd.f32 %v2687, %v2979
        %v3076 = vadd.f32 %v2688, %v2980
        %v3077 = vadd.f32 %v2689, %v2981
        %v3078 = vadd.f32 %v2690, %v2982
        %v3079 = vadd.f32 %v2691, %v2983
        %v3080 = vadd.f32 %v2692, %v2984
        %v3081 = vadd.f32 %v2693, %v2985
        %v3082 = vadd.f32 %v2694, %v2986
        %v3083 = vadd.f32 %v2695, %v2987
        %v3084 = vadd.f32 %v2696, %v2988
        %v3085 = vadd.f32 %v2697, %v2989
        %v3086 = vadd.f32 %v2698, %v2990
        %v3087 = vadd.f32 %v2699, %v2991
        %v3088 = vadd.f32 %v2700, %v2992
        %v3089 = vadd.f32 %v2701, %v2993
        %v3090 = vadd.f32 %v2702, %v2994
        %v3091 = vadd.f32 %v2703, %v2995
        %v3092 = vadd.f32 %v2704, %v2996
        %v3093 = vadd.f32 %v2705, %v2997
        %v3094 = vadd.f32 %v2706, %v2998
        %v3095 = vadd.f32 %v2707, %v2999
        %v3096 = vadd.f32 %v2708, %v3000
        %v3097 = vadd.f32 %v2709, %v3001
        %v3098 = vadd.f32 %v2710, %v3002
        %v3099 = vadd.f32 %v2711, %v3003
        %v3100 = vadd.f32 %v2712, %v3004
        %v3101 = vadd.f32 %v2713, %v3005
        %v3102 = vadd.f32 %v2714, %v3006
        %v3103 = vadd.f32 %v2715, %v3007
        %v3104 = vadd.f32 %v2716, %v3008
        %v3105 = vadd.f32 %v2717, %v3009
        %v3106 = vadd.f32 %v2718, %v3010
        %v3107 = vadd.f32 %v2719, %v3011
        %v3108 = vadd.f32 %v2720, %v3012
        %v3109 = vadd.f32 %v2721, %v3013
        %v3110 = vadd.f32 %v2722, %v3014
        %v3111 = vadd.f32 %v2723, %v3015
        %v3112 = vadd.f32 %v2724, %v3016
        %v3113 = vadd.f32 %v2725, %v3017
        %v3114 = vadd.f32 %v2726, %v3018
        %v3115 = vadd.f32 %v2727, %v3019
        %v3116 = vadd.f32 %v2728, %v3020
        %v3117 = vadd.f32 %v2729, %v3021
        %v3118 = vadd.f32 %v2730, %v3022
        %v3119 = vadd.f32 %v2731, %v3023
        %v3120 = vadd.f32 %v2732, %v3024
        %v3121 = vadd.f32 %v2733, %v3025
        %v3122 = vadd.f32 %v2734, %v3026
        %v3123 = vadd.f32 %v2735, %v3027
        %v3124 = vadd.f32 %v2736, %v3028
        %v3125 = vadd.f32 %v2737, %v3029
        %v3126 = vadd.f32 %v2738, %v3030
        %v3127 = vadd.f32 %v2739, %v3031
        %v3128 = vadd.f32 %v2740, %v3032
        %v3129 = vadd.f32 %v2741, %v3033
        %v3130 = vadd.f32 %v2742, %v3034
        %v3131 = vadd.f32 %v2743, %v3035
        %v3132 = vlaneseq
        %v3133 = vshrl.u32 %v3132, 7
        %v3134 = vsub.s32 7, %v3133
        %v3135 = vrot.slane %v318, %v3134
        %vm3136 = vcmp.eq.s32.totalorder %v320, %v3135
        %vm3137 = vcmp.eq.s32.totalorder %v321, %v3135
        %vm3138 = vcmp.eq.s32.totalorder %v322, %v3135
        %vm3139 = vcmp.eq.s32.totalorder %v323, %v3135
        %vm3140 = vcmp.eq.s32.totalorder %v324, %v3135
        %vm3141 = vcmp.eq.s32.totalorder %v325, %v3135
        %vm3142 = vcmp.eq.s32.totalorder %v326, %v3135
        %vm3143 = vcmp.eq.s32.totalorder %v327, %v3135
        %vm3144 = vcmp.eq.s32.totalorder %v328, %v3135
        %vm3145 = vcmp.eq.s32.totalorder %v329, %v3135
        %vm3146 = vcmp.eq.s32.totalorder %v330, %v3135
        %vm3147 = vcmp.eq.s32.totalorder %v331, %v3135
        %vm3148 = vcmp.eq.s32.totalorder %v332, %v3135
        %vm3149 = vcmp.eq.s32.totalorder %v333, %v3135
        %vm3150 = vcmp.eq.s32.totalorder %v334, %v3135
        %vm3151 = vcmp.eq.s32.totalorder %v335, %v3135
        %vm3152 = vcmp.eq.s32.totalorder %v336, %v3135
        %vm3153 = vcmp.eq.s32.totalorder %v337, %v3135
        %vm3154 = vcmp.eq.s32.totalorder %v338, %v3135
        %vm3155 = vcmp.eq.s32.totalorder %v339, %v3135
        %vm3156 = vcmp.eq.s32.totalorder %v340, %v3135
        %vm3157 = vcmp.eq.s32.totalorder %v341, %v3135
        %vm3158 = vcmp.eq.s32.totalorder %v342, %v3135
        %vm3159 = vcmp.eq.s32.totalorder %v343, %v3135
        %vm3160 = vcmp.eq.s32.totalorder %v344, %v3135
        %vm3161 = vcmp.eq.s32.totalorder %v345, %v3135
        %vm3162 = vcmp.eq.s32.totalorder %v346, %v3135
        %vm3163 = vcmp.eq.s32.totalorder %v347, %v3135
        %vm3164 = vcmp.eq.s32.totalorder %v348, %v3135
        %vm3165 = vcmp.eq.s32.totalorder %v349, %v3135
        %vm3166 = vcmp.eq.s32.totalorder %v350, %v3135
        %vm3167 = vcmp.eq.s32.totalorder %v351, %v3135
        %vm3168 = vcmp.eq.s32.totalorder %v352, %v3135
        %vm3169 = vcmp.eq.s32.totalorder %v353, %v3135
        %vm3170 = vcmp.eq.s32.totalorder %v354, %v3135
        %vm3171 = vcmp.eq.s32.totalorder %v355, %v3135
        %vm3172 = vcmp.eq.s32.totalorder %v356, %v3135
        %vm3173 = vcmp.eq.s32.totalorder %v357, %v3135
        %vm3174 = vcmp.eq.s32.totalorder %v358, %v3135
        %vm3175 = vcmp.eq.s32.totalorder %v359, %v3135
        %vm3176 = vcmp.eq.s32.totalorder %v360, %v3135
        %vm3177 = vcmp.eq.s32.totalorder %v361, %v3135
        %vm3178 = vcmp.eq.s32.totalorder %v362, %v3135
        %vm3179 = vcmp.eq.s32.totalorder %v363, %v3135
        %vm3180 = vcmp.eq.s32.totalorder %v364, %v3135
        %vm3181 = vcmp.eq.s32.totalorder %v365, %v3135
        %vm3182 = vcmp.eq.s32.totalorder %v366, %v3135
        %vm3183 = vcmp.eq.s32.totalorder %v367, %v3135
        %vm3184 = vcmp.eq.s32.totalorder %v368, %v3135
        %vm3185 = vcmp.eq.s32.totalorder %v369, %v3135
        %vm3186 = vcmp.eq.s32.totalorder %v370, %v3135
        %vm3187 = vcmp.eq.s32.totalorder %v371, %v3135
        %vm3188 = vcmp.eq.s32.totalorder %v372, %v3135
        %vm3189 = vcmp.eq.s32.totalorder %v373, %v3135
        %vm3190 = vcmp.eq.s32.totalorder %v374, %v3135
        %vm3191 = vcmp.eq.s32.totalorder %v375, %v3135
        %vm3192 = vcmp.eq.s32.totalorder %v376, %v3135
        %vm3193 = vcmp.eq.s32.totalorder %v377, %v3135
        %vm3194 = vcmp.eq.s32.totalorder %v378, %v3135
        %vm3195 = vcmp.eq.s32.totalorder %v379, %v3135
        %vm3196 = vcmp.eq.s32.totalorder %v380, %v3135
        %vm3197 = vcmp.eq.s32.totalorder %v381, %v3135
        %vm3198 = vcmp.eq.s32.totalorder %v382, %v3135
        %vm3199 = vcmp.eq.s32.totalorder %v383, %v3135
        %vm3200 = vcmp.eq.s32.totalorder %v384, %v3135
        %vm3201 = vcmp.eq.s32.totalorder %v385, %v3135
        %vm3202 = vcmp.eq.s32.totalorder %v386, %v3135
        %vm3203 = vcmp.eq.s32.totalorder %v387, %v3135
        %vm3204 = vcmp.eq.s32.totalorder %v388, %v3135
        %vm3205 = vcmp.eq.s32.totalorder %v389, %v3135
        %vm3206 = vcmp.eq.s32.totalorder %v390, %v3135
        %vm3207 = vcmp.eq.s32.totalorder %v391, %v3135
        %vm3208 = vcmp.eq.s32.totalorder %v392, %v3135
        %vm3209 = vcmp.eq.s32.totalorder %v393, %v3135
        %vm3210 = vcmp.eq.s32.totalorder %v394, %v3135
        %vm3211 = vcmp.eq.s32.totalorder %v395, %v3135
        %vm3212 = vcmp.eq.s32.totalorder %v396, %v3135
        %vm3213 = vcmp.eq.s32.totalorder %v397, %v3135
        %vm3214 = vcmp.eq.s32.totalorder %v398, %v3135
        %vm3215 = vcmp.eq.s32.totalorder %v399, %v3135
        %vm3216 = vcmp.eq.s32.totalorder %v400, %v3135
        %vm3217 = vcmp.eq.s32.totalorder %v401, %v3135
        %vm3218 = vcmp.eq.s32.totalorder %v402, %v3135
        %vm3219 = vcmp.eq.s32.totalorder %v403, %v3135
        %vm3220 = vcmp.eq.s32.totalorder %v404, %v3135
        %vm3221 = vcmp.eq.s32.totalorder %v405, %v3135
        %vm3222 = vcmp.eq.s32.totalorder %v406, %v3135
        %vm3223 = vcmp.eq.s32.totalorder %v407, %v3135
        %vm3224 = vcmp.eq.s32.totalorder %v408, %v3135
        %vm3225 = vcmp.eq.s32.totalorder %v409, %v3135
        %vm3226 = vcmp.eq.s32.totalorder %v410, %v3135
        %vm3227 = vcmp.eq.s32.totalorder %v411, %v3135
        %vm3228 = vcmp.eq.s32.totalorder %v412, %v3135
        %vm3229 = vcmp.eq.s32.totalorder %v413, %v3135
        %vm3230 = vcmp.eq.s32.totalorder %v414, %v3135
        %vm3231 = vcmp.eq.s32.totalorder %v415, %v3135
        %v3232 = vsel %vm3136, 1, 0
        %v3233 = vsel %vm3137, 1, 0
        %v3234 = vsel %vm3138, 1, 0
        %v3235 = vsel %vm3139, 1, 0
        %v3236 = vsel %vm3140, 1, 0
        %v3237 = vsel %vm3141, 1, 0
        %v3238 = vsel %vm3142, 1, 0
        %v3239 = vsel %vm3143, 1, 0
        %v3240 = vsel %vm3144, 1, 0
        %v3241 = vsel %vm3145, 1, 0
        %v3242 = vsel %vm3146, 1, 0
        %v3243 = vsel %vm3147, 1, 0
        %v3244 = vsel %vm3148, 1, 0
        %v3245 = vsel %vm3149, 1, 0
        %v3246 = vsel %vm3150, 1, 0
        %v3247 = vsel %vm3151, 1, 0
        %v3248 = vsel %vm3152, 1, 0
        %v3249 = vsel %vm3153, 1, 0
        %v3250 = vsel %vm3154, 1, 0
        %v3251 = vsel %vm3155, 1, 0
        %v3252 = vsel %vm3156, 1, 0
        %v3253 = vsel %vm3157, 1, 0
        %v3254 = vsel %vm3158, 1, 0
        %v3255 = vsel %vm3159, 1, 0
        %v3256 = vsel %vm3160, 1, 0
        %v3257 = vsel %vm3161, 1, 0
        %v3258 = vsel %vm3162, 1, 0
        %v3259 = vsel %vm3163, 1, 0
        %v3260 = vsel %vm3164, 1, 0
        %v3261 = vsel %vm3165, 1, 0
        %v3262 = vsel %vm3166, 1, 0
        %v3263 = vsel %vm3167, 1, 0
        %v3264 = vsel %vm3168, 1, 0
        %v3265 = vsel %vm3169, 1, 0
        %v3266 = vsel %vm3170, 1, 0
        %v3267 = vsel %vm3171, 1, 0
        %v3268 = vsel %vm3172, 1, 0
        %v3269 = vsel %vm3173, 1, 0
        %v3270 = vsel %vm3174, 1, 0
        %v3271 = vsel %vm3175, 1, 0
        %v3272 = vsel %vm3176, 1, 0
        %v3273 = vsel %vm3177, 1, 0
        %v3274 = vsel %vm3178, 1, 0
        %v3275 = vsel %vm3179, 1, 0
        %v3276 = vsel %vm3180, 1, 0
        %v3277 = vsel %vm3181, 1, 0
        %v3278 = vsel %vm3182, 1, 0
        %v3279 = vsel %vm3183, 1, 0
        %v3280 = vsel %vm3184, 1, 0
        %v3281 = vsel %vm3185, 1, 0
        %v3282 = vsel %vm3186, 1, 0
        %v3283 = vsel %vm3187, 1, 0
        %v3284 = vsel %vm3188, 1, 0
        %v3285 = vsel %vm3189, 1, 0
        %v3286 = vsel %vm3190, 1, 0
        %v3287 = vsel %vm3191, 1, 0
        %v3288 = vsel %vm3192, 1, 0
        %v3289 = vsel %vm3193, 1, 0
        %v3290 = vsel %vm3194, 1, 0
        %v3291 = vsel %vm3195, 1, 0
        %v3292 = vsel %vm3196, 1, 0
        %v3293 = vsel %vm3197, 1, 0
        %v3294 = vsel %vm3198, 1, 0
        %v3295 = vsel %vm3199, 1, 0
        %v3296 = vsel %vm3200, 1, 0
        %v3297 = vsel %vm3201, 1, 0
        %v3298 = vsel %vm3202, 1, 0
        %v3299 = vsel %vm3203, 1, 0
        %v3300 = vsel %vm3204, 1, 0
        %v3301 = vsel %vm3205, 1, 0
        %v3302 = vsel %vm3206, 1, 0
        %v3303 = vsel %vm3207, 1, 0
        %v3304 = vsel %vm3208, 1, 0
        %v3305 = vsel %vm3209, 1, 0
        %v3306 = vsel %vm3210, 1, 0
        %v3307 = vsel %vm3211, 1, 0
        %v3308 = vsel %vm3212, 1, 0
        %v3309 = vsel %vm3213, 1, 0
        %v3310 = vsel %vm3214, 1, 0
        %v3311 = vsel %vm3215, 1, 0
        %v3312 = vsel %vm3216, 1, 0
        %v3313 = vsel %vm3217, 1, 0
        %v3314 = vsel %vm3218, 1, 0
        %v3315 = vsel %vm3219, 1, 0
        %v3316 = vsel %vm3220, 1, 0
        %v3317 = vsel %vm3221, 1, 0
        %v3318 = vsel %vm3222, 1, 0
        %v3319 = vsel %vm3223, 1, 0
        %v3320 = vsel %vm3224, 1, 0
        %v3321 = vsel %vm3225, 1, 0
        %v3322 = vsel %vm3226, 1, 0
        %v3323 = vsel %vm3227, 1, 0
        %v3324 = vsel %vm3228, 1, 0
        %v3325 = vsel %vm3229, 1, 0
        %v3326 = vsel %vm3230, 1, 0
        %v3327 = vsel %vm3231, 1, 0
        %v3328 = vcvt.s32.f32 %v3232
        %v3329 = vcvt.s32.f32 %v3233
        %v3330 = vcvt.s32.f32 %v3234
        %v3331 = vcvt.s32.f32 %v3235
        %v3332 = vcvt.s32.f32 %v3236
        %v3333 = vcvt.s32.f32 %v3237
        %v3334 = vcvt.s32.f32 %v3238
        %v3335 = vcvt.s32.f32 %v3239
        %v3336 = vcvt.s32.f32 %v3240
        %v3337 = vcvt.s32.f32 %v3241
        %v3338 = vcvt.s32.f32 %v3242
        %v3339 = vcvt.s32.f32 %v3243
        %v3340 = vcvt.s32.f32 %v3244
        %v3341 = vcvt.s32.f32 %v3245
        %v3342 = vcvt.s32.f32 %v3246
        %v3343 = vcvt.s32.f32 %v3247
        %v3344 = vcvt.s32.f32 %v3248
        %v3345 = vcvt.s32.f32 %v3249
        %v3346 = vcvt.s32.f32 %v3250
        %v3347 = vcvt.s32.f32 %v3251
        %v3348 = vcvt.s32.f32 %v3252
        %v3349 = vcvt.s32.f32 %v3253
        %v3350 = vcvt.s32.f32 %v3254
        %v3351 = vcvt.s32.f32 %v3255
        %v3352 = vcvt.s32.f32 %v3256
        %v3353 = vcvt.s32.f32 %v3257
        %v3354 = vcvt.s32.f32 %v3258
        %v3355 = vcvt.s32.f32 %v3259
        %v3356 = vcvt.s32.f32 %v3260
        %v3357 = vcvt.s32.f32 %v3261
        %v3358 = vcvt.s32.f32 %v3262
        %v3359 = vcvt.s32.f32 %v3263
        %v3360 = vcvt.s32.f32 %v3264
        %v3361 = vcvt.s32.f32 %v3265
        %v3362 = vcvt.s32.f32 %v3266
        %v3363 = vcvt.s32.f32 %v3267
        %v3364 = vcvt.s32.f32 %v3268
        %v3365 = vcvt.s32.f32 %v3269
        %v3366 = vcvt.s32.f32 %v3270
        %v3367 = vcvt.s32.f32 %v3271
        %v3368 = vcvt.s32.f32 %v3272
        %v3369 = vcvt.s32.f32 %v3273
        %v3370 = vcvt.s32.f32 %v3274
        %v3371 = vcvt.s32.f32 %v3275
        %v3372 = vcvt.s32.f32 %v3276
        %v3373 = vcvt.s32.f32 %v3277
        %v3374 = vcvt.s32.f32 %v3278
        %v3375 = vcvt.s32.f32 %v3279
        %v3376 = vcvt.s32.f32 %v3280
        %v3377 = vcvt.s32.f32 %v3281
        %v3378 = vcvt.s32.f32 %v3282
        %v3379 = vcvt.s32.f32 %v3283
        %v3380 = vcvt.s32.f32 %v3284
        %v3381 = vcvt.s32.f32 %v3285
        %v3382 = vcvt.s32.f32 %v3286
        %v3383 = vcvt.s32.f32 %v3287
        %v3384 = vcvt.s32.f32 %v3288
        %v3385 = vcvt.s32.f32 %v3289
        %v3386 = vcvt.s32.f32 %v3290
        %v3387 = vcvt.s32.f32 %v3291
        %v3388 = vcvt.s32.f32 %v3292
        %v3389 = vcvt.s32.f32 %v3293
        %v3390 = vcvt.s32.f32 %v3294
        %v3391 = vcvt.s32.f32 %v3295
        %v3392 = vcvt.s32.f32 %v3296
        %v3393 = vcvt.s32.f32 %v3297
        %v3394 = vcvt.s32.f32 %v3298
        %v3395 = vcvt.s32.f32 %v3299
        %v3396 = vcvt.s32.f32 %v3300
        %v3397 = vcvt.s32.f32 %v3301
        %v3398 = vcvt.s32.f32 %v3302
        %v3399 = vcvt.s32.f32 %v3303
        %v3400 = vcvt.s32.f32 %v3304
        %v3401 = vcvt.s32.f32 %v3305
        %v3402 = vcvt.s32.f32 %v3306
        %v3403 = vcvt.s32.f32 %v3307
        %v3404 = vcvt.s32.f32 %v3308
        %v3405 = vcvt.s32.f32 %v3309
        %v3406 = vcvt.s32.f32 %v3310
        %v3407 = vcvt.s32.f32 %v3311
        %v3408 = vcvt.s32.f32 %v3312
        %v3409 = vcvt.s32.f32 %v3313
        %v3410 = vcvt.s32.f32 %v3314
        %v3411 = vcvt.s32.f32 %v3315
        %v3412 = vcvt.s32.f32 %v3316
        %v3413 = vcvt.s32.f32 %v3317
        %v3414 = vcvt.s32.f32 %v3318
        %v3415 = vcvt.s32.f32 %v3319
        %v3416 = vcvt.s32.f32 %v3320
        %v3417 = vcvt.s32.f32 %v3321
        %v3418 = vcvt.s32.f32 %v3322
        %v3419 = vcvt.s32.f32 %v3323
        %v3420 = vcvt.s32.f32 %v3324
        %v3421 = vcvt.s32.f32 %v3325
        %v3422 = vcvt.s32.f32 %v3326
        %v3423 = vcvt.s32.f32 %v3327
        %v3424 = vadd.f32 %v3036, %v3328
        %v3425 = vadd.f32 %v3037, %v3329
        %v3426 = vadd.f32 %v3038, %v3330
        %v3427 = vadd.f32 %v3039, %v3331
        %v3428 = vadd.f32 %v3040, %v3332
        %v3429 = vadd.f32 %v3041, %v3333
        %v3430 = vadd.f32 %v3042, %v3334
        %v3431 = vadd.f32 %v3043, %v3335
        %v3432 = vadd.f32 %v3044, %v3336
        %v3433 = vadd.f32 %v3045, %v3337
        %v3434 = vadd.f32 %v3046, %v3338
        %v3435 = vadd.f32 %v3047, %v3339
        %v3436 = vadd.f32 %v3048, %v3340
        %v3437 = vadd.f32 %v3049, %v3341
        %v3438 = vadd.f32 %v3050, %v3342
        %v3439 = vadd.f32 %v3051, %v3343
        %v3440 = vadd.f32 %v3052, %v3344
        %v3441 = vadd.f32 %v3053, %v3345
        %v3442 = vadd.f32 %v3054, %v3346
        %v3443 = vadd.f32 %v3055, %v3347
        %v3444 = vadd.f32 %v3056, %v3348
        %v3445 = vadd.f32 %v3057, %v3349
        %v3446 = vadd.f32 %v3058, %v3350
        %v3447 = vadd.f32 %v3059, %v3351
        %v3448 = vadd.f32 %v3060, %v3352
        %v3449 = vadd.f32 %v3061, %v3353
        %v3450 = vadd.f32 %v3062, %v3354
        %v3451 = vadd.f32 %v3063, %v3355
        %v3452 = vadd.f32 %v3064, %v3356
        %v3453 = vadd.f32 %v3065, %v3357
        %v3454 = vadd.f32 %v3066, %v3358
        %v3455 = vadd.f32 %v3067, %v3359
        %v3456 = vadd.f32 %v3068, %v3360
        %v3457 = vadd.f32 %v3069, %v3361
        %v3458 = vadd.f32 %v3070, %v3362
        %v3459 = vadd.f32 %v3071, %v3363
        %v3460 = vadd.f32 %v3072, %v3364
        %v3461 = vadd.f32 %v3073, %v3365
        %v3462 = vadd.f32 %v3074, %v3366
        %v3463 = vadd.f32 %v3075, %v3367
        %v3464 = vadd.f32 %v3076, %v3368
        %v3465 = vadd.f32 %v3077, %v3369
        %v3466 = vadd.f32 %v3078, %v3370
        %v3467 = vadd.f32 %v3079, %v3371
        %v3468 = vadd.f32 %v3080, %v3372
        %v3469 = vadd.f32 %v3081, %v3373
        %v3470 = vadd.f32 %v3082, %v3374
        %v3471 = vadd.f32 %v3083, %v3375
        %v3472 = vadd.f32 %v3084, %v3376
        %v3473 = vadd.f32 %v3085, %v3377
        %v3474 = vadd.f32 %v3086, %v3378
        %v3475 = vadd.f32 %v3087, %v3379
        %v3476 = vadd.f32 %v3088, %v3380
        %v3477 = vadd.f32 %v3089, %v3381
        %v3478 = vadd.f32 %v3090, %v3382
        %v3479 = vadd.f32 %v3091, %v3383
        %v3480 = vadd.f32 %v3092, %v3384
        %v3481 = vadd.f32 %v3093, %v3385
        %v3482 = vadd.f32 %v3094, %v3386
        %v3483 = vadd.f32 %v3095, %v3387
        %v3484 = vadd.f32 %v3096, %v3388
        %v3485 = vadd.f32 %v3097, %v3389
        %v3486 = vadd.f32 %v3098, %v3390
        %v3487 = vadd.f32 %v3099, %v3391
        %v3488 = vadd.f32 %v3100, %v3392
        %v3489 = vadd.f32 %v3101, %v3393
        %v3490 = vadd.f32 %v3102, %v3394
        %v3491 = vadd.f32 %v3103, %v3395
        %v3492 = vadd.f32 %v3104, %v3396
        %v3493 = vadd.f32 %v3105, %v3397
        %v3494 = vadd.f32 %v3106, %v3398
        %v3495 = vadd.f32 %v3107, %v3399
        %v3496 = vadd.f32 %v3108, %v3400
        %v3497 = vadd.f32 %v3109, %v3401
        %v3498 = vadd.f32 %v3110, %v3402
        %v3499 = vadd.f32 %v3111, %v3403
        %v3500 = vadd.f32 %v3112, %v3404
        %v3501 = vadd.f32 %v3113, %v3405
        %v3502 = vadd.f32 %v3114, %v3406
        %v3503 = vadd.f32 %v3115, %v3407
        %v3504 = vadd.f32 %v3116, %v3408
        %v3505 = vadd.f32 %v3117, %v3409
        %v3506 = vadd.f32 %v3118, %v3410
        %v3507 = vadd.f32 %v3119, %v3411
        %v3508 = vadd.f32 %v3120, %v3412
        %v3509 = vadd.f32 %v3121, %v3413
        %v3510 = vadd.f32 %v3122, %v3414
        %v3511 = vadd.f32 %v3123, %v3415
        %v3512 = vadd.f32 %v3124, %v3416
        %v3513 = vadd.f32 %v3125, %v3417
        %v3514 = vadd.f32 %v3126, %v3418
        %v3515 = vadd.f32 %v3127, %v3419
        %v3516 = vadd.f32 %v3128, %v3420
        %v3517 = vadd.f32 %v3129, %v3421
        %v3518 = vadd.f32 %v3130, %v3422
        %v3519 = vadd.f32 %v3131, %v3423
        %v3520 = vld [vmem:[#allocation3] sm:$0xff]
        %v3521 = vld [vmem:[#allocation3 + $0x8] sm:$0xff]
        %v3522 = vld [vmem:[#allocation3 + $0x10] sm:$0xff]
        %v3523 = vld [vmem:[#allocation3 + $0x18] sm:$0xff]
        %v3524 = vld [vmem:[#allocation3 + $0x20] sm:$0xff]
        %v3525 = vld [vmem:[#allocation3 + $0x28] sm:$0xff]
        %v3526 = vld [vmem:[#allocation3 + $0x30] sm:$0xff]
        %v3527 = vld [vmem:[#allocation3 + $0x38] sm:$0xff]
        %v3528 = vld [vmem:[#allocation3 + $0x40] sm:$0xff]
        %v3529 = vld [vmem:[#allocation3 + $0x48] sm:$0xff]
        %v3530 = vld [vmem:[#allocation3 + $0x50] sm:$0xff]
        %v3531 = vld [vmem:[#allocation3 + $0x58] sm:$0xff]
        %v3532 = vld [vmem:[#allocation3 + $0x60] sm:$0xff]
        %v3533 = vld [vmem:[#allocation3 + $0x68] sm:$0xff]
        %v3534 = vld [vmem:[#allocation3 + $0x70] sm:$0xff]
        %v3535 = vld [vmem:[#allocation3 + $0x78] sm:$0xff]
        %v3536 = vld [vmem:[#allocation3 + $0x80] sm:$0xff]
        %v3537 = vld [vmem:[#allocation3 + $0x88] sm:$0xff]
        %v3538 = vld [vmem:[#allocation3 + $0x90] sm:$0xff]
        %v3539 = vld [vmem:[#allocation3 + $0x98] sm:$0xff]
        %v3540 = vld [vmem:[#allocation3 + $0xa0] sm:$0xff]
        %v3541 = vld [vmem:[#allocation3 + $0xa8] sm:$0xff]
        %v3542 = vld [vmem:[#allocation3 + $0xb0] sm:$0xff]
        %v3543 = vld [vmem:[#allocation3 + $0xb8] sm:$0xff]
        %v3544 = vld [vmem:[#allocation3 + $0xc0] sm:$0xff]
        %v3545 = vld [vmem:[#allocation3 + $0xc8] sm:$0xff]
        %v3546 = vld [vmem:[#allocation3 + $0xd0] sm:$0xff]
        %v3547 = vld [vmem:[#allocation3 + $0xd8] sm:$0xff]
        %v3548 = vld [vmem:[#allocation3 + $0xe0] sm:$0xff]
        %v3549 = vld [vmem:[#allocation3 + $0xe8] sm:$0xff]
        %v3550 = vld [vmem:[#allocation3 + $0xf0] sm:$0xff]
        %v3551 = vld [vmem:[#allocation3 + $0xf8] sm:$0xff]
        %v3552 = vld [vmem:[#allocation3 + $0x100] sm:$0xff]
        %v3553 = vld [vmem:[#allocation3 + $0x108] sm:$0xff]
        %v3554 = vld [vmem:[#allocation3 + $0x110] sm:$0xff]
        %v3555 = vld [vmem:[#allocation3 + $0x118] sm:$0xff]
        %v3556 = vld [vmem:[#allocation3 + $0x120] sm:$0xff]
        %v3557 = vld [vmem:[#allocation3 + $0x128] sm:$0xff]
        %v3558 = vld [vmem:[#allocation3 + $0x130] sm:$0xff]
        %v3559 = vld [vmem:[#allocation3 + $0x138] sm:$0xff]
        %v3560 = vld [vmem:[#allocation3 + $0x140] sm:$0xff]
        %v3561 = vld [vmem:[#allocation3 + $0x148] sm:$0xff]
        %v3562 = vld [vmem:[#allocation3 + $0x150] sm:$0xff]
        %v3563 = vld [vmem:[#allocation3 + $0x158] sm:$0xff]
        %v3564 = vld [vmem:[#allocation3 + $0x160] sm:$0xff]
        %v3565 = vld [vmem:[#allocation3 + $0x168] sm:$0xff]
        %v3566 = vld [vmem:[#allocation3 + $0x170] sm:$0xff]
        %v3567 = vld [vmem:[#allocation3 + $0x178] sm:$0xff]
        %v3568 = vld [vmem:[#allocation3 + $0x180] sm:$0xff]
        %v3569 = vld [vmem:[#allocation3 + $0x188] sm:$0xff]
        %v3570 = vld [vmem:[#allocation3 + $0x190] sm:$0xff]
        %v3571 = vld [vmem:[#allocation3 + $0x198] sm:$0xff]
        %v3572 = vld [vmem:[#allocation3 + $0x1a0] sm:$0xff]
        %v3573 = vld [vmem:[#allocation3 + $0x1a8] sm:$0xff]
        %v3574 = vld [vmem:[#allocation3 + $0x1b0] sm:$0xff]
        %v3575 = vld [vmem:[#allocation3 + $0x1b8] sm:$0xff]
        %v3576 = vld [vmem:[#allocation3 + $0x1c0] sm:$0xff]
        %v3577 = vld [vmem:[#allocation3 + $0x1c8] sm:$0xff]
        %v3578 = vld [vmem:[#allocation3 + $0x1d0] sm:$0xff]
        %v3579 = vld [vmem:[#allocation3 + $0x1d8] sm:$0xff]
        %v3580 = vld [vmem:[#allocation3 + $0x1e0] sm:$0xff]
        %v3581 = vld [vmem:[#allocation3 + $0x1e8] sm:$0xff]
        %v3582 = vld [vmem:[#allocation3 + $0x1f0] sm:$0xff]
        %v3583 = vld [vmem:[#allocation3 + $0x1f8] sm:$0xff]
        %v3584 = vld [vmem:[#allocation3 + $0x200] sm:$0xff]
        %v3585 = vld [vmem:[#allocation3 + $0x208] sm:$0xff]
        %v3586 = vld [vmem:[#allocation3 + $0x210] sm:$0xff]
        %v3587 = vld [vmem:[#allocation3 + $0x218] sm:$0xff]
        %v3588 = vld [vmem:[#allocation3 + $0x220] sm:$0xff]
        %v3589 = vld [vmem:[#allocation3 + $0x228] sm:$0xff]
        %v3590 = vld [vmem:[#allocation3 + $0x230] sm:$0xff]
        %v3591 = vld [vmem:[#allocation3 + $0x238] sm:$0xff]
        %v3592 = vld [vmem:[#allocation3 + $0x240] sm:$0xff]
        %v3593 = vld [vmem:[#allocation3 + $0x248] sm:$0xff]
        %v3594 = vld [vmem:[#allocation3 + $0x250] sm:$0xff]
        %v3595 = vld [vmem:[#allocation3 + $0x258] sm:$0xff]
        %v3596 = vld [vmem:[#allocation3 + $0x260] sm:$0xff]
        %v3597 = vld [vmem:[#allocation3 + $0x268] sm:$0xff]
        %v3598 = vld [vmem:[#allocation3 + $0x270] sm:$0xff]
        %v3599 = vld [vmem:[#allocation3 + $0x278] sm:$0xff]
        %v3600 = vld [vmem:[#allocation3 + $0x280] sm:$0xff]
        %v3601 = vld [vmem:[#allocation3 + $0x288] sm:$0xff]
        %v3602 = vld [vmem:[#allocation3 + $0x290] sm:$0xff]
        %v3603 = vld [vmem:[#allocation3 + $0x298] sm:$0xff]
        %v3604 = vld [vmem:[#allocation3 + $0x2a0] sm:$0xff]
        %v3605 = vld [vmem:[#allocation3 + $0x2a8] sm:$0xff]
        %v3606 = vld [vmem:[#allocation3 + $0x2b0] sm:$0xff]
        %v3607 = vld [vmem:[#allocation3 + $0x2b8] sm:$0xff]
        %v3608 = vld [vmem:[#allocation3 + $0x2c0] sm:$0xff]
        %v3609 = vld [vmem:[#allocation3 + $0x2c8] sm:$0xff]
        %v3610 = vld [vmem:[#allocation3 + $0x2d0] sm:$0xff]
        %v3611 = vld [vmem:[#allocation3 + $0x2d8] sm:$0xff]
        %v3612 = vld [vmem:[#allocation3 + $0x2e0] sm:$0xff]
        %v3613 = vld [vmem:[#allocation3 + $0x2e8] sm:$0xff]
        %v3614 = vld [vmem:[#allocation3 + $0x2f0] sm:$0xff]
        %v3615 = vld [vmem:[#allocation3 + $0x2f8] sm:$0xff]
        %3616 = vmatprep.subr.mxu0 0.0
        %3617 = vmatpush1.msra.mxu0 %v3424
        %3618 = vmatprep.subr.mxu0 0.0
        %3619 = vmatpush1.msra.mxu0 %v3425
        %3620 = vmatprep.subr.mxu0 0.0
        %3621 = vmatpush1.msra.mxu0 %v3426
        %3622 = vmatprep.subr.mxu0 0.0
        %3623 = vmatpush1.msra.mxu0 %v3427
        %3624 = vmatprep.subr.mxu0 0.0
        %3625 = vmatpush1.msra.mxu0 %v3428
        %3626 = vmatprep.subr.mxu0 0.0
        %3627 = vmatpush1.msra.mxu0 %v3429
        %3628 = vmatprep.subr.mxu0 0.0
        %3629 = vmatpush1.msra.mxu0 %v3430
        %3630 = vmatprep.subr.mxu0 0.0
        %3631 = vmatpush1.msra.mxu0 %v3431
        %3632 = vmatprep.subr.mxu0 0.0
        %3633 = vmatpush1.msra.mxu0 %v3432
        %3634 = vmatprep.subr.mxu0 0.0
        %3635 = vmatpush1.msra.mxu0 %v3433
        %3636 = vmatprep.subr.mxu0 0.0
        %3637 = vmatpush1.msra.mxu0 %v3434
        %3638 = vmatprep.subr.mxu0 0.0
        %3639 = vmatpush1.msra.mxu0 %v3435
        %3640 = vmatprep.subr.mxu0 0.0
        %3641 = vmatpush1.msra.mxu0 %v3436
        %3642 = vmatprep.subr.mxu0 0.0
        %3643 = vmatpush1.msra.mxu0 %v3437
        %3644 = vmatprep.subr.mxu0 0.0
        %3645 = vmatpush1.msra.mxu0 %v3438
        %3646 = vmatprep.subr.mxu0 0.0
        %3647 = vmatpush1.msra.mxu0 %v3439
        %3648 = vmatprep.subr.mxu0 0.0
        %3649 = vmatpush1.msra.mxu0 %v3440
        %3650 = vmatprep.subr.mxu0 0.0
        %3651 = vmatpush1.msra.mxu0 %v3441
        %3652 = vmatprep.subr.mxu0 0.0
        %3653 = vmatpush1.msra.mxu0 %v3442
        %3654 = vmatprep.subr.mxu0 0.0
        %3655 = vmatpush1.msra.mxu0 %v3443
        %3656 = vmatprep.subr.mxu0 0.0
        %3657 = vmatpush1.msra.mxu0 %v3444
        %3658 = vmatprep.subr.mxu0 0.0
        %3659 = vmatpush1.msra.mxu0 %v3445
        %3660 = vmatprep.subr.mxu0 0.0
        %3661 = vmatpush1.msra.mxu0 %v3446
        %3662 = vmatprep.subr.mxu0 0.0
        %3663 = vmatpush1.msra.mxu0 %v3447
        %3664 = vmatprep.subr.mxu0 0.0
        %3665 = vmatpush1.msra.mxu0 %v3448
        %3666 = vmatprep.subr.mxu0 0.0
        %3667 = vmatpush1.msra.mxu0 %v3449
        %3668 = vmatprep.subr.mxu0 0.0
        %3669 = vmatpush1.msra.mxu0 %v3450
        %3670 = vmatprep.subr.mxu0 0.0
        %3671 = vmatpush1.msra.mxu0 %v3451
        %3672 = vmatprep.subr.mxu0 0.0
        %3673 = vmatpush1.msra.mxu0 %v3452
        %3674 = vmatprep.subr.mxu0 0.0
        %3675 = vmatpush1.msra.mxu0 %v3453
        %3676 = vmatprep.subr.mxu0 0.0
        %3677 = vmatpush1.msra.mxu0 %v3454
        %3678 = vmatprep.subr.mxu0 0.0
        %3679 = vmatpush1.msra.mxu0 %v3455
        %3680 = vmatprep.mubr.f32.mxu0 %v3521
        %3681 = vmatmul.mubr.f32.gmra.mrb[0].mxu0 %v3520
        %v3682 = vpop.f32.mrb[0].mxu0
        %v3683 = vadd.f32 0.0, %v3682
        %v3684 = vpop.f32.mrb[0].mxu0
        %3685 = vmatprep.mubr.f32.mxu0 %v3527
        %3686 = vmatmul.mubr.f32.gmra.mrb[0].mxu0 %v3526
        %v3687 = vpop.f32.mrb[0].mxu0
        %v3688 = vadd.f32 0.0, %v3687
        %v3689 = vpop.f32.mrb[0].mxu0
        %3690 = vmatprep.mubr.f32.mxu0 %v3533
        %3691 = vmatmul.mubr.f32.gmra.mrb[0].mxu0 %v3532
        %v3692 = vpop.f32.mrb[0].mxu0
        %v3693 = vadd.f32 0.0, %v3692
        %v3694 = vpop.f32.mrb[0].mxu0
        %3695 = vmatprep.mubr.f32.mxu0 %v3539
        %3696 = vmatmul.mubr.f32.gmra.mrb[0].mxu0 %v3538
        %v3697 = vpop.f32.mrb[0].mxu0
        %v3698 = vadd.f32 0.0, %v3697
        %v3699 = vpop.f32.mrb[0].mxu0
        %3700 = vmatprep.mubr.f32.mxu0 %v3545
        %3701 = vmatmul.mubr.f32.gmra.mrb[0].mxu0 %v3544
        %v3702 = vpop.f32.mrb[0].mxu0
        %v3703 = vadd.f32 0.0, %v3702
        %v3704 = vpop.f32.mrb[0].mxu0
        %3705 = vmatprep.mubr.f32.mxu0 %v3551
        %3706 = vmatmul.mubr.f32.gmra.mrb[0].mxu0 %v3550
        %v3707 = vpop.f32.mrb[0].mxu0
        %v3708 = vadd.f32 0.0, %v3707
        %v3709 = vpop.f32.mrb[0].mxu0
        %3710 = vmatprep.mubr.f32.mxu0 %v3557
        %3711 = vmatmul.mubr.f32.gmra.mrb[0].mxu0 %v3556
        %v3712 = vpop.f32.mrb[0].mxu0
        %v3713 = vadd.f32 0.0, %v3712
        %v3714 = vpop.f32.mrb[0].mxu0
        %3715 = vmatprep.mubr.f32.mxu0 %v3563
        %3716 = vmatmul.mubr.f32.gmra.mrb[0].mxu0 %v3562
        %v3717 = vpop.f32.mrb[0].mxu0
        %v3718 = vadd.f32 0.0, %v3717
        %v3719 = vpop.f32.mrb[0].mxu0
        %3720 = vmatprep.mubr.f32.mxu0 %v3569
        %3721 = vmatmul.mubr.f32.gmra.mrb[0].mxu0 %v3568
        %v3722 = vpop.f32.mrb[0].mxu0
        %v3723 = vadd.f32 0.0, %v3722
        %v3724 = vpop.f32.mrb[0].mxu0
        %3725 = vmatprep.mubr.f32.mxu0 %v3575
        %3726 = vmatmul.mubr.f32.gmra.mrb[0].mxu0 %v3574
        %v3727 = vpop.f32.mrb[0].mxu0
        %v3728 = vadd.f32 0.0, %v3727
        %v3729 = vpop.f32.mrb[0].mxu0
        %3730 = vmatprep.mubr.f32.mxu0 %v3581
        %3731 = vmatmul.mubr.f32.gmra.mrb[0].mxu0 %v3580
        %v3732 = vpop.f32.mrb[0].mxu0
        %v3733 = vadd.f32 0.0, %v3732
        %v3734 = vpop.f32.mrb[0].mxu0
        %3735 = vmatprep.mubr.f32.mxu0 %v3587
        %3736 = vmatmul.mubr.f32.gmra.mrb[0].mxu0 %v3586
        %v3737 = vpop.f32.mrb[0].mxu0
        %v3738 = vadd.f32 0.0, %v3737
        %v3739 = vpop.f32.mrb[0].mxu0
        %3740 = vmatprep.mubr.f32.mxu0 %v3593
        %3741 = vmatmul.mubr.f32.gmra.mrb[0].mxu0 %v3592
        %v3742 = vpop.f32.mrb[0].mxu0
        %v3743 = vadd.f32 0.0, %v3742
        %v3744 = vpop.f32.mrb[0].mxu0
        %3745 = vmatprep.mubr.f32.mxu0 %v3599
        %3746 = vmatmul.mubr.f32.gmra.mrb[0].mxu0 %v3598
        %v3747 = vpop.f32.mrb[0].mxu0
        %v3748 = vadd.f32 0.0, %v3747
        %v3749 = vpop.f32.mrb[0].mxu0
        %3750 = vmatprep.mubr.f32.mxu0 %v3605
        %3751 = vmatmul.mubr.f32.gmra.mrb[0].mxu0 %v3604
        %v3752 = vpop.f32.mrb[0].mxu0
        %v3753 = vadd.f32 0.0, %v3752
        %v3754 = vpop.f32.mrb[0].mxu0
        %3755 = vmatprep.mubr.f32.mxu0 %v3611
        %3756 = vmatmul.mubr.f32.gmra.mrb[0].mxu0 %v3610
        %v3757 = vpop.f32.mrb[0].mxu0
        %v3758 = vadd.f32 0.0, %v3757
        %v3759 = vpop.f32.mrb[0].mxu0
        %3760 = vdwg.mxu0
        %3761 = vmatprep.subr.mxu0 0.0
        %3762 = vmatpush1.msra.mxu0 %v3456
        %3763 = vmatprep.subr.mxu0 0.0
        %3764 = vmatpush1.msra.mxu0 %v3457
        %3765 = vmatprep.subr.mxu0 0.0
        %3766 = vmatpush1.msra.mxu0 %v3458
        %3767 = vmatprep.subr.mxu0 0.0
        %3768 = vmatpush1.msra.mxu0 %v3459
        %3769 = vmatprep.subr.mxu0 0.0
        %3770 = vmatpush1.msra.mxu0 %v3460
        %3771 = vmatprep.subr.mxu0 0.0
        %3772 = vmatpush1.msra.mxu0 %v3461
        %3773 = vmatprep.subr.mxu0 0.0
        %3774 = vmatpush1.msra.mxu0 %v3462
        %3775 = vmatprep.subr.mxu0 0.0
        %3776 = vmatpush1.msra.mxu0 %v3463
        %3777 = vmatprep.subr.mxu0 0.0
        %3778 = vmatpush1.msra.mxu0 %v3464
        %3779 = vmatprep.subr.mxu0 0.0
        %3780 = vmatpush1.msra.mxu0 %v3465
        %3781 = vmatprep.subr.mxu0 0.0
        %3782 = vmatpush1.msra.mxu0 %v3466
        %3783 = vmatprep.subr.mxu0 0.0
        %3784 = vmatpush1.msra.mxu0 %v3467
        %3785 = vmatprep.subr.mxu0 0.0
        %3786 = vmatpush1.msra.mxu0 %v3468
        %3787 = vmatprep.subr.mxu0 0.0
        %3788 = vmatpush1.msra.mxu0 %v3469
        %3789 = vmatprep.subr.mxu0 0.0
        %3790 = vmatpush1.msra.mxu0 %v3470
        %3791 = vmatprep.subr.mxu0 0.0
        %3792 = vmatpush1.msra.mxu0 %v3471
        %3793 = vmatprep.subr.mxu0 0.0
        %3794 = vmatpush1.msra.mxu0 %v3472
        %3795 = vmatprep.subr.mxu0 0.0
        %3796 = vmatpush1.msra.mxu0 %v3473
        %3797 = vmatprep.subr.mxu0 0.0
        %3798 = vmatpush1.msra.mxu0 %v3474
        %3799 = vmatprep.subr.mxu0 0.0
        %3800 = vmatpush1.msra.mxu0 %v3475
        %3801 = vmatprep.subr.mxu0 0.0
        %3802 = vmatpush1.msra.mxu0 %v3476
        %3803 = vmatprep.subr.mxu0 0.0
        %3804 = vmatpush1.msra.mxu0 %v3477
        %3805 = vmatprep.subr.mxu0 0.0
        %3806 = vmatpush1.msra.mxu0 %v3478
        %3807 = vmatprep.subr.mxu0 0.0
        %3808 = vmatpush1.msra.mxu0 %v3479
        %3809 = vmatprep.subr.mxu0 0.0
        %3810 = vmatpush1.msra.mxu0 %v3480
        %3811 = vmatprep.subr.mxu0 0.0
        %3812 = vmatpush1.msra.mxu0 %v3481
        %3813 = vmatprep.subr.mxu0 0.0
        %3814 = vmatpush1.msra.mxu0 %v3482
        %3815 = vmatprep.subr.mxu0 0.0
        %3816 = vmatpush1.msra.mxu0 %v3483
        %3817 = vmatprep.subr.mxu0 0.0
        %3818 = vmatpush1.msra.mxu0 %v3484
        %3819 = vmatprep.subr.mxu0 0.0
        %3820 = vmatpush1.msra.mxu0 %v3485
        %3821 = vmatprep.subr.mxu0 0.0
        %3822 = vmatpush1.msra.mxu0 %v3486
        %3823 = vmatprep.subr.mxu0 0.0
        %3824 = vmatpush1.msra.mxu0 %v3487
        %3825 = vmatprep.mubr.f32.mxu0 %v3523
        %3826 = vmatmul.mubr.f32.gmra.mrb[0].mxu0 %v3522
        %v3827 = vpop.f32.mrb[0].mxu0
        %v3828 = vadd.f32 %v3683, %v3827
        %v3829 = vpop.f32.mrb[0].mxu0
        %3830 = vmatprep.mubr.f32.mxu0 %v3529
        %3831 = vmatmul.mubr.f32.gmra.mrb[0].mxu0 %v3528
        %v3832 = vpop.f32.mrb[0].mxu0
        %v3833 = vadd.f32 %v3688, %v3832
        %v3834 = vpop.f32.mrb[0].mxu0
        %3835 = vmatprep.mubr.f32.mxu0 %v3535
        %3836 = vmatmul.mubr.f32.gmra.mrb[0].mxu0 %v3534
        %v3837 = vpop.f32.mrb[0].mxu0
        %v3838 = vadd.f32 %v3693, %v3837
        %v3839 = vpop.f32.mrb[0].mxu0
        %3840 = vmatprep.mubr.f32.mxu0 %v3541
        %3841 = vmatmul.mubr.f32.gmra.mrb[0].mxu0 %v3540
        %v3842 = vpop.f32.mrb[0].mxu0
        %v3843 = vadd.f32 %v3698, %v3842
        %v3844 = vpop.f32.mrb[0].mxu0
        %3845 = vmatprep.mubr.f32.mxu0 %v3547
        %3846 = vmatmul.mubr.f32.gmra.mrb[0].mxu0 %v3546
        %v3847 = vpop.f32.mrb[0].mxu0
        %v3848 = vadd.f32 %v3703, %v3847
        %v3849 = vpop.f32.mrb[0].mxu0
        %3850 = vmatprep.mubr.f32.mxu0 %v3553
        %3851 = vmatmul.mubr.f32.gmra.mrb[0].mxu0 %v3552
        %v3852 = vpop.f32.mrb[0].mxu0
        %v3853 = vadd.f32 %v3708, %v3852
        %v3854 = vpop.f32.mrb[0].mxu0
        %3855 = vmatprep.mubr.f32.mxu0 %v3559
        %3856 = vmatmul.mubr.f32.gmra.mrb[0].mxu0 %v3558
        %v3857 = vpop.f32.mrb[0].mxu0
        %v3858 = vadd.f32 %v3713, %v3857
        %v3859 = vpop.f32.mrb[0].mxu0
        %3860 = vmatprep.mubr.f32.mxu0 %v3565
        %3861 = vmatmul.mubr.f32.gmra.mrb[0].mxu0 %v3564
        %v3862 = vpop.f32.mrb[0].mxu0
        %v3863 = vadd.f32 %v3718, %v3862
        %v3864 = vpop.f32.mrb[0].mxu0
        %3865 = vmatprep.mubr.f32.mxu0 %v3571
        %3866 = vmatmul.mubr.f32.gmra.mrb[0].mxu0 %v3570
        %v3867 = vpop.f32.mrb[0].mxu0
        %v3868 = vadd.f32 %v3723, %v3867
        %v3869 = vpop.f32.mrb[0].mxu0
        %3870 = vmatprep.mubr.f32.mxu0 %v3577
        %3871 = vmatmul.mubr.f32.gmra.mrb[0].mxu0 %v3576
        %v3872 = vpop.f32.mrb[0].mxu0
        %v3873 = vadd.f32 %v3728, %v3872
        %v3874 = vpop.f32.mrb[0].mxu0
        %3875 = vmatprep.mubr.f32.mxu0 %v3583
        %3876 = vmatmul.mubr.f32.gmra.mrb[0].mxu0 %v3582
        %v3877 = vpop.f32.mrb[0].mxu0
        %v3878 = vadd.f32 %v3733, %v3877
        %v3879 = vpop.f32.mrb[0].mxu0
        %3880 = vmatprep.mubr.f32.mxu0 %v3589
        %3881 = vmatmul.mubr.f32.gmra.mrb[0].mxu0 %v3588
        %v3882 = vpop.f32.mrb[0].mxu0
        %v3883 = vadd.f32 %v3738, %v3882
        %v3884 = vpop.f32.mrb[0].mxu0
        %3885 = vmatprep.mubr.f32.mxu0 %v3595
        %3886 = vmatmul.mubr.f32.gmra.mrb[0].mxu0 %v3594
        %v3887 = vpop.f32.mrb[0].mxu0
        %v3888 = vadd.f32 %v3743, %v3887
        %v3889 = vpop.f32.mrb[0].mxu0
        %3890 = vmatprep.mubr.f32.mxu0 %v3601
        %3891 = vmatmul.mubr.f32.gmra.mrb[0].mxu0 %v3600
        %v3892 = vpop.f32.mrb[0].mxu0
        %v3893 = vadd.f32 %v3748, %v3892
        %v3894 = vpop.f32.mrb[0].mxu0
        %3895 = vmatprep.mubr.f32.mxu0 %v3607
        %3896 = vmatmul.mubr.f32.gmra.mrb[0].mxu0 %v3606
        %v3897 = vpop.f32.mrb[0].mxu0
        %v3898 = vadd.f32 %v3753, %v3897
        %v3899 = vpop.f32.mrb[0].mxu0
        %3900 = vmatprep.mubr.f32.mxu0 %v3613
        %3901 = vmatmul.mubr.f32.gmra.mrb[0].mxu0 %v3612
        %v3902 = vpop.f32.mrb[0].mxu0
        %v3903 = vadd.f32 %v3758, %v3902
        %v3904 = vpop.f32.mrb[0].mxu0
        %3905 = vdwg.mxu0
        %3906 = vmatprep.subr.mxu0 0.0
        %3907 = vmatpush1.msra.mxu0 %v3488
        %3908 = vmatprep.subr.mxu0 0.0
        %3909 = vmatpush1.msra.mxu0 %v3489
        %3910 = vmatprep.subr.mxu0 0.0
        %3911 = vmatpush1.msra.mxu0 %v3490
        %3912 = vmatprep.subr.mxu0 0.0
        %3913 = vmatpush1.msra.mxu0 %v3491
        %3914 = vmatprep.subr.mxu0 0.0
        %3915 = vmatpush1.msra.mxu0 %v3492
        %3916 = vmatprep.subr.mxu0 0.0
        %3917 = vmatpush1.msra.mxu0 %v3493
        %3918 = vmatprep.subr.mxu0 0.0
        %3919 = vmatpush1.msra.mxu0 %v3494
        %3920 = vmatprep.subr.mxu0 0.0
        %3921 = vmatpush1.msra.mxu0 %v3495
        %3922 = vmatprep.subr.mxu0 0.0
        %3923 = vmatpush1.msra.mxu0 %v3496
        %3924 = vmatprep.subr.mxu0 0.0
        %3925 = vmatpush1.msra.mxu0 %v3497
        %3926 = vmatprep.subr.mxu0 0.0
        %3927 = vmatpush1.msra.mxu0 %v3498
        %3928 = vmatprep.subr.mxu0 0.0
        %3929 = vmatpush1.msra.mxu0 %v3499
        %3930 = vmatprep.subr.mxu0 0.0
        %3931 = vmatpush1.msra.mxu0 %v3500
        %3932 = vmatprep.subr.mxu0 0.0
        %3933 = vmatpush1.msra.mxu0 %v3501
        %3934 = vmatprep.subr.mxu0 0.0
        %3935 = vmatpush1.msra.mxu0 %v3502
        %3936 = vmatprep.subr.mxu0 0.0
        %3937 = vmatpush1.msra.mxu0 %v3503
        %3938 = vmatprep.subr.mxu0 0.0
        %3939 = vmatpush1.msra.mxu0 %v3504
        %3940 = vmatprep.subr.mxu0 0.0
        %3941 = vmatpush1.msra.mxu0 %v3505
        %3942 = vmatprep.subr.mxu0 0.0
        %3943 = vmatpush1.msra.mxu0 %v3506
        %3944 = vmatprep.subr.mxu0 0.0
        %3945 = vmatpush1.msra.mxu0 %v3507
        %3946 = vmatprep.subr.mxu0 0.0
        %3947 = vmatpush1.msra.mxu0 %v3508
        %3948 = vmatprep.subr.mxu0 0.0
        %3949 = vmatpush1.msra.mxu0 %v3509
        %3950 = vmatprep.subr.mxu0 0.0
        %3951 = vmatpush1.msra.mxu0 %v3510
        %3952 = vmatprep.subr.mxu0 0.0
        %3953 = vmatpush1.msra.mxu0 %v3511
        %3954 = vmatprep.subr.mxu0 0.0
        %3955 = vmatpush1.msra.mxu0 %v3512
        %3956 = vmatprep.subr.mxu0 0.0
        %3957 = vmatpush1.msra.mxu0 %v3513
        %3958 = vmatprep.subr.mxu0 0.0
        %3959 = vmatpush1.msra.mxu0 %v3514
        %3960 = vmatprep.subr.mxu0 0.0
        %3961 = vmatpush1.msra.mxu0 %v3515
        %3962 = vmatprep.subr.mxu0 0.0
        %3963 = vmatpush1.msra.mxu0 %v3516
        %3964 = vmatprep.subr.mxu0 0.0
        %3965 = vmatpush1.msra.mxu0 %v3517
        %3966 = vmatprep.subr.mxu0 0.0
        %3967 = vmatpush1.msra.mxu0 %v3518
        %3968 = vmatprep.subr.mxu0 0.0
        %3969 = vmatpush1.msra.mxu0 %v3519
        %3970 = vmatprep.mubr.f32.mxu0 %v3525
        %3971 = vmatmul.mubr.f32.gmra.mrb[0].mxu0 %v3524
        %v3972 = vpop.f32.mrb[0].mxu0
        %v3973 = vadd.f32 %v3828, %v3972
        %v3974 = vpop.f32.mrb[0].mxu0
        %3975 = vmatprep.mubr.f32.mxu0 %v3531
        %3976 = vmatmul.mubr.f32.gmra.mrb[0].mxu0 %v3530
        %v3977 = vpop.f32.mrb[0].mxu0
        %v3978 = vadd.f32 %v3833, %v3977
        %v3979 = vpop.f32.mrb[0].mxu0
        %3980 = vmatprep.mubr.f32.mxu0 %v3537
        %3981 = vmatmul.mubr.f32.gmra.mrb[0].mxu0 %v3536
        %v3982 = vpop.f32.mrb[0].mxu0
        %v3983 = vadd.f32 %v3838, %v3982
        %v3984 = vpop.f32.mrb[0].mxu0
        %3985 = vmatprep.mubr.f32.mxu0 %v3543
        %3986 = vmatmul.mubr.f32.gmra.mrb[0].mxu0 %v3542
        %v3987 = vpop.f32.mrb[0].mxu0
        %v3988 = vadd.f32 %v3843, %v3987
        %v3989 = vpop.f32.mrb[0].mxu0
        %3990 = vmatprep.mubr.f32.mxu0 %v3549
        %3991 = vmatmul.mubr.f32.gmra.mrb[0].mxu0 %v3548
        %v3992 = vpop.f32.mrb[0].mxu0
        %v3993 = vadd.f32 %v3848, %v3992
        %v3994 = vpop.f32.mrb[0].mxu0
        %3995 = vmatprep.mubr.f32.mxu0 %v3555
        %3996 = vmatmul.mubr.f32.gmra.mrb[0].mxu0 %v3554
        %v3997 = vpop.f32.mrb[0].mxu0
        %v3998 = vadd.f32 %v3853, %v3997
        %v3999 = vpop.f32.mrb[0].mxu0
        %4000 = vmatprep.mubr.f32.mxu0 %v3561
        %4001 = vmatmul.mubr.f32.gmra.mrb[0].mxu0 %v3560
        %v4002 = vpop.f32.mrb[0].mxu0
        %v4003 = vadd.f32 %v3858, %v4002
        %v4004 = vpop.f32.mrb[0].mxu0
        %4005 = vmatprep.mubr.f32.mxu0 %v3567
        %4006 = vmatmul.mubr.f32.gmra.mrb[0].mxu0 %v3566
        %v4007 = vpop.f32.mrb[0].mxu0
        %v4008 = vadd.f32 %v3863, %v4007
        %v4009 = vpop.f32.mrb[0].mxu0
        %4010 = vmatprep.mubr.f32.mxu0 %v3573
        %4011 = vmatmul.mubr.f32.gmra.mrb[0].mxu0 %v3572
        %v4012 = vpop.f32.mrb[0].mxu0
        %v4013 = vadd.f32 %v3868, %v4012
        %v4014 = vpop.f32.mrb[0].mxu0
        %4015 = vmatprep.mubr.f32.mxu0 %v3579
        %4016 = vmatmul.mubr.f32.gmra.mrb[0].mxu0 %v3578
        %v4017 = vpop.f32.mrb[0].mxu0
        %v4018 = vadd.f32 %v3873, %v4017
        %v4019 = vpop.f32.mrb[0].mxu0
        %4020 = vmatprep.mubr.f32.mxu0 %v3585
        %4021 = vmatmul.mubr.f32.gmra.mrb[0].mxu0 %v3584
        %v4022 = vpop.f32.mrb[0].mxu0
        %v4023 = vadd.f32 %v3878, %v4022
        %v4024 = vpop.f32.mrb[0].mxu0
        %4025 = vmatprep.mubr.f32.mxu0 %v3591
        %4026 = vmatmul.mubr.f32.gmra.mrb[0].mxu0 %v3590
        %v4027 = vpop.f32.mrb[0].mxu0
        %v4028 = vadd.f32 %v3883, %v4027
        %v4029 = vpop.f32.mrb[0].mxu0
        %4030 = vmatprep.mubr.f32.mxu0 %v3597
        %4031 = vmatmul.mubr.f32.gmra.mrb[0].mxu0 %v3596
        %v4032 = vpop.f32.mrb[0].mxu0
        %v4033 = vadd.f32 %v3888, %v4032
        %v4034 = vpop.f32.mrb[0].mxu0
        %4035 = vmatprep.mubr.f32.mxu0 %v3603
        %4036 = vmatmul.mubr.f32.gmra.mrb[0].mxu0 %v3602
        %v4037 = vpop.f32.mrb[0].mxu0
        %v4038 = vadd.f32 %v3893, %v4037
        %v4039 = vpop.f32.mrb[0].mxu0
        %4040 = vmatprep.mubr.f32.mxu0 %v3609
        %4041 = vmatmul.mubr.f32.gmra.mrb[0].mxu0 %v3608
        %v4042 = vpop.f32.mrb[0].mxu0
        %v4043 = vadd.f32 %v3898, %v4042
        %v4044 = vpop.f32.mrb[0].mxu0
        %4045 = vmatprep.mubr.f32.mxu0 %v3615
        %4046 = vmatmul.mubr.f32.gmra.mrb[0].mxu0 %v3614
        %v4047 = vpop.f32.mrb[0].mxu0
        %v4048 = vadd.f32 %v3903, %v4047
        %v4049 = vpop.f32.mrb[0].mxu0
        %4050 = vdwg.mxu0
        %v4051 = vadd.f32 %v3973, %v3978
        %v4052 = vadd.f32 %v4051, %v3983
        %v4053 = vadd.f32 %v4052, %v3988
        %v4054 = vadd.f32 %v4053, %v3993
        %v4055 = vadd.f32 %v4054, %v3998
        %v4056 = vadd.f32 %v4055, %v4003
        %v4057 = vadd.f32 %v4056, %v4008
        %v4058 = vadd.f32 %v4057, %v4013
        %v4059 = vadd.f32 %v4058, %v4018
        %v4060 = vadd.f32 %v4059, %v4023
        %v4061 = vadd.f32 %v4060, %v4028
        %v4062 = vadd.f32 %v4061, %v4033
        %v4063 = vadd.f32 %v4062, %v4038
        %v4064 = vadd.f32 %v4063, %v4043
        %v4065 = vadd.f32 %v4064, %v4048
        %v4066 = vrot.slane %v4065, 4
        %v4067 = vadd.f32 %v4065, %v4066
        %v4068 = vrot.slane %v4067, 2
        %v4069 = vadd.f32 %v4067, %v4068
        %v4070 = vrot.slane %v4069, 1
        %v4071 = vadd.f32 %v4069, %v4070
        %v4072 = vmul.f32 %v3973, %v3973
        %v4073 = vmul.f32 %v3978, %v3978
        %v4074 = vmul.f32 %v3983, %v3983
        %v4075 = vmul.f32 %v3988, %v3988
        %v4076 = vmul.f32 %v3993, %v3993
        %v4077 = vmul.f32 %v3998, %v3998
        %v4078 = vmul.f32 %v4003, %v4003
        %v4079 = vmul.f32 %v4008, %v4008
        %v4080 = vmul.f32 %v4013, %v4013
        %v4081 = vmul.f32 %v4018, %v4018
        %v4082 = vmul.f32 %v4023, %v4023
        %v4083 = vmul.f32 %v4028, %v4028
        %v4084 = vmul.f32 %v4033, %v4033
        %v4085 = vmul.f32 %v4038, %v4038
        %v4086 = vmul.f32 %v4043, %v4043
        %v4087 = vmul.f32 %v4048, %v4048
        %v4088 = vadd.f32 %v4072, %v4073
        %v4089 = vadd.f32 %v4088, %v4074
        %v4090 = vadd.f32 %v4089, %v4075
        %v4091 = vadd.f32 %v4090, %v4076
        %v4092 = vadd.f32 %v4091, %v4077
        %v4093 = vadd.f32 %v4092, %v4078
        %v4094 = vadd.f32 %v4093, %v4079
        %v4095 = vadd.f32 %v4094, %v4080
        %v4096 = vadd.f32 %v4095, %v4081
        %v4097 = vadd.f32 %v4096, %v4082
        %v4098 = vadd.f32 %v4097, %v4083
        %v4099 = vadd.f32 %v4098, %v4084
        %v4100 = vadd.f32 %v4099, %v4085
        %v4101 = vadd.f32 %v4100, %v4086
        %v4102 = vadd.f32 %v4101, %v4087
        %v4103 = vrot.slane %v4102, 4
        %v4104 = vadd.f32 %v4102, %v4103
        %v4105 = vrot.slane %v4104, 2
        %v4106 = vadd.f32 %v4104, %v4105
        %v4107 = vrot.slane %v4106, 1
        %v4108 = vadd.f32 %v4106, %v4107
        %v4109 = vmul.f32 %v4071, %v4071
        %v4110 = vsub.f32 %v4109, %v4108
        %v4111 = vmul.f32 %v4110, 0.5
        %v4112 = vpack.c.bf16 %v3978, %v3973
        %v4113 = vpack.c.bf16 %v3988, %v3983
        %v4114 = vpack.c.bf16 %v3998, %v3993
        %v4115 = vpack.c.bf16 %v4008, %v4003
        %v4116 = vpack.c.bf16 %v4018, %v4013
        %v4117 = vpack.c.bf16 %v4028, %v4023
        %v4118 = vpack.c.bf16 %v4038, %v4033
        %v4119 = vpack.c.bf16 %v4048, %v4043
        %v4120 = vld [vmem:[%s2] sm:$0xf]
        %v4121 = vld [vmem:[%s2 + $0x4] sm:$0xf]
        %v4122 = vld [vmem:[%s2 + $0x8] sm:$0xf]
        %v4123 = vld [vmem:[%s2 + $0xc] sm:$0xf]
        %v4124 = vld [vmem:[%s2 + $0x10] sm:$0xf]
        %v4125 = vld [vmem:[%s2 + $0x14] sm:$0xf]
        %v4126 = vld [vmem:[%s2 + $0x18] sm:$0xf]
        %v4127 = vld [vmem:[%s2 + $0x1c] sm:$0xf]
        %v4128 = vld [vmem:[%s2 + $0x20] sm:$0xf]
        %v4129 = vld [vmem:[%s2 + $0x24] sm:$0xf]
        %v4130 = vld [vmem:[%s2 + $0x28] sm:$0xf]
        %v4131 = vld [vmem:[%s2 + $0x2c] sm:$0xf]
        %v4132 = vld [vmem:[%s2 + $0x30] sm:$0xf]
        %v4133 = vld [vmem:[%s2 + $0x34] sm:$0xf]
        %v4134 = vld [vmem:[%s2 + $0x38] sm:$0xf]
        %v4135 = vld [vmem:[%s2 + $0x3c] sm:$0xf]
        %v4136 = vld [vmem:[%s3] sm:$0xff]
        %v4137 = vld [vmem:[%s3 + $0x8] sm:$0xff]
        %v4138 = vld [vmem:[%s3 + $0x10] sm:$0xff]
        %v4139 = vld [vmem:[%s3 + $0x18] sm:$0xff]
        %v4140 = vld [vmem:[%s3 + $0x20] sm:$0xff]
        %v4141 = vld [vmem:[%s3 + $0x28] sm:$0xff]
        %v4142 = vld [vmem:[%s3 + $0x30] sm:$0xff]
        %v4143 = vld [vmem:[%s3 + $0x38] sm:$0xff]
        %v4144 = vld [vmem:[%s3 + $0x40] sm:$0xff]
        %v4145 = vld [vmem:[%s3 + $0x48] sm:$0xff]
        %v4146 = vld [vmem:[%s3 + $0x50] sm:$0xff]
        %v4147 = vld [vmem:[%s3 + $0x58] sm:$0xff]
        %v4148 = vld [vmem:[%s3 + $0x60] sm:$0xff]
        %v4149 = vld [vmem:[%s3 + $0x68] sm:$0xff]
        %v4150 = vld [vmem:[%s3 + $0x70] sm:$0xff]
        %v4151 = vld [vmem:[%s3 + $0x78] sm:$0xff]
        %4153 = vset.pattern.permute.xlu0 0
        %4154 = vperm.xlu0 %4153, %v4136
        %v4155 = vpop.permute.xlu0 %4154
        %4158 = vset.pattern.permute.xlu0 0
        %4159 = vperm.xlu0 %4158, %v4137
        %v4160 = vpop.permute.xlu0 %4159
        %4163 = vset.pattern.permute.xlu0 0
        %4164 = vperm.xlu0 %4163, %v4138
        %v4165 = vpop.permute.xlu0 %4164
        %4168 = vset.pattern.permute.xlu0 0
        %4169 = vperm.xlu0 %4168, %v4139
        %v4170 = vpop.permute.xlu0 %4169
        %4173 = vset.pattern.permute.xlu0 0
        %4174 = vperm.xlu0 %4173, %v4140
        %v4175 = vpop.permute.xlu0 %4174
        %4178 = vset.pattern.permute.xlu0 0
        %4179 = vperm.xlu0 %4178, %v4141
        %v4180 = vpop.permute.xlu0 %4179
        %4183 = vset.pattern.permute.xlu0 0
        %4184 = vperm.xlu0 %4183, %v4142
        %v4185 = vpop.permute.xlu0 %4184
        %4188 = vset.pattern.permute.xlu0 0
        %4189 = vperm.xlu0 %4188, %v4143
        %v4190 = vpop.permute.xlu0 %4189
        %4193 = vset.pattern.permute.xlu0 0
        %4194 = vperm.xlu0 %4193, %v4144
        %v4195 = vpop.permute.xlu0 %4194
        %4198 = vset.pattern.permute.xlu0 0
        %4199 = vperm.xlu0 %4198, %v4145
        %v4200 = vpop.permute.xlu0 %4199
        %4203 = vset.pattern.permute.xlu0 0
        %4204 = vperm.xlu0 %4203, %v4146
        %v4205 = vpop.permute.xlu0 %4204
        %4208 = vset.pattern.permute.xlu0 0
        %4209 = vperm.xlu0 %4208, %v4147
        %v4210 = vpop.permute.xlu0 %4209
        %4213 = vset.pattern.permute.xlu0 0
        %4214 = vperm.xlu0 %4213, %v4148
        %v4215 = vpop.permute.xlu0 %4214
        %4218 = vset.pattern.permute.xlu0 0
        %4219 = vperm.xlu0 %4218, %v4149
        %v4220 = vpop.permute.xlu0 %4219
        %4223 = vset.pattern.permute.xlu0 0
        %4224 = vperm.xlu0 %4223, %v4150
        %v4225 = vpop.permute.xlu0 %4224
        %4228 = vset.pattern.permute.xlu0 0
        %4229 = vperm.xlu0 %4228, %v4151
        %v4230 = vpop.permute.xlu0 %4229
        %v4248 = vunpack.c.l.b16 %v4120
        %v4249 = vunpack.c.l.b16 %v4121
        %v4250 = vunpack.c.l.b16 %v4122
        %v4251 = vunpack.c.l.b16 %v4123
        %v4252 = vunpack.c.l.b16 %v4124
        %v4253 = vunpack.c.l.b16 %v4125
        %v4254 = vunpack.c.l.b16 %v4126
        %v4255 = vunpack.c.l.b16 %v4127
        %v4256 = vunpack.c.l.b16 %v4128
        %v4257 = vunpack.c.l.b16 %v4129
        %v4258 = vunpack.c.l.b16 %v4130
        %v4259 = vunpack.c.l.b16 %v4131
        %v4260 = vunpack.c.l.b16 %v4132
        %v4261 = vunpack.c.l.b16 %v4133
        %v4262 = vunpack.c.l.b16 %v4134
        %v4263 = vunpack.c.l.b16 %v4135
        %v4264 = vpack.c.b16 %v4249, %v4248
        %v4265 = vpack.c.b16 %v4251, %v4250
        %v4266 = vpack.c.b16 %v4253, %v4252
        %v4267 = vpack.c.b16 %v4255, %v4254
        %v4268 = vpack.c.b16 %v4257, %v4256
        %v4269 = vpack.c.b16 %v4259, %v4258
        %v4270 = vpack.c.b16 %v4261, %v4260
        %v4271 = vpack.c.b16 %v4263, %v4262
        %4280 = vmatprep.subr.bf16.mxu0 0
        %4281 = vmatpush1.bf16.msra.mxu0 %v4112
        %4282 = vmatprep.subr.bf16.mxu0 0
        %4283 = vmatpush1.bf16.msra.mxu0 %v4113
        %4284 = vmatprep.subr.bf16.mxu0 0
        %4285 = vmatpush1.bf16.msra.mxu0 %v4114
        %4286 = vmatprep.subr.bf16.mxu0 0
        %4287 = vmatpush1.bf16.msra.mxu0 %v4115
        %4288 = vmatprep.subr.bf16.mxu0 0
        %4289 = vmatpush1.bf16.msra.mxu0 %v4116
        %4290 = vmatprep.subr.bf16.mxu0 0
        %4291 = vmatpush1.bf16.msra.mxu0 %v4117
        %4292 = vmatprep.subr.bf16.mxu0 0
        %4293 = vmatpush1.bf16.msra.mxu0 %v4118
        %4294 = vmatprep.subr.bf16.mxu0 0
        %4295 = vmatpush1.bf16.msra.mxu0 %v4119
        %4296 = vmatprep.subr.bf16.mxu0 0
        %4297 = vmatpush1.bf16.msra.mxu0 0
        %4298 = vmatprep.subr.bf16.mxu0 0
        %4299 = vmatpush1.bf16.msra.mxu0 0
        %4300 = vmatprep.subr.bf16.mxu0 0
        %4301 = vmatpush1.bf16.msra.mxu0 0
        %4302 = vmatprep.subr.bf16.mxu0 0
        %4303 = vmatpush1.bf16.msra.mxu0 0
        %4304 = vmatprep.subr.bf16.mxu0 0
        %4305 = vmatpush1.bf16.msra.mxu0 0
        %4306 = vmatprep.subr.bf16.mxu0 0
        %4307 = vmatpush1.bf16.msra.mxu0 0
        %4308 = vmatprep.subr.bf16.mxu0 0
        %4309 = vmatpush1.bf16.msra.mxu0 0
        %4310 = vmatprep.subr.bf16.mxu0 0
        %4311 = vmatpush1.bf16.msra.mxu0 0
        %4312 = vmatprep.mubr.bf16.mxu0 0
        %4313 = vmatmul.mubr.bf16.gmra.mrb[0].mxu0 %v4264
        %v4314 = vpop.f32.mrb[0].mxu0
        %v4315 = vadd.f32 %v4155, %v4314
        %v4316 = vpop.f32.mrb[0].mxu0
        %v4317 = vpop.f32.mrb[0].mxu0
        %v4318 = vadd.f32 %v4160, %v4317
        %v4319 = vpop.f32.mrb[0].mxu0
        %4320 = vmatprep.mubr.bf16.mxu0 0
        %4321 = vmatmul.mubr.bf16.gmra.mrb[0].mxu0 %v4265
        %v4322 = vpop.f32.mrb[0].mxu0
        %v4323 = vadd.f32 %v4165, %v4322
        %v4324 = vpop.f32.mrb[0].mxu0
        %v4325 = vpop.f32.mrb[0].mxu0
        %v4326 = vadd.f32 %v4170, %v4325
        %v4327 = vpop.f32.mrb[0].mxu0
        %4328 = vmatprep.mubr.bf16.mxu0 0
        %4329 = vmatmul.mubr.bf16.gmra.mrb[0].mxu0 %v4266
        %v4330 = vpop.f32.mrb[0].mxu0
        %v4331 = vadd.f32 %v4175, %v4330
        %v4332 = vpop.f32.mrb[0].mxu0
        %v4333 = vpop.f32.mrb[0].mxu0
        %v4334 = vadd.f32 %v4180, %v4333
        %v4335 = vpop.f32.mrb[0].mxu0
        %4336 = vmatprep.mubr.bf16.mxu0 0
        %4337 = vmatmul.mubr.bf16.gmra.mrb[0].mxu0 %v4267
        %v4338 = vpop.f32.mrb[0].mxu0
        %v4339 = vadd.f32 %v4185, %v4338
        %v4340 = vpop.f32.mrb[0].mxu0
        %v4341 = vpop.f32.mrb[0].mxu0
        %v4342 = vadd.f32 %v4190, %v4341
        %v4343 = vpop.f32.mrb[0].mxu0
        %4344 = vmatprep.mubr.bf16.mxu0 0
        %4345 = vmatmul.mubr.bf16.gmra.mrb[0].mxu0 %v4268
        %v4346 = vpop.f32.mrb[0].mxu0
        %v4347 = vadd.f32 %v4195, %v4346
        %v4348 = vpop.f32.mrb[0].mxu0
        %v4349 = vpop.f32.mrb[0].mxu0
        %v4350 = vadd.f32 %v4200, %v4349
        %v4351 = vpop.f32.mrb[0].mxu0
        %4352 = vmatprep.mubr.bf16.mxu0 0
        %4353 = vmatmul.mubr.bf16.gmra.mrb[0].mxu0 %v4269
        %v4354 = vpop.f32.mrb[0].mxu0
        %v4355 = vadd.f32 %v4205, %v4354
        %v4356 = vpop.f32.mrb[0].mxu0
        %v4357 = vpop.f32.mrb[0].mxu0
        %v4358 = vadd.f32 %v4210, %v4357
        %v4359 = vpop.f32.mrb[0].mxu0
        %4360 = vmatprep.mubr.bf16.mxu0 0
        %4361 = vmatmul.mubr.bf16.gmra.mrb[0].mxu0 %v4270
        %v4362 = vpop.f32.mrb[0].mxu0
        %v4363 = vadd.f32 %v4215, %v4362
        %v4364 = vpop.f32.mrb[0].mxu0
        %v4365 = vpop.f32.mrb[0].mxu0
        %v4366 = vadd.f32 %v4220, %v4365
        %v4367 = vpop.f32.mrb[0].mxu0
        %4368 = vmatprep.mubr.bf16.mxu0 0
        %4369 = vmatmul.mubr.bf16.gmra.mrb[0].mxu0 %v4271
        %v4370 = vpop.f32.mrb[0].mxu0
        %v4371 = vadd.f32 %v4225, %v4370
        %v4372 = vpop.f32.mrb[0].mxu0
        %v4373 = vpop.f32.mrb[0].mxu0
        %v4374 = vadd.f32 %v4230, %v4373
        %v4375 = vpop.f32.mrb[0].mxu0
        %4376 = vdwg.mxu0
        %v4377 = vmax.f32 %v4315, 0.0
        %v4378 = vmax.f32 %v4318, 0.0
        %v4379 = vmax.f32 %v4323, 0.0
        %v4380 = vmax.f32 %v4326, 0.0
        %v4381 = vmax.f32 %v4331, 0.0
        %v4382 = vmax.f32 %v4334, 0.0
        %v4383 = vmax.f32 %v4339, 0.0
        %v4384 = vmax.f32 %v4342, 0.0
        %v4385 = vmax.f32 %v4347, 0.0
        %v4386 = vmax.f32 %v4350, 0.0
        %v4387 = vmax.f32 %v4355, 0.0
        %v4388 = vmax.f32 %v4358, 0.0
        %v4389 = vmax.f32 %v4363, 0.0
        %v4390 = vmax.f32 %v4366, 0.0
        %v4391 = vmax.f32 %v4371, 0.0
        %v4392 = vmax.f32 %v4374, 0.0
        %v4393 = vpack.c.bf16 %v4378, %v4377
        %v4394 = vpack.c.bf16 %v4380, %v4379
        %v4395 = vpack.c.bf16 %v4382, %v4381
        %v4396 = vpack.c.bf16 %v4384, %v4383
        %v4397 = vpack.c.bf16 %v4386, %v4385
        %v4398 = vpack.c.bf16 %v4388, %v4387
        %v4399 = vpack.c.bf16 %v4390, %v4389
        %v4400 = vpack.c.bf16 %v4392, %v4391
        %v4401 = vld [vmem:[%s4] sm:$0xf]
        %v4402 = vld [vmem:[%s4 + $0x4] sm:$0xf]
        %v4403 = vld [vmem:[%s4 + $0x8] sm:$0xf]
        %v4404 = vld [vmem:[%s4 + $0xc] sm:$0xf]
        %v4405 = vld [vmem:[%s4 + $0x10] sm:$0xf]
        %v4406 = vld [vmem:[%s4 + $0x14] sm:$0xf]
        %v4407 = vld [vmem:[%s4 + $0x18] sm:$0xf]
        %v4408 = vld [vmem:[%s4 + $0x1c] sm:$0xf]
        %v4409 = vld [vmem:[%s4 + $0x20] sm:$0xf]
        %v4410 = vld [vmem:[%s4 + $0x24] sm:$0xf]
        %v4411 = vld [vmem:[%s4 + $0x28] sm:$0xf]
        %v4412 = vld [vmem:[%s4 + $0x2c] sm:$0xf]
        %v4413 = vld [vmem:[%s4 + $0x30] sm:$0xf]
        %v4414 = vld [vmem:[%s4 + $0x34] sm:$0xf]
        %v4415 = vld [vmem:[%s4 + $0x38] sm:$0xf]
        %v4416 = vld [vmem:[%s4 + $0x3c] sm:$0xf]
        %v4417 = vld [vmem:[%s5] sm:$0xff]
        %v4418 = vld [vmem:[%s5 + $0x8] sm:$0xff]
        %v4419 = vld [vmem:[%s5 + $0x10] sm:$0xff]
        %v4420 = vld [vmem:[%s5 + $0x18] sm:$0xff]
        %v4421 = vld [vmem:[%s5 + $0x20] sm:$0xff]
        %v4422 = vld [vmem:[%s5 + $0x28] sm:$0xff]
        %v4423 = vld [vmem:[%s5 + $0x30] sm:$0xff]
        %v4424 = vld [vmem:[%s5 + $0x38] sm:$0xff]
        %v4425 = vld [vmem:[%s5 + $0x40] sm:$0xff]
        %v4426 = vld [vmem:[%s5 + $0x48] sm:$0xff]
        %v4427 = vld [vmem:[%s5 + $0x50] sm:$0xff]
        %v4428 = vld [vmem:[%s5 + $0x58] sm:$0xff]
        %v4429 = vld [vmem:[%s5 + $0x60] sm:$0xff]
        %v4430 = vld [vmem:[%s5 + $0x68] sm:$0xff]
        %v4431 = vld [vmem:[%s5 + $0x70] sm:$0xff]
        %v4432 = vld [vmem:[%s5 + $0x78] sm:$0xff]
        %4434 = vset.pattern.permute.xlu0 0
        %4435 = vperm.xlu0 %4434, %v4417
        %v4436 = vpop.permute.xlu0 %4435
        %4439 = vset.pattern.permute.xlu0 0
        %4440 = vperm.xlu0 %4439, %v4418
        %v4441 = vpop.permute.xlu0 %4440
        %4444 = vset.pattern.permute.xlu0 0
        %4445 = vperm.xlu0 %4444, %v4419
        %v4446 = vpop.permute.xlu0 %4445
        %4449 = vset.pattern.permute.xlu0 0
        %4450 = vperm.xlu0 %4449, %v4420
        %v4451 = vpop.permute.xlu0 %4450
        %4454 = vset.pattern.permute.xlu0 0
        %4455 = vperm.xlu0 %4454, %v4421
        %v4456 = vpop.permute.xlu0 %4455
        %4459 = vset.pattern.permute.xlu0 0
        %4460 = vperm.xlu0 %4459, %v4422
        %v4461 = vpop.permute.xlu0 %4460
        %4464 = vset.pattern.permute.xlu0 0
        %4465 = vperm.xlu0 %4464, %v4423
        %v4466 = vpop.permute.xlu0 %4465
        %4469 = vset.pattern.permute.xlu0 0
        %4470 = vperm.xlu0 %4469, %v4424
        %v4471 = vpop.permute.xlu0 %4470
        %4474 = vset.pattern.permute.xlu0 0
        %4475 = vperm.xlu0 %4474, %v4425
        %v4476 = vpop.permute.xlu0 %4475
        %4479 = vset.pattern.permute.xlu0 0
        %4480 = vperm.xlu0 %4479, %v4426
        %v4481 = vpop.permute.xlu0 %4480
        %4484 = vset.pattern.permute.xlu0 0
        %4485 = vperm.xlu0 %4484, %v4427
        %v4486 = vpop.permute.xlu0 %4485
        %4489 = vset.pattern.permute.xlu0 0
        %4490 = vperm.xlu0 %4489, %v4428
        %v4491 = vpop.permute.xlu0 %4490
        %4494 = vset.pattern.permute.xlu0 0
        %4495 = vperm.xlu0 %4494, %v4429
        %v4496 = vpop.permute.xlu0 %4495
        %4499 = vset.pattern.permute.xlu0 0
        %4500 = vperm.xlu0 %4499, %v4430
        %v4501 = vpop.permute.xlu0 %4500
        %4504 = vset.pattern.permute.xlu0 0
        %4505 = vperm.xlu0 %4504, %v4431
        %v4506 = vpop.permute.xlu0 %4505
        %4509 = vset.pattern.permute.xlu0 0
        %4510 = vperm.xlu0 %4509, %v4432
        %v4511 = vpop.permute.xlu0 %4510
        %v4529 = vunpack.c.l.b16 %v4401
        %v4530 = vunpack.c.l.b16 %v4402
        %v4531 = vunpack.c.l.b16 %v4403
        %v4532 = vunpack.c.l.b16 %v4404
        %v4533 = vunpack.c.l.b16 %v4405
        %v4534 = vunpack.c.l.b16 %v4406
        %v4535 = vunpack.c.l.b16 %v4407
        %v4536 = vunpack.c.l.b16 %v4408
        %v4537 = vunpack.c.l.b16 %v4409
        %v4538 = vunpack.c.l.b16 %v4410
        %v4539 = vunpack.c.l.b16 %v4411
        %v4540 = vunpack.c.l.b16 %v4412
        %v4541 = vunpack.c.l.b16 %v4413
        %v4542 = vunpack.c.l.b16 %v4414
        %v4543 = vunpack.c.l.b16 %v4415
        %v4544 = vunpack.c.l.b16 %v4416
        %v4545 = vpack.c.b16 %v4530, %v4529
        %v4546 = vpack.c.b16 %v4532, %v4531
        %v4547 = vpack.c.b16 %v4534, %v4533
        %v4548 = vpack.c.b16 %v4536, %v4535
        %v4549 = vpack.c.b16 %v4538, %v4537
        %v4550 = vpack.c.b16 %v4540, %v4539
        %v4551 = vpack.c.b16 %v4542, %v4541
        %v4552 = vpack.c.b16 %v4544, %v4543
        %4561 = vmatprep.subr.bf16.mxu0 0
        %4562 = vmatpush1.bf16.msra.mxu0 %v4393
        %4563 = vmatprep.subr.bf16.mxu0 0
        %4564 = vmatpush1.bf16.msra.mxu0 %v4394
        %4565 = vmatprep.subr.bf16.mxu0 0
        %4566 = vmatpush1.bf16.msra.mxu0 %v4395
        %4567 = vmatprep.subr.bf16.mxu0 0
        %4568 = vmatpush1.bf16.msra.mxu0 %v4396
        %4569 = vmatprep.subr.bf16.mxu0 0
        %4570 = vmatpush1.bf16.msra.mxu0 %v4397
        %4571 = vmatprep.subr.bf16.mxu0 0
        %4572 = vmatpush1.bf16.msra.mxu0 %v4398
        %4573 = vmatprep.subr.bf16.mxu0 0
        %4574 = vmatpush1.bf16.msra.mxu0 %v4399
        %4575 = vmatprep.subr.bf16.mxu0 0
        %4576 = vmatpush1.bf16.msra.mxu0 %v4400
        %4577 = vmatprep.subr.bf16.mxu0 0
        %4578 = vmatpush1.bf16.msra.mxu0 0
        %4579 = vmatprep.subr.bf16.mxu0 0
        %4580 = vmatpush1.bf16.msra.mxu0 0
        %4581 = vmatprep.subr.bf16.mxu0 0
        %4582 = vmatpush1.bf16.msra.mxu0 0
        %4583 = vmatprep.subr.bf16.mxu0 0
        %4584 = vmatpush1.bf16.msra.mxu0 0
        %4585 = vmatprep.subr.bf16.mxu0 0
        %4586 = vmatpush1.bf16.msra.mxu0 0
        %4587 = vmatprep.subr.bf16.mxu0 0
        %4588 = vmatpush1.bf16.msra.mxu0 0
        %4589 = vmatprep.subr.bf16.mxu0 0
        %4590 = vmatpush1.bf16.msra.mxu0 0
        %4591 = vmatprep.subr.bf16.mxu0 0
        %4592 = vmatpush1.bf16.msra.mxu0 0
        %4593 = vmatprep.mubr.bf16.mxu0 0
        %4594 = vmatmul.mubr.bf16.gmra.mrb[0].mxu0 %v4545
        %v4595 = vpop.f32.mrb[0].mxu0
        %v4596 = vadd.f32 %v4436, %v4595
        %v4597 = vpop.f32.mrb[0].mxu0
        %v4598 = vpop.f32.mrb[0].mxu0
        %v4599 = vadd.f32 %v4441, %v4598
        %v4600 = vpop.f32.mrb[0].mxu0
        %4601 = vmatprep.mubr.bf16.mxu0 0
        %4602 = vmatmul.mubr.bf16.gmra.mrb[0].mxu0 %v4546
        %v4603 = vpop.f32.mrb[0].mxu0
        %v4604 = vadd.f32 %v4446, %v4603
        %v4605 = vpop.f32.mrb[0].mxu0
        %v4606 = vpop.f32.mrb[0].mxu0
        %v4607 = vadd.f32 %v4451, %v4606
        %v4608 = vpop.f32.mrb[0].mxu0
        %4609 = vmatprep.mubr.bf16.mxu0 0
        %4610 = vmatmul.mubr.bf16.gmra.mrb[0].mxu0 %v4547
        %v4611 = vpop.f32.mrb[0].mxu0
        %v4612 = vadd.f32 %v4456, %v4611
        %v4613 = vpop.f32.mrb[0].mxu0
        %v4614 = vpop.f32.mrb[0].mxu0
        %v4615 = vadd.f32 %v4461, %v4614
        %v4616 = vpop.f32.mrb[0].mxu0
        %4617 = vmatprep.mubr.bf16.mxu0 0
        %4618 = vmatmul.mubr.bf16.gmra.mrb[0].mxu0 %v4548
        %v4619 = vpop.f32.mrb[0].mxu0
        %v4620 = vadd.f32 %v4466, %v4619
        %v4621 = vpop.f32.mrb[0].mxu0
        %v4622 = vpop.f32.mrb[0].mxu0
        %v4623 = vadd.f32 %v4471, %v4622
        %v4624 = vpop.f32.mrb[0].mxu0
        %4625 = vmatprep.mubr.bf16.mxu0 0
        %4626 = vmatmul.mubr.bf16.gmra.mrb[0].mxu0 %v4549
        %v4627 = vpop.f32.mrb[0].mxu0
        %v4628 = vadd.f32 %v4476, %v4627
        %v4629 = vpop.f32.mrb[0].mxu0
        %v4630 = vpop.f32.mrb[0].mxu0
        %v4631 = vadd.f32 %v4481, %v4630
        %v4632 = vpop.f32.mrb[0].mxu0
        %4633 = vmatprep.mubr.bf16.mxu0 0
        %4634 = vmatmul.mubr.bf16.gmra.mrb[0].mxu0 %v4550
        %v4635 = vpop.f32.mrb[0].mxu0
        %v4636 = vadd.f32 %v4486, %v4635
        %v4637 = vpop.f32.mrb[0].mxu0
        %v4638 = vpop.f32.mrb[0].mxu0
        %v4639 = vadd.f32 %v4491, %v4638
        %v4640 = vpop.f32.mrb[0].mxu0
        %4641 = vmatprep.mubr.bf16.mxu0 0
        %4642 = vmatmul.mubr.bf16.gmra.mrb[0].mxu0 %v4551
        %v4643 = vpop.f32.mrb[0].mxu0
        %v4644 = vadd.f32 %v4496, %v4643
        %v4645 = vpop.f32.mrb[0].mxu0
        %v4646 = vpop.f32.mrb[0].mxu0
        %v4647 = vadd.f32 %v4501, %v4646
        %v4648 = vpop.f32.mrb[0].mxu0
        %4649 = vmatprep.mubr.bf16.mxu0 0
        %4650 = vmatmul.mubr.bf16.gmra.mrb[0].mxu0 %v4552
        %v4651 = vpop.f32.mrb[0].mxu0
        %v4652 = vadd.f32 %v4506, %v4651
        %v4653 = vpop.f32.mrb[0].mxu0
        %v4654 = vpop.f32.mrb[0].mxu0
        %v4655 = vadd.f32 %v4511, %v4654
        %v4656 = vpop.f32.mrb[0].mxu0
        %4657 = vdwg.mxu0
        %v4658 = vmax.f32 %v4596, 0.0
        %v4659 = vmax.f32 %v4599, 0.0
        %v4660 = vmax.f32 %v4604, 0.0
        %v4661 = vmax.f32 %v4607, 0.0
        %v4662 = vmax.f32 %v4612, 0.0
        %v4663 = vmax.f32 %v4615, 0.0
        %v4664 = vmax.f32 %v4620, 0.0
        %v4665 = vmax.f32 %v4623, 0.0
        %v4666 = vmax.f32 %v4628, 0.0
        %v4667 = vmax.f32 %v4631, 0.0
        %v4668 = vmax.f32 %v4636, 0.0
        %v4669 = vmax.f32 %v4639, 0.0
        %v4670 = vmax.f32 %v4644, 0.0
        %v4671 = vmax.f32 %v4647, 0.0
        %v4672 = vmax.f32 %v4652, 0.0
        %v4673 = vmax.f32 %v4655, 0.0
        %v4674 = vld [vmem:[%s6] sm:$0xff]
        %v4675 = vld [vmem:[%s6 + $0x8] sm:$0xff]
        %v4676 = vld [vmem:[%s6 + $0x10] sm:$0xff]
        %v4677 = vld [vmem:[%s6 + $0x18] sm:$0xff]
        %v4678 = vld [vmem:[%s6 + $0x20] sm:$0xff]
        %v4679 = vld [vmem:[%s6 + $0x28] sm:$0xff]
        %v4680 = vld [vmem:[%s6 + $0x30] sm:$0xff]
        %v4681 = vld [vmem:[%s6 + $0x38] sm:$0xff]
        %v4682 = vld [vmem:[%s6 + $0x40] sm:$0xff]
        %v4683 = vld [vmem:[%s6 + $0x48] sm:$0xff]
        %v4684 = vld [vmem:[%s6 + $0x50] sm:$0xff]
        %v4685 = vld [vmem:[%s6 + $0x58] sm:$0xff]
        %v4686 = vld [vmem:[%s6 + $0x60] sm:$0xff]
        %v4687 = vld [vmem:[%s6 + $0x68] sm:$0xff]
        %v4688 = vld [vmem:[%s6 + $0x70] sm:$0xff]
        %v4689 = vld [vmem:[%s6 + $0x78] sm:$0xff]
        %4691 = vset.pattern.permute.xlu0 0
        %4692 = vperm.xlu0 %4691, %v4674
        %v4693 = vpop.permute.xlu0 %4692
        %4696 = vset.pattern.permute.xlu0 0
        %4697 = vperm.xlu0 %4696, %v4675
        %v4698 = vpop.permute.xlu0 %4697
        %4701 = vset.pattern.permute.xlu0 0
        %4702 = vperm.xlu0 %4701, %v4676
        %v4703 = vpop.permute.xlu0 %4702
        %4706 = vset.pattern.permute.xlu0 0
        %4707 = vperm.xlu0 %4706, %v4677
        %v4708 = vpop.permute.xlu0 %4707
        %4711 = vset.pattern.permute.xlu0 0
        %4712 = vperm.xlu0 %4711, %v4678
        %v4713 = vpop.permute.xlu0 %4712
        %4716 = vset.pattern.permute.xlu0 0
        %4717 = vperm.xlu0 %4716, %v4679
        %v4718 = vpop.permute.xlu0 %4717
        %4721 = vset.pattern.permute.xlu0 0
        %4722 = vperm.xlu0 %4721, %v4680
        %v4723 = vpop.permute.xlu0 %4722
        %4726 = vset.pattern.permute.xlu0 0
        %4727 = vperm.xlu0 %4726, %v4681
        %v4728 = vpop.permute.xlu0 %4727
        %4731 = vset.pattern.permute.xlu0 0
        %4732 = vperm.xlu0 %4731, %v4682
        %v4733 = vpop.permute.xlu0 %4732
        %4736 = vset.pattern.permute.xlu0 0
        %4737 = vperm.xlu0 %4736, %v4683
        %v4738 = vpop.permute.xlu0 %4737
        %4741 = vset.pattern.permute.xlu0 0
        %4742 = vperm.xlu0 %4741, %v4684
        %v4743 = vpop.permute.xlu0 %4742
        %4746 = vset.pattern.permute.xlu0 0
        %4747 = vperm.xlu0 %4746, %v4685
        %v4748 = vpop.permute.xlu0 %4747
        %4751 = vset.pattern.permute.xlu0 0
        %4752 = vperm.xlu0 %4751, %v4686
        %v4753 = vpop.permute.xlu0 %4752
        %4756 = vset.pattern.permute.xlu0 0
        %4757 = vperm.xlu0 %4756, %v4687
        %v4758 = vpop.permute.xlu0 %4757
        %4761 = vset.pattern.permute.xlu0 0
        %4762 = vperm.xlu0 %4761, %v4688
        %v4763 = vpop.permute.xlu0 %4762
        %4766 = vset.pattern.permute.xlu0 0
        %4767 = vperm.xlu0 %4766, %v4689
        %v4768 = vpop.permute.xlu0 %4767
        %v4770 = vmul.f32 %v4658, %v4693
        %v4771 = vmul.f32 %v4659, %v4698
        %v4772 = vmul.f32 %v4660, %v4703
        %v4773 = vmul.f32 %v4661, %v4708
        %v4774 = vmul.f32 %v4662, %v4713
        %v4775 = vmul.f32 %v4663, %v4718
        %v4776 = vmul.f32 %v4664, %v4723
        %v4777 = vmul.f32 %v4665, %v4728
        %v4778 = vmul.f32 %v4666, %v4733
        %v4779 = vmul.f32 %v4667, %v4738
        %v4780 = vmul.f32 %v4668, %v4743
        %v4781 = vmul.f32 %v4669, %v4748
        %v4782 = vmul.f32 %v4670, %v4753
        %v4783 = vmul.f32 %v4671, %v4758
        %v4784 = vmul.f32 %v4672, %v4763
        %v4785 = vmul.f32 %v4673, %v4768
        %v4786 = vadd.f32 %v4770, %v4771
        %v4787 = vadd.f32 %v4786, %v4772
        %v4788 = vadd.f32 %v4787, %v4773
        %v4789 = vadd.f32 %v4788, %v4774
        %v4790 = vadd.f32 %v4789, %v4775
        %v4791 = vadd.f32 %v4790, %v4776
        %v4792 = vadd.f32 %v4791, %v4777
        %v4793 = vadd.f32 %v4792, %v4778
        %v4794 = vadd.f32 %v4793, %v4779
        %v4795 = vadd.f32 %v4794, %v4780
        %v4796 = vadd.f32 %v4795, %v4781
        %v4797 = vadd.f32 %v4796, %v4782
        %v4798 = vadd.f32 %v4797, %v4783
        %v4799 = vadd.f32 %v4798, %v4784
        %v4800 = vadd.f32 %v4799, %v4785
        %v4801 = vrot.slane %v4800, 4
        %v4802 = vadd.f32 %v4800, %v4801
        %v4803 = vrot.slane %v4802, 2
        %v4804 = vadd.f32 %v4802, %v4803
        %v4805 = vrot.slane %v4804, 1
        %v4806 = vadd.f32 %v4804, %v4805
        %v4807 = vld [vmem:[#allocation2] sm:$0x1]
        %4809 = vset.pattern.permute.xlu0 0
        %4810 = vperm.xlu0 %4809, %v4807
        %v4811 = vpop.permute.xlu0 %4810
        %v4813 = vlaneseq
        %v4814 = vshrl.u32 %v4813, 7
        %v4815 = vsub.s32 0, %v4814
        %v4816 = vrot.slane %v4811, %v4815
        %v4817 = vadd.f32 %v4806, %v4816
        %v4818 = vadd.f32 %v4111, %v4817
        %4819 = vst [vmem:[%s312] sm:$0x1] %v4818
        %s4820 = sand.u32 %s206, 1
        %s4821 = scalar_lea.sflag [#allocation5], %s4820
        %s4822 = sand.u32 %s206, 1
        %s4823 = scalar_lea.vmem [#allocation6], %s4822
        // Predicated region
        $region57: #{tpu_custom_call.1} parent=51 // pred_check
          %p4824 = pneg %p216
        $region58: #{tpu_custom_call.1} parent=51 // pred_check_branch
          %4826 = sbr.rel (%p4824) target = $region60
        $region59: #{tpu_custom_call.1} parent=51 // pred_region
          %s4828 = ssub.s32 16, 16
          %4829 = vsyncadd %s4821, %s4828
          %s4830 = smul.addr %s25, 16
          %s4831 = scalar_lea.hbm %s8, %s4830
          %s4833 = sshll.u32 %s4823, 4
          %s4834 = int_to_ptr.vmem [resolvable:$true] %s4833
          %4836 = dma.vmem_to_hbm [thread:$0]  %s4834, 16, %s4831, %s4821
        $region60: #{tpu_custom_call.1} parent=51 // pred_fallthru
          _
      $region52: #{tpu_custom_call.1} parent=5 // pred_fallthru
        _
      %p4837 = scmp.le.s32.totalorder 2, %s20
      // Predicated region
      $region61: #{tpu_custom_call.1} parent=5 // pred_check
        %p4838 = pneg %p4837
      $region62: #{tpu_custom_call.1} parent=5 // pred_check_branch
        %4840 = sbr.rel (%p4838) target = $region64
      $region63: #{tpu_custom_call.1} parent=5 // pred_region
        %s4841 = ssub.s32 %s20, 2
        // Predicated region
        $region65: #{tpu_custom_call.1} parent=63 // pred_check
          %p4842 = pneg %p222
        $region66: #{tpu_custom_call.1} parent=63 // pred_check_branch
          %4844 = sbr.rel (%p4842) target = $region68
        $region67: #{tpu_custom_call.1} parent=63 // pred_region
          %s4845 = sand.u32 %s207, 1
          %s4846 = scalar_lea.sflag [#allocation5], %s4845
          %s4847 = sand.u32 %s207, 1
          %s4848 = scalar_lea.vmem [#allocation6], %s4847
          %4849 = dma.done %s4846, 16
        $region68: #{tpu_custom_call.1} parent=63 // pred_fallthru
          _
      $region64: #{tpu_custom_call.1} parent=5 // pred_fallthru
        _
    $region6: #{tpu_custom_call.1} parent=1 // loop_footer
      %s24 = sadd.s32 1, %s20
    $region7: #{tpu_custom_call.1} parent=1 // loop_footer_branch
      %19 = sbr.rel target = $region3
    $region8: #{tpu_custom_call.1} parent=1 // loop_exit
      _
    %4850 = vsyncpa [#allocation4], 1
    %s4851 = scalar_lea.sflag [#allocation4], 1
    %4852 = vsyncpa %s4851, 1
    %4853 = vsyncpa [#allocation5], 1
    %s4854 = scalar_lea.sflag [#allocation5], 1
    %4855 = vsyncpa %s4854, 1

</llo_original>
